<compile_context>
chip_gen: v6e
topology: v6e:2x2x1
jax: 0.10.0
libtpu: 0.0.40
codegen_flags: <defaults>
</compile_context>

<pallas_src>
import functools

import jax
import jax.numpy as jnp
from jax.experimental import pallas as pl
from jax.experimental.pallas import tpu as pltpu


# Static network configuration.  Kept OUT of the params pytree so the conv strides stay
# static Python ints under jit (the previous version put `stride` in the params dict,
# turning it into a tracer -> "Slice entries must be static integers" crash).
STAGE_CFG = (
    # (C_in, C_out, stride); all convs are 3x3, pad 1
    (4, 8, 2),
    (8, 16, 1),
    (16, 16, 2),
    (16, 32, 1),
    (32, 32, 2),
)
N_SIDES = len(STAGE_CFG)

# Sized for v7x (64 MiB physical / 32 MiB default scoped VMEM); also safe on v5e/v6e.
_VMEM_LIMIT = 32 * 1024 * 1024


def _round_up(x, m):
    return (x + m - 1) // m * m


# ----------------------------------------------------------------------------
# Pallas kernel 1: tiled (patches @ weights) with f32 accumulation + bias + act
# ----------------------------------------------------------------------------
def _mm_bias_act_kernel(x_ref, w_ref, b_ref, o_ref, acc_ref, *, act, n_k):
    """One (TM, TK) x (TK, N) step of a K-accumulated matmul.

    Bias is folded into the accumulator init (no per-step broadcast/add);
    the activation runs once in the finalize step.
    """
    @pl.when(pl.program_id(1) == 0)
    def _init():
        acc_ref[...] = jnp.broadcast_to(b_ref[...], acc_ref.shape)

    acc_ref[...] += jnp.dot(x_ref[...], w_ref[...],
                            preferred_element_type=jnp.float32)

    @pl.when(pl.program_id(1) == n_k - 1)
    def _finalize():
        y = acc_ref[...]
        if act == "relu":
            y = jnp.maximum(y, 0.0)
        elif act == "sigmoid":
            y = jax.nn.sigmoid(y)          # exp goes to the EUP; no explicit VPU divide
        o_ref[...] = y.astype(o_ref.dtype)


def matmul_bias_act(x, w_mat, b_row, act="none", out_dtype=jnp.float32,
                    tm=512, tk=512):
    """[M, K] @ [K, N] + b (+ activation), tiled over (M, K).

    MXU operands are bf16, accumulation is f32 in VMEM scratch.  M-tile axis is
    marked "parallel" (v7x megacore); K is the trailing "arbitrary" reduction axis.
    """
    M, K = x.shape
    K2, N = w_mat.shape
    assert K == K2 and b_row.shape == (1, N)

    TM = tm if M >= tm else _round_up(M, 8)
    Mp = _round_up(M, TM)
    if K <= tk:
        TK, Kp = K, K               # single full-K block (no 128-alignment needed)
    else:
        TK, Kp = tk, _round_up(K, tk)

    xp = x.astype(jnp.bfloat16)
    wp = w_mat.astype(jnp.bfloat16)
    if (Mp, Kp) != (M, K):
        xp = jnp.pad(xp, ((0, Mp - M), (0, Kp - K)))
    if Kp != K:
        wp = jnp.pad(wp, ((0, Kp - K), (0, 0)))

    grid = (Mp // TM, Kp // TK)
    kernel = functools.partial(_mm_bias_act_kernel, act=act, n_k=grid[1])

    out = pl.pallas_call(
        kernel,
        out_shape=jax.ShapeDtypeStruct((Mp, N), out_dtype),
        grid_spec=pltpu.PrefetchScalarGridSpec(
            num_scalar_prefetch=0,
            grid=grid,
            in_specs=[
                pl.BlockSpec((TM, TK), lambda i, k: (i, k)),
                pl.BlockSpec((TK, N), lambda i, k: (k, 0)),
                pl.BlockSpec((1, N), lambda i, k: (0, 0)),
            ],
            out_specs=pl.BlockSpec((TM, N), lambda i, k: (i, 0)),
            scratch_shapes=[pltpu.VMEM((TM, N), jnp.float32)],
        ),
        compiler_params=pltpu.CompilerParams(
            dimension_semantics=("parallel", "arbitrary"),
            vmem_limit_bytes=_VMEM_LIMIT),
    )(xp, wp, b_row.astype(jnp.float32))
    return out[:M] if Mp != M else out


# ----------------------------------------------------------------------------
# Glue: im2col (static strides) + conv wrapper
# ----------------------------------------------------------------------------
def _im2col(x_nhwc, kh, kw, stride, pad):
    N, H, W, C = x_nhwc.shape
    xp = jnp.pad(x_nhwc, ((0, 0), (pad, pad), (pad, pad), (0, 0)))
    Ho = (H + 2 * pad - kh) // stride + 1
    Wo = (W + 2 * pad - kw) // stride + 1
    cols = []
    for i in range(kh):
        for j in range(kw):
            cols.append(jax.lax.slice(
                xp,
                (0, i, j, 0),
                (N, i + stride * (Ho - 1) + 1, j + stride * (Wo - 1) + 1, C),
                (1, stride, stride, 1)))
    patches = jnp.concatenate(cols, axis=-1)                  # [N, Ho, Wo, 9*C]
    return patches.reshape(N * Ho * Wo, kh * kw * C), (N, Ho, Wo)


def conv3x3_relu(x_nhwc, w_mat, b_row, stride):
    """3x3 conv (pad 1) + bias + ReLU via im2col + tiled Pallas matmul (bf16 out)."""
    patches, (N, Ho, Wo) = _im2col(x_nhwc, 3, 3, stride, 1)
    y = matmul_bias_act(patches, w_mat, b_row, act="relu", out_dtype=jnp.bfloat16)
    C_out = w_mat.shape[1]
    return y.reshape(N, Ho, Wo, C_out)


# ----------------------------------------------------------------------------
# Pallas kernel 2: ALL five 1x1 side heads + sigmoid in one call (VPU, lane-dense)
# ----------------------------------------------------------------------------
def _side_heads_kernel(*refs, n_sides):
    """refs = feats[0..4] (R_l, W_l, C_l), w[0..4] (1, C_l), b[0..4] (1, 1),
    outs[0..4] (R_l, W_l).  Output last dim = spatial W -> lane-dense stores instead
    of an N_out=1 masked matmul; reduction over C runs on the VPU/XLU."""
    feats = refs[:n_sides]
    ws = refs[n_sides:2 * n_sides]
    bs = refs[2 * n_sides:3 * n_sides]
    outs = refs[3 * n_sides:]
    for l in range(n_sides):
        x = feats[l][...].astype(jnp.float32)                  # (R, W, C)
        y = jnp.sum(x * ws[l][...], axis=-1) + bs[l][...]      # (R, W)
        outs[l][...] = jax.nn.sigmoid(y)


def side_heads(feats_rwc, head_ws, head_bs):
    n = len(feats_rwc)
    kernel = functools.partial(_side_heads_kernel, n_sides=n)
    full = lambda s: pl.BlockSpec(s, lambda i: (0,) * len(s))
    in_specs = ([full(f.shape) for f in feats_rwc]
                + [full(w.shape) for w in head_ws]
                + [full(b.shape) for b in head_bs])
    out_shape = tuple(jax.ShapeDtypeStruct(f.shape[:2], jnp.float32) for f in feats_rwc)
    out_specs = tuple(full(f.shape[:2]) for f in feats_rwc)
    return pl.pallas_call(
        kernel,
        out_shape=out_shape,
        grid_spec=pltpu.PrefetchScalarGridSpec(
            num_scalar_prefetch=0,
            grid=(1,),
            in_specs=in_specs,
            out_specs=out_specs,
        ),
        compiler_params=pltpu.CompilerParams(
            dimension_semantics=("arbitrary",),
            vmem_limit_bytes=_VMEM_LIMIT),
    )(*feats_rwc, *head_ws, *head_bs)


# ----------------------------------------------------------------------------
# Pallas kernel 3: fuse conv (5 -> 1) + sigmoid, tiled over rows, lane-dense output
# ----------------------------------------------------------------------------
def _fuse_kernel(x_ref, w_ref, b_ref, o_ref):
    x = x_ref[...]                                        # (5, TR, Wf) f32
    y = jnp.sum(x * w_ref[...], axis=0) + b_ref[...]      # (TR, Wf)
    o_ref[...] = jax.nn.sigmoid(y)


def fuse_conv_sigmoid(stacked, w5, b11):
    """stacked [5, R, Wf] -> [R, Wf]: 1x1 fuse conv over the 5 side maps + sigmoid."""
    n_s, R, Wf = stacked.shape
    TR = 512 if R >= 512 else _round_up(R, 8)
    Rp = _round_up(R, TR)
    if Rp != R:
        stacked = jnp.pad(stacked, ((0, 0), (0, Rp - R), (0, 0)))
    out = pl.pallas_call(
        _fuse_kernel,
        out_shape=jax.ShapeDtypeStruct((Rp, Wf), jnp.float32),
        grid_spec=pltpu.PrefetchScalarGridSpec(
            num_scalar_prefetch=0,
            grid=(Rp // TR,),
            in_specs=[
                pl.BlockSpec((n_s, TR, Wf), lambda i: (0, i, 0)),
                pl.BlockSpec((n_s, 1, 1), lambda i: (0, 0, 0)),
                pl.BlockSpec((1, 1), lambda i: (0, 0)),
            ],
            out_specs=pl.BlockSpec((TR, Wf), lambda i: (i, 0)),
        ),
        compiler_params=pltpu.CompilerParams(
            dimension_semantics=("parallel",),
            vmem_limit_bytes=_VMEM_LIMIT),
    )(stacked, w5, b11)
    return out[:R] if Rp != R else out


# ----------------------------------------------------------------------------
# Deterministic parameter construction (layouts prepped once, hoisted out of forward)
# ----------------------------------------------------------------------------
def init_params(key):
    params = {"stages": [], "side_heads": []}
    for (ci, co, _stride) in STAGE_CFG:
        key, k1, k2 = jax.random.split(key, 3)
        w_oihw = 0.1 * jax.random.normal(k1, (co, ci, 3, 3), jnp.float32)
        # OIHW -> [kh, kw, C_in, C_out] -> [9*C_in, C_out]  (matches im2col ordering)
        w_mat = jnp.transpose(w_oihw, (2, 3, 1, 0)).reshape(9 * ci, co)
        b = 0.01 * jax.random.normal(k2, (co,), jnp.float32)
        params["stages"].append({"w_mat": w_mat.astype(jnp.bfloat16),
                                 "b": b.reshape(1, co)})
        key, k3, k4 = jax.random.split(key, 3)
        params["side_heads"].append({
            "w": 0.1 * jax.random.normal(k3, (1, co), jnp.float32),
            "b": 0.01 * jax.random.normal(k4, (1, 1), jnp.float32),
        })
    key, k5, k6 = jax.random.split(key, 3)
    params["fuse"] = {
        "w": 0.2 * jax.random.normal(k5, (N_SIDES, 1, 1), jnp.float32),
        "b": 0.01 * jax.random.normal(k6, (1, 1), jnp.float32),
    }
    return params


# ----------------------------------------------------------------------------
# CobNet forward
# ----------------------------------------------------------------------------
def cobnet_forward(params, im_nchw):
    """im_nchw [N,C,H,W] -> (Y_sides {0..4: [N,1,H/2,W/2]}, Y_fused [N,1,H/2,W/2])."""
    N, C, H, W = im_nchw.shape
    Hf, Wf = H // 2, W // 2   # analogue of base_shape // 2 in the PyTorch module

    x = jnp.transpose(im_nchw, (0, 2, 3, 1))   # NCHW -> NHWC

    # backbone: 5 side feature maps, each conv = one tiled Pallas matmul kernel
    side_feats = []
    for st_params, (_, _, stride) in zip(params["stages"], STAGE_CFG):
        x = conv3x3_relu(x, st_params["w_mat"], st_params["b"], stride)
        side_feats.append(x)

    # all five 1x1 side heads + sigmoid: ONE fused Pallas call, lane-dense outputs
    feats_rwc = [f.reshape(f.shape[0] * f.shape[1], f.shape[2], f.shape[3])
                 for f in side_feats]
    head_ws = [h["w"] for h in params["side_heads"]]
    head_bs = [h["b"] for h in params["side_heads"]]
    side_maps = side_heads(feats_rwc, head_ws, head_bs)      # tuple of (N*h_l, w_l)

    # upsample each side map to fuse resolution (JAX glue; stand-in for deconv)
    Y_sides = {}
    ups = []
    for l, (feat, y2d) in enumerate(zip(side_feats, side_maps)):
        n, h, w, _ = feat.shape
        y = y2d.reshape(n, h, w, 1)
        y_up = jax.image.resize(y, (n, Hf, Wf, 1), method="bilinear")
        Y_sides[l] = jnp.transpose(y_up, (0, 3, 1, 2))        # NCHW
        ups.append(y_up[..., 0].reshape(n * Hf, Wf))
    stacked = jnp.stack(ups, axis=0)                          # [5, N*Hf, Wf]

    # fuse: 1x1 conv over the 5 side maps + sigmoid (one Pallas call)
    y_fused = fuse_conv_sigmoid(stacked, params["fuse"]["w"], params["fuse"]["b"])
    Y_fused = y_fused.reshape(N, 1, Hf, Wf)

    return Y_sides, Y_fused


# ----------------------------------------------------------------------------
if __name__ == "__main__":
    key = jax.random.PRNGKey(0)
    k_x, k_p = jax.random.split(key)

    x = jax.random.normal(k_x, (2, 4, 16, 16), jnp.float32)   # NCHW, like PyTorch
    params = init_params(k_p)

    fwd = jax.jit(cobnet_forward)
    Y_sides, Y_fused = fwd(params, x)
    Y_fused = jax.block_until_ready(Y_fused)
    for l in range(N_SIDES):
        jax.block_until_ready(Y_sides[l])

    # sanity: expected shapes, finite sigmoid outputs in (0, 1)
    assert Y_fused.shape == (2, 1, 8, 8)
    assert all(Y_sides[l].shape == (2, 1, 8, 8) for l in range(N_SIDES))
    assert bool(jnp.all(jnp.isfinite(Y_fused)))
    assert bool(jnp.all((Y_fused > 0.0) & (Y_fused < 1.0)))

    print("KERNEL_OK")
</pallas_src>

<mosaic_0001>
module attributes {stable_mosaic.version = 11 : i64} {
  func.func @_mm_bias_act_kernel(%arg0: i32, %arg1: i32, %arg2: memref<128x36xbf16, #tpu.memory_space<vmem>>, %arg3: memref<36x8xbf16, #tpu.memory_space<vmem>>, %arg4: memref<1x8xf32, #tpu.memory_space<vmem>>, %arg5: memref<128x8xbf16, #tpu.memory_space<vmem>>, %arg6: memref<128x8xf32, #tpu.memory_space<vmem>>) attributes {dimension_semantics = [#tpu.dimension_semantics<parallel>, #tpu.dimension_semantics<arbitrary>], iteration_bounds = array<i64: 1, 1>, scalar_prefetch = 0 : i64, scratch_operands = 1 : i64, tpu.core_type = #tpu.core_type<tc>, window_params = [{transform_indices = @transform_0, window_bounds = array<i64: 128, 36>}, {transform_indices = @transform_1, window_bounds = array<i64: 36, 8>}, {pipeline_mode = #tpu.pipeline_mode<synchronous>, transform_indices = @transform_2, window_bounds = array<i64: 1, 8>}, {transform_indices = @transform_3, window_bounds = array<i64: 128, 8>}]} {
    %c0_i32 = arith.constant 0 : i32
    %0 = arith.cmpi eq, %arg1, %c0_i32 : i32
    %1 = arith.extui %0 : i1 to i32
    %c0_i32_0 = arith.constant 0 : i32
    %2 = arith.cmpi ne, %1, %c0_i32_0 : i32
    scf.if %2 {
      %c0_10 = arith.constant 0 : index
      %c0_11 = arith.constant 0 : index
      %12 = vector.load %arg4[%c0_10, %c0_11] : memref<1x8xf32, #tpu.memory_space<vmem>>, vector<1x8xf32>
      %13 = vector.shape_cast %12 : vector<1x8xf32> to vector<1x8xf32>
      %14 = vector.broadcast %13 : vector<1x8xf32> to vector<128x8xf32>
      %c0_12 = arith.constant 0 : index
      %c0_13 = arith.constant 0 : index
      %15 = vector.load %arg6[%c0_12, %c0_13] : memref<128x8xf32, #tpu.memory_space<vmem>>, vector<128x8xf32>
      tpu.vector_store %arg6[%c0_12, %c0_13], %14 {strides = array<i32>} : memref<128x8xf32, #tpu.memory_space<vmem>>, vector<128x8xf32>,
    } else {
    }
    %c0 = arith.constant 0 : index
    %c0_1 = arith.constant 0 : index
    %3 = vector.load %arg6[%c0, %c0_1] : memref<128x8xf32, #tpu.memory_space<vmem>>, vector<128x8xf32>
    %c0_2 = arith.constant 0 : index
    %c0_3 = arith.constant 0 : index
    %4 = vector.load %arg2[%c0_2, %c0_3] : memref<128x36xbf16, #tpu.memory_space<vmem>>, vector<128x36xbf16>
    %c0_4 = arith.constant 0 : index
    %c0_5 = arith.constant 0 : index
    %5 = vector.load %arg3[%c0_4, %c0_5] : memref<36x8xbf16, #tpu.memory_space<vmem>>, vector<36x8xbf16>
    %cst = arith.constant dense<0.000000e+00> : vector<128x8xf32>
    %6 = tpu.matmul %4, %5, %cst {dimension_numbers = #tpu.dot_dimension_numbers<[1], [0], [0], [1], [0, 0, 1, 1], [], []>} : vector<128x36xbf16>, vector<36x8xbf16>, vector<128x8xf32> -> vector<128x8xf32>
    %7 = arith.addf %3, %6 : vector<128x8xf32>
    %c0_6 = arith.constant 0 : index
    %c0_7 = arith.constant 0 : index
    %8 = vector.load %arg6[%c0_6, %c0_7] : memref<128x8xf32, #tpu.memory_space<vmem>>, vector<128x8xf32>
    tpu.vector_store %arg6[%c0_6, %c0_7], %7 {strides = array<i32>} : memref<128x8xf32, #tpu.memory_space<vmem>>, vector<128x8xf32>,
    %c0_i32_8 = arith.constant 0 : i32
    %9 = arith.cmpi eq, %arg1, %c0_i32_8 : i32
    %10 = arith.extui %9 : i1 to i32
    %c0_i32_9 = arith.constant 0 : i32
    %11 = arith.cmpi ne, %10, %c0_i32_9 : i32
    scf.if %11 {
      %c0_10 = arith.constant 0 : index
      %c0_11 = arith.constant 0 : index
      %12 = vector.load %arg6[%c0_10, %c0_11] : memref<128x8xf32, #tpu.memory_space<vmem>>, vector<128x8xf32>
      %cst_12 = arith.constant 0.000000e+00 : f32
      %13 = vector.broadcast %cst_12 : f32 to vector<128x8xf32>
      %14 = arith.maximumf %12, %13 : vector<128x8xf32>
      %15 = arith.truncf %14 : vector<128x8xf32> to vector<128x8xbf16>
      %c0_13 = arith.constant 0 : index
      %c0_14 = arith.constant 0 : index
      %16 = vector.load %arg5[%c0_13, %c0_14] : memref<128x8xbf16, #tpu.memory_space<vmem>>, vector<128x8xbf16>
      tpu.vector_store %arg5[%c0_13, %c0_14], %15 {strides = array<i32>} : memref<128x8xbf16, #tpu.memory_space<vmem>>, vector<128x8xbf16>,
    } else {
    }
    return
  }
  func.func @transform_0(%arg0: i32, %arg1: i32) -> (i32, i32) {
    %c0_i32 = arith.constant 0 : i32
    return %arg0, %arg1 : i32, i32
  }
  func.func @transform_1(%arg0: i32, %arg1: i32) -> (i32, i32) {
    %c0_i32 = arith.constant 0 : i32
    %c0_i32_0 = arith.constant 0 : i32
    return %arg1, %c0_i32 : i32, i32
  }
  func.func @transform_2(%arg0: i32, %arg1: i32) -> (i32, i32) {
    %c0_i32 = arith.constant 0 : i32
    %c0_i32_0 = arith.constant 0 : i32
    %c0_i32_1 = arith.constant 0 : i32
    return %c0_i32, %c0_i32_0 : i32, i32
  }
  func.func @transform_3(%arg0: i32, %arg1: i32) -> (i32, i32) {
    %c0_i32 = arith.constant 0 : i32
    %c0_i32_0 = arith.constant 0 : i32
    return %arg0, %c0_i32 : i32, i32
  }
}

module attributes {stable_mosaic.version = 11 : i64} {
  func.func @_mm_bias_act_kernel(%arg0: i32, %arg1: i32, %arg2: memref<128x72xbf16, #tpu.memory_space<vmem>>, %arg3: memref<72x16xbf16, #tpu.memory_space<vmem>>, %arg4: memref<1x16xf32, #tpu.memory_space<vmem>>, %arg5: memref<128x16xbf16, #tpu.memory_space<vmem>>, %arg6: memref<128x16xf32, #tpu.memory_space<vmem>>) attributes {dimension_semantics = [#tpu.dimension_semantics<parallel>, #tpu.dimension_semantics<arbitrary>], iteration_bounds = array<i64: 1, 1>, scalar_prefetch = 0 : i64, scratch_operands = 1 : i64, tpu.core_type = #tpu.core_type<tc>, window_params = [{transform_indices = @transform_0, window_bounds = array<i64: 128, 72>}, {transform_indices = @transform_1, window_bounds = array<i64: 72, 16>}, {pipeline_mode = #tpu.pipeline_mode<synchronous>, transform_indices = @transform_2, window_bounds = array<i64: 1, 16>}, {transform_indices = @transform_3, window_bounds = array<i64: 128, 16>}]} {
    %c0_i32 = arith.constant 0 : i32
    %0 = arith.cmpi eq, %arg1, %c0_i32 : i32
    %1 = arith.extui %0 : i1 to i32
    %c0_i32_0 = arith.constant 0 : i32
    %2 = arith.cmpi ne, %1, %c0_i32_0 : i32
    scf.if %2 {
      %c0_10 = arith.constant 0 : index
      %c0_11 = arith.constant 0 : index
      %12 = vector.load %arg4[%c0_10, %c0_11] : memref<1x16xf32, #tpu.memory_space<vmem>>, vector<1x16xf32>
      %13 = vector.shape_cast %12 : vector<1x16xf32> to vector<1x16xf32>
      %14 = vector.broadcast %13 : vector<1x16xf32> to vector<128x16xf32>
      %c0_12 = arith.constant 0 : index
      %c0_13 = arith.constant 0 : index
      %15 = vector.load %arg6[%c0_12, %c0_13] : memref<128x16xf32, #tpu.memory_space<vmem>>, vector<128x16xf32>
      tpu.vector_store %arg6[%c0_12, %c0_13], %14 {strides = array<i32>} : memref<128x16xf32, #tpu.memory_space<vmem>>, vector<128x16xf32>,
    } else {
    }
    %c0 = arith.constant 0 : index
    %c0_1 = arith.constant 0 : index
    %3 = vector.load %arg6[%c0, %c0_1] : memref<128x16xf32, #tpu.memory_space<vmem>>, vector<128x16xf32>
    %c0_2 = arith.constant 0 : index
    %c0_3 = arith.constant 0 : index
    %4 = vector.load %arg2[%c0_2, %c0_3] : memref<128x72xbf16, #tpu.memory_space<vmem>>, vector<128x72xbf16>
    %c0_4 = arith.constant 0 : index
    %c0_5 = arith.constant 0 : index
    %5 = vector.load %arg3[%c0_4, %c0_5] : memref<72x16xbf16, #tpu.memory_space<vmem>>, vector<72x16xbf16>
    %cst = arith.constant dense<0.000000e+00> : vector<128x16xf32>
    %6 = tpu.matmul %4, %5, %cst {dimension_numbers = #tpu.dot_dimension_numbers<[1], [0], [0], [1], [0, 0, 1, 1], [], []>} : vector<128x72xbf16>, vector<72x16xbf16>, vector<128x16xf32> -> vector<128x16xf32>
    %7 = arith.addf %3, %6 : vector<128x16xf32>
    %c0_6 = arith.constant 0 : index
    %c0_7 = arith.constant 0 : index
    %8 = vector.load %arg6[%c0_6, %c0_7] : memref<128x16xf32, #tpu.memory_space<vmem>>, vector<128x16xf32>
    tpu.vector_store %arg6[%c0_6, %c0_7], %7 {strides = array<i32>} : memref<128x16xf32, #tpu.memory_space<vmem>>, vector<128x16xf32>,
    %c0_i32_8 = arith.constant 0 : i32
    %9 = arith.cmpi eq, %arg1, %c0_i32_8 : i32
    %10 = arith.extui %9 : i1 to i32
    %c0_i32_9 = arith.constant 0 : i32
    %11 = arith.cmpi ne, %10, %c0_i32_9 : i32
    scf.if %11 {
      %c0_10 = arith.constant 0 : index
      %c0_11 = arith.constant 0 : index
      %12 = vector.load %arg6[%c0_10, %c0_11] : memref<128x16xf32, #tpu.memory_space<vmem>>, vector<128x16xf32>
      %cst_12 = arith.constant 0.000000e+00 : f32
      %13 = vector.broadcast %cst_12 : f32 to vector<128x16xf32>
      %14 = arith.maximumf %12, %13 : vector<128x16xf32>
      %15 = arith.truncf %14 : vector<128x16xf32> to vector<128x16xbf16>
      %c0_13 = arith.constant 0 : index
      %c0_14 = arith.constant 0 : index
      %16 = vector.load %arg5[%c0_13, %c0_14] : memref<128x16xbf16, #tpu.memory_space<vmem>>, vector<128x16xbf16>
      tpu.vector_store %arg5[%c0_13, %c0_14], %15 {strides = array<i32>} : memref<128x16xbf16, #tpu.memory_space<vmem>>, vector<128x16xbf16>,
    } else {
    }
    return
  }
  func.func @transform_0(%arg0: i32, %arg1: i32) -> (i32, i32) {
    %c0_i32 = arith.constant 0 : i32
    return %arg0, %arg1 : i32, i32
  }
  func.func @transform_1(%arg0: i32, %arg1: i32) -> (i32, i32) {
    %c0_i32 = arith.constant 0 : i32
    %c0_i32_0 = arith.constant 0 : i32
    return %arg1, %c0_i32 : i32, i32
  }
  func.func @transform_2(%arg0: i32, %arg1: i32) -> (i32, i32) {
    %c0_i32 = arith.constant 0 : i32
    %c0_i32_0 = arith.constant 0 : i32
    %c0_i32_1 = arith.constant 0 : i32
    return %c0_i32, %c0_i32_0 : i32, i32
  }
  func.func @transform_3(%arg0: i32, %arg1: i32) -> (i32, i32) {
    %c0_i32 = arith.constant 0 : i32
    %c0_i32_0 = arith.constant 0 : i32
    return %arg0, %c0_i32 : i32, i32
  }
}

module attributes {stable_mosaic.version = 11 : i64} {
  func.func @_mm_bias_act_kernel(%arg0: i32, %arg1: i32, %arg2: memref<32x144xbf16, #tpu.memory_space<vmem>>, %arg3: memref<144x16xbf16, #tpu.memory_space<vmem>>, %arg4: memref<1x16xf32, #tpu.memory_space<vmem>>, %arg5: memref<32x16xbf16, #tpu.memory_space<vmem>>, %arg6: memref<32x16xf32, #tpu.memory_space<vmem>>) attributes {dimension_semantics = [#tpu.dimension_semantics<parallel>, #tpu.dimension_semantics<arbitrary>], iteration_bounds = array<i64: 1, 1>, scalar_prefetch = 0 : i64, scratch_operands = 1 : i64, tpu.core_type = #tpu.core_type<tc>, window_params = [{transform_indices = @transform_0, window_bounds = array<i64: 32, 144>}, {transform_indices = @transform_1, window_bounds = array<i64: 144, 16>}, {pipeline_mode = #tpu.pipeline_mode<synchronous>, transform_indices = @transform_2, window_bounds = array<i64: 1, 16>}, {transform_indices = @transform_3, window_bounds = array<i64: 32, 16>}]} {
    %c0_i32 = arith.constant 0 : i32
    %0 = arith.cmpi eq, %arg1, %c0_i32 : i32
    %1 = arith.extui %0 : i1 to i32
    %c0_i32_0 = arith.constant 0 : i32
    %2 = arith.cmpi ne, %1, %c0_i32_0 : i32
    scf.if %2 {
      %c0_10 = arith.constant 0 : index
      %c0_11 = arith.constant 0 : index
      %12 = vector.load %arg4[%c0_10, %c0_11] : memref<1x16xf32, #tpu.memory_space<vmem>>, vector<1x16xf32>
      %13 = vector.shape_cast %12 : vector<1x16xf32> to vector<1x16xf32>
      %14 = vector.broadcast %13 : vector<1x16xf32> to vector<32x16xf32>
      %c0_12 = arith.constant 0 : index
      %c0_13 = arith.constant 0 : index
      %15 = vector.load %arg6[%c0_12, %c0_13] : memref<32x16xf32, #tpu.memory_space<vmem>>, vector<32x16xf32>
      tpu.vector_store %arg6[%c0_12, %c0_13], %14 {strides = array<i32>} : memref<32x16xf32, #tpu.memory_space<vmem>>, vector<32x16xf32>,
    } else {
    }
    %c0 = arith.constant 0 : index
    %c0_1 = arith.constant 0 : index
    %3 = vector.load %arg6[%c0, %c0_1] : memref<32x16xf32, #tpu.memory_space<vmem>>, vector<32x16xf32>
    %c0_2 = arith.constant 0 : index
    %c0_3 = arith.constant 0 : index
    %4 = vector.load %arg2[%c0_2, %c0_3] : memref<32x144xbf16, #tpu.memory_space<vmem>>, vector<32x144xbf16>
    %c0_4 = arith.constant 0 : index
    %c0_5 = arith.constant 0 : index
    %5 = vector.load %arg3[%c0_4, %c0_5] : memref<144x16xbf16, #tpu.memory_space<vmem>>, vector<144x16xbf16>
    %cst = arith.constant dense<0.000000e+00> : vector<32x16xf32>
    %6 = tpu.matmul %4, %5, %cst {dimension_numbers = #tpu.dot_dimension_numbers<[1], [0], [0], [1], [0, 0, 1, 1], [], []>} : vector<32x144xbf16>, vector<144x16xbf16>, vector<32x16xf32> -> vector<32x16xf32>
    %7 = arith.addf %3, %6 : vector<32x16xf32>
    %c0_6 = arith.constant 0 : index
    %c0_7 = arith.constant 0 : index
    %8 = vector.load %arg6[%c0_6, %c0_7] : memref<32x16xf32, #tpu.memory_space<vmem>>, vector<32x16xf32>
    tpu.vector_store %arg6[%c0_6, %c0_7], %7 {strides = array<i32>} : memref<32x16xf32, #tpu.memory_space<vmem>>, vector<32x16xf32>,
    %c0_i32_8 = arith.constant 0 : i32
    %9 = arith.cmpi eq, %arg1, %c0_i32_8 : i32
    %10 = arith.extui %9 : i1 to i32
    %c0_i32_9 = arith.constant 0 : i32
    %11 = arith.cmpi ne, %10, %c0_i32_9 : i32
    scf.if %11 {
      %c0_10 = arith.constant 0 : index
      %c0_11 = arith.constant 0 : index
      %12 = vector.load %arg6[%c0_10, %c0_11] : memref<32x16xf32, #tpu.memory_space<vmem>>, vector<32x16xf32>
      %cst_12 = arith.constant 0.000000e+00 : f32
      %13 = vector.broadcast %cst_12 : f32 to vector<32x16xf32>
      %14 = arith.maximumf %12, %13 : vector<32x16xf32>
      %15 = arith.truncf %14 : vector<32x16xf32> to vector<32x16xbf16>
      %c0_13 = arith.constant 0 : index
      %c0_14 = arith.constant 0 : index
      %16 = vector.load %arg5[%c0_13, %c0_14] : memref<32x16xbf16, #tpu.memory_space<vmem>>, vector<32x16xbf16>
      tpu.vector_store %arg5[%c0_13, %c0_14], %15 {strides = array<i32>} : memref<32x16xbf16, #tpu.memory_space<vmem>>, vector<32x16xbf16>,
    } else {
    }
    return
  }
  func.func @transform_0(%arg0: i32, %arg1: i32) -> (i32, i32) {
    %c0_i32 = arith.constant 0 : i32
    return %arg0, %arg1 : i32, i32
  }
  func.func @transform_1(%arg0: i32, %arg1: i32) -> (i32, i32) {
    %c0_i32 = arith.constant 0 : i32
    %c0_i32_0 = arith.constant 0 : i32
    return %arg1, %c0_i32 : i32, i32
  }
  func.func @transform_2(%arg0: i32, %arg1: i32) -> (i32, i32) {
    %c0_i32 = arith.constant 0 : i32
    %c0_i32_0 = arith.constant 0 : i32
    %c0_i32_1 = arith.constant 0 : i32
    return %c0_i32, %c0_i32_0 : i32, i32
  }
  func.func @transform_3(%arg0: i32, %arg1: i32) -> (i32, i32) {
    %c0_i32 = arith.constant 0 : i32
    %c0_i32_0 = arith.constant 0 : i32
    return %arg0, %c0_i32 : i32, i32
  }
}

module attributes {stable_mosaic.version = 11 : i64} {
  func.func @_mm_bias_act_kernel(%arg0: i32, %arg1: i32, %arg2: memref<32x144xbf16, #tpu.memory_space<vmem>>, %arg3: memref<144x32xbf16, #tpu.memory_space<vmem>>, %arg4: memref<1x32xf32, #tpu.memory_space<vmem>>, %arg5: memref<32x32xbf16, #tpu.memory_space<vmem>>, %arg6: memref<32x32xf32, #tpu.memory_space<vmem>>) attributes {dimension_semantics = [#tpu.dimension_semantics<parallel>, #tpu.dimension_semantics<arbitrary>], iteration_bounds = array<i64: 1, 1>, scalar_prefetch = 0 : i64, scratch_operands = 1 : i64, tpu.core_type = #tpu.core_type<tc>, window_params = [{transform_indices = @transform_0, window_bounds = array<i64: 32, 144>}, {transform_indices = @transform_1, window_bounds = array<i64: 144, 32>}, {pipeline_mode = #tpu.pipeline_mode<synchronous>, transform_indices = @transform_2, window_bounds = array<i64: 1, 32>}, {transform_indices = @transform_3, window_bounds = array<i64: 32, 32>}]} {
    %c0_i32 = arith.constant 0 : i32
    %0 = arith.cmpi eq, %arg1, %c0_i32 : i32
    %1 = arith.extui %0 : i1 to i32
    %c0_i32_0 = arith.constant 0 : i32
    %2 = arith.cmpi ne, %1, %c0_i32_0 : i32
    scf.if %2 {
      %c0_10 = arith.constant 0 : index
      %c0_11 = arith.constant 0 : index
      %12 = vector.load %arg4[%c0_10, %c0_11] : memref<1x32xf32, #tpu.memory_space<vmem>>, vector<1x32xf32>
      %13 = vector.shape_cast %12 : vector<1x32xf32> to vector<1x32xf32>
      %14 = vector.broadcast %13 : vector<1x32xf32> to vector<32x32xf32>
      %c0_12 = arith.constant 0 : index
      %c0_13 = arith.constant 0 : index
      %15 = vector.load %arg6[%c0_12, %c0_13] : memref<32x32xf32, #tpu.memory_space<vmem>>, vector<32x32xf32>
      tpu.vector_store %arg6[%c0_12, %c0_13], %14 {strides = array<i32>} : memref<32x32xf32, #tpu.memory_space<vmem>>, vector<32x32xf32>,
    } else {
    }
    %c0 = arith.constant 0 : index
    %c0_1 = arith.constant 0 : index
    %3 = vector.load %arg6[%c0, %c0_1] : memref<32x32xf32, #tpu.memory_space<vmem>>, vector<32x32xf32>
    %c0_2 = arith.constant 0 : index
    %c0_3 = arith.constant 0 : index
    %4 = vector.load %arg2[%c0_2, %c0_3] : memref<32x144xbf16, #tpu.memory_space<vmem>>, vector<32x144xbf16>
    %c0_4 = arith.constant 0 : index
    %c0_5 = arith.constant 0 : index
    %5 = vector.load %arg3[%c0_4, %c0_5] : memref<144x32xbf16, #tpu.memory_space<vmem>>, vector<144x32xbf16>
    %cst = arith.constant dense<0.000000e+00> : vector<32x32xf32>
    %6 = tpu.matmul %4, %5, %cst {dimension_numbers = #tpu.dot_dimension_numbers<[1], [0], [0], [1], [0, 0, 1, 1], [], []>} : vector<32x144xbf16>, vector<144x32xbf16>, vector<32x32xf32> -> vector<32x32xf32>
    %7 = arith.addf %3, %6 : vector<32x32xf32>
    %c0_6 = arith.constant 0 : index
    %c0_7 = arith.constant 0 : index
    %8 = vector.load %arg6[%c0_6, %c0_7] : memref<32x32xf32, #tpu.memory_space<vmem>>, vector<32x32xf32>
    tpu.vector_store %arg6[%c0_6, %c0_7], %7 {strides = array<i32>} : memref<32x32xf32, #tpu.memory_space<vmem>>, vector<32x32xf32>,
    %c0_i32_8 = arith.constant 0 : i32
    %9 = arith.cmpi eq, %arg1, %c0_i32_8 : i32
    %10 = arith.extui %9 : i1 to i32
    %c0_i32_9 = arith.constant 0 : i32
    %11 = arith.cmpi ne, %10, %c0_i32_9 : i32
    scf.if %11 {
      %c0_10 = arith.constant 0 : index
      %c0_11 = arith.constant 0 : index
      %12 = vector.load %arg6[%c0_10, %c0_11] : memref<32x32xf32, #tpu.memory_space<vmem>>, vector<32x32xf32>
      %cst_12 = arith.constant 0.000000e+00 : f32
      %13 = vector.broadcast %cst_12 : f32 to vector<32x32xf32>
      %14 = arith.maximumf %12, %13 : vector<32x32xf32>
      %15 = arith.truncf %14 : vector<32x32xf32> to vector<32x32xbf16>
      %c0_13 = arith.constant 0 : index
      %c0_14 = arith.constant 0 : index
      %16 = vector.load %arg5[%c0_13, %c0_14] : memref<32x32xbf16, #tpu.memory_space<vmem>>, vector<32x32xbf16>
      tpu.vector_store %arg5[%c0_13, %c0_14], %15 {strides = array<i32>} : memref<32x32xbf16, #tpu.memory_space<vmem>>, vector<32x32xbf16>,
    } else {
    }
    return
  }
  func.func @transform_0(%arg0: i32, %arg1: i32) -> (i32, i32) {
    %c0_i32 = arith.constant 0 : i32
    return %arg0, %arg1 : i32, i32
  }
  func.func @transform_1(%arg0: i32, %arg1: i32) -> (i32, i32) {
    %c0_i32 = arith.constant 0 : i32
    %c0_i32_0 = arith.constant 0 : i32
    return %arg1, %c0_i32 : i32, i32
  }
  func.func @transform_2(%arg0: i32, %arg1: i32) -> (i32, i32) {
    %c0_i32 = arith.constant 0 : i32
    %c0_i32_0 = arith.constant 0 : i32
    %c0_i32_1 = arith.constant 0 : i32
    return %c0_i32, %c0_i32_0 : i32, i32
  }
  func.func @transform_3(%arg0: i32, %arg1: i32) -> (i32, i32) {
    %c0_i32 = arith.constant 0 : i32
    %c0_i32_0 = arith.constant 0 : i32
    return %arg0, %c0_i32 : i32, i32
  }
}

module attributes {stable_mosaic.version = 11 : i64} {
  func.func @_side_heads_kernel(%arg0: i32, %arg1: memref<16x8x8xbf16, #tpu.memory_space<vmem>>, %arg2: memref<16x8x16xbf16, #tpu.memory_space<vmem>>, %arg3: memref<8x4x16xbf16, #tpu.memory_space<vmem>>, %arg4: memref<8x4x32xbf16, #tpu.memory_space<vmem>>, %arg5: memref<4x2x32xbf16, #tpu.memory_space<vmem>>, %arg6: memref<1x8xf32, #tpu.memory_space<vmem>>, %arg7: memref<1x16xf32, #tpu.memory_space<vmem>>, %arg8: memref<1x16xf32, #tpu.memory_space<vmem>>, %arg9: memref<1x32xf32, #tpu.memory_space<vmem>>, %arg10: memref<1x32xf32, #tpu.memory_space<vmem>>, %arg11: memref<1x1xf32, #tpu.memory_space<vmem>>, %arg12: memref<1x1xf32, #tpu.memory_space<vmem>>, %arg13: memref<1x1xf32, #tpu.memory_space<vmem>>, %arg14: memref<1x1xf32, #tpu.memory_space<vmem>>, %arg15: memref<1x1xf32, #tpu.memory_space<vmem>>, %arg16: memref<16x8xf32, #tpu.memory_space<vmem>>, %arg17: memref<16x8xf32, #tpu.memory_space<vmem>>, %arg18: memref<8x4xf32, #tpu.memory_space<vmem>>, %arg19: memref<8x4xf32, #tpu.memory_space<vmem>>, %arg20: memref<4x2xf32, #tpu.memory_space<vmem>>) attributes {dimension_semantics = [#tpu.dimension_semantics<arbitrary>], iteration_bounds = array<i64: 1>, scalar_prefetch = 0 : i64, scratch_operands = 0 : i64, tpu.core_type = #tpu.core_type<tc>, window_params = [{pipeline_mode = #tpu.pipeline_mode<synchronous>, transform_indices = @transform_0, window_bounds = array<i64: 16, 8, 8>}, {pipeline_mode = #tpu.pipeline_mode<synchronous>, transform_indices = @transform_1, window_bounds = array<i64: 16, 8, 16>}, {pipeline_mode = #tpu.pipeline_mode<synchronous>, transform_indices = @transform_2, window_bounds = array<i64: 8, 4, 16>}, {pipeline_mode = #tpu.pipeline_mode<synchronous>, transform_indices = @transform_3, window_bounds = array<i64: 8, 4, 32>}, {pipeline_mode = #tpu.pipeline_mode<synchronous>, transform_indices = @transform_4, window_bounds = array<i64: 4, 2, 32>}, {pipeline_mode = #tpu.pipeline_mode<synchronous>, transform_indices = @transform_5, window_bounds = array<i64: 1, 8>}, {pipeline_mode = #tpu.pipeline_mode<synchronous>, transform_indices = @transform_6, window_bounds = array<i64: 1, 16>}, {pipeline_mode = #tpu.pipeline_mode<synchronous>, transform_indices = @transform_7, window_bounds = array<i64: 1, 16>}, {pipeline_mode = #tpu.pipeline_mode<synchronous>, transform_indices = @transform_8, window_bounds = array<i64: 1, 32>}, {pipeline_mode = #tpu.pipeline_mode<synchronous>, transform_indices = @transform_9, window_bounds = array<i64: 1, 32>}, {pipeline_mode = #tpu.pipeline_mode<synchronous>, transform_indices = @transform_10, window_bounds = array<i64: 1, 1>}, {pipeline_mode = #tpu.pipeline_mode<synchronous>, transform_indices = @transform_11, window_bounds = array<i64: 1, 1>}, {pipeline_mode = #tpu.pipeline_mode<synchronous>, transform_indices = @transform_12, window_bounds = array<i64: 1, 1>}, {pipeline_mode = #tpu.pipeline_mode<synchronous>, transform_indices = @transform_13, window_bounds = array<i64: 1, 1>}, {pipeline_mode = #tpu.pipeline_mode<synchronous>, transform_indices = @transform_14, window_bounds = array<i64: 1, 1>}, {pipeline_mode = #tpu.pipeline_mode<synchronous>, transform_indices = @transform_15, window_bounds = array<i64: 16, 8>}, {pipeline_mode = #tpu.pipeline_mode<synchronous>, transform_indices = @transform_16, window_bounds = array<i64: 16, 8>}, {pipeline_mode = #tpu.pipeline_mode<synchronous>, transform_indices = @transform_17, window_bounds = array<i64: 8, 4>}, {pipeline_mode = #tpu.pipeline_mode<synchronous>, transform_indices = @transform_18, window_bounds = array<i64: 8, 4>}, {pipeline_mode = #tpu.pipeline_mode<synchronous>, transform_indices = @transform_19, window_bounds = array<i64: 4, 2>}]} {
    %c0 = arith.constant 0 : index
    %c0_0 = arith.constant 0 : index
    %c0_1 = arith.constant 0 : index
    %0 = vector.load %arg1[%c0, %c0_0, %c0_1] : memref<16x8x8xbf16, #tpu.memory_space<vmem>>, vector<16x8x8xbf16>
    %1 = arith.extf %0 : vector<16x8x8xbf16> to vector<16x8x8xf32>
    %c0_2 = arith.constant 0 : index
    %c0_3 = arith.constant 0 : index
    %2 = vector.load %arg6[%c0_2, %c0_3] : memref<1x8xf32, #tpu.memory_space<vmem>>, vector<1x8xf32>
    %3 = vector.shape_cast %2 : vector<1x8xf32> to vector<1x1x8xf32>
    %4 = vector.broadcast %3 : vector<1x1x8xf32> to vector<16x8x8xf32>
    %5 = arith.mulf %1, %4 : vector<16x8x8xf32>
    %cst = arith.constant dense<0.000000e+00> : vector<16x8xf32>
    %6 = vector.multi_reduction <add>, %5, %cst [2] : vector<16x8x8xf32> to vector<16x8xf32>
    %c0_4 = arith.constant 0 : index
    %c0_5 = arith.constant 0 : index
    %7 = vector.load %arg11[%c0_4, %c0_5] : memref<1x1xf32, #tpu.memory_space<vmem>>, vector<1x1xf32>
    %8 = vector.broadcast %7 : vector<1x1xf32> to vector<16x8xf32>
    %9 = arith.addf %6, %8 : vector<16x8xf32>
    %10 = arith.negf %9 : vector<16x8xf32>
    %11 = math.exp %10 : vector<16x8xf32>
    %cst_6 = arith.constant 1.000000e+00 : f32
    %12 = vector.broadcast %cst_6 : f32 to vector<16x8xf32>
    %13 = arith.addf %12, %11 : vector<16x8xf32>
    %14 = arith.divf %12, %13 : vector<16x8xf32>
    %c0_7 = arith.constant 0 : index
    %c0_8 = arith.constant 0 : index
    %15 = vector.load %arg16[%c0_7, %c0_8] : memref<16x8xf32, #tpu.memory_space<vmem>>, vector<16x8xf32>
    tpu.vector_store %arg16[%c0_7, %c0_8], %14 {strides = array<i32>} : memref<16x8xf32, #tpu.memory_space<vmem>>, vector<16x8xf32>,
    %c0_9 = arith.constant 0 : index
    %c0_10 = arith.constant 0 : index
    %c0_11 = arith.constant 0 : index
    %16 = vector.load %arg2[%c0_9, %c0_10, %c0_11] : memref<16x8x16xbf16, #tpu.memory_space<vmem>>, vector<16x8x16xbf16>
    %17 = arith.extf %16 : vector<16x8x16xbf16> to vector<16x8x16xf32>
    %c0_12 = arith.constant 0 : index
    %c0_13 = arith.constant 0 : index
    %18 = vector.load %arg7[%c0_12, %c0_13] : memref<1x16xf32, #tpu.memory_space<vmem>>, vector<1x16xf32>
    %19 = vector.shape_cast %18 : vector<1x16xf32> to vector<1x1x16xf32>
    %20 = vector.broadcast %19 : vector<1x1x16xf32> to vector<16x8x16xf32>
    %21 = arith.mulf %17, %20 : vector<16x8x16xf32>
    %cst_14 = arith.constant dense<0.000000e+00> : vector<16x8xf32>
    %22 = vector.multi_reduction <add>, %21, %cst_14 [2] : vector<16x8x16xf32> to vector<16x8xf32>
    %c0_15 = arith.constant 0 : index
    %c0_16 = arith.constant 0 : index
    %23 = vector.load %arg12[%c0_15, %c0_16] : memref<1x1xf32, #tpu.memory_space<vmem>>, vector<1x1xf32>
    %24 = vector.broadcast %23 : vector<1x1xf32> to vector<16x8xf32>
    %25 = arith.addf %22, %24 : vector<16x8xf32>
    %26 = arith.negf %25 : vector<16x8xf32>
    %27 = math.exp %26 : vector<16x8xf32>
    %cst_17 = arith.constant 1.000000e+00 : f32
    %28 = vector.broadcast %cst_17 : f32 to vector<16x8xf32>
    %29 = arith.addf %28, %27 : vector<16x8xf32>
    %30 = arith.divf %28, %29 : vector<16x8xf32>
    %c0_18 = arith.constant 0 : index
    %c0_19 = arith.constant 0 : index
    %31 = vector.load %arg17[%c0_18, %c0_19] : memref<16x8xf32, #tpu.memory_space<vmem>>, vector<16x8xf32>
    tpu.vector_store %arg17[%c0_18, %c0_19], %30 {strides = array<i32>} : memref<16x8xf32, #tpu.memory_space<vmem>>, vector<16x8xf32>,
    %c0_20 = arith.constant 0 : index
    %c0_21 = arith.constant 0 : index
    %c0_22 = arith.constant 0 : index
    %32 = vector.load %arg3[%c0_20, %c0_21, %c0_22] : memref<8x4x16xbf16, #tpu.memory_space<vmem>>, vector<8x4x16xbf16>
    %33 = arith.extf %32 : vector<8x4x16xbf16> to vector<8x4x16xf32>
    %c0_23 = arith.constant 0 : index
    %c0_24 = arith.constant 0 : index
    %34 = vector.load %arg8[%c0_23, %c0_24] : memref<1x16xf32, #tpu.memory_space<vmem>>, vector<1x16xf32>
    %35 = vector.shape_cast %34 : vector<1x16xf32> to vector<1x1x16xf32>
    %36 = vector.broadcast %35 : vector<1x1x16xf32> to vector<8x4x16xf32>
    %37 = arith.mulf %33, %36 : vector<8x4x16xf32>
    %cst_25 = arith.constant dense<0.000000e+00> : vector<8x4xf32>
    %38 = vector.multi_reduction <add>, %37, %cst_25 [2] : vector<8x4x16xf32> to vector<8x4xf32>
    %c0_26 = arith.constant 0 : index
    %c0_27 = arith.constant 0 : index
    %39 = vector.load %arg13[%c0_26, %c0_27] : memref<1x1xf32, #tpu.memory_space<vmem>>, vector<1x1xf32>
    %40 = vector.broadcast %39 : vector<1x1xf32> to vector<8x4xf32>
    %41 = arith.addf %38, %40 : vector<8x4xf32>
    %42 = arith.negf %41 : vector<8x4xf32>
    %43 = math.exp %42 : vector<8x4xf32>
    %cst_28 = arith.constant 1.000000e+00 : f32
    %44 = vector.broadcast %cst_28 : f32 to vector<8x4xf32>
    %45 = arith.addf %44, %43 : vector<8x4xf32>
    %46 = arith.divf %44, %45 : vector<8x4xf32>
    %c0_29 = arith.constant 0 : index
    %c0_30 = arith.constant 0 : index
    %47 = vector.load %arg18[%c0_29, %c0_30] : memref<8x4xf32, #tpu.memory_space<vmem>>, vector<8x4xf32>
    tpu.vector_store %arg18[%c0_29, %c0_30], %46 {strides = array<i32>} : memref<8x4xf32, #tpu.memory_space<vmem>>, vector<8x4xf32>,
    %c0_31 = arith.constant 0 : index
    %c0_32 = arith.constant 0 : index
    %c0_33 = arith.constant 0 : index
    %48 = vector.load %arg4[%c0_31, %c0_32, %c0_33] : memref<8x4x32xbf16, #tpu.memory_space<vmem>>, vector<8x4x32xbf16>
    %49 = arith.extf %48 : vector<8x4x32xbf16> to vector<8x4x32xf32>
    %c0_34 = arith.constant 0 : index
    %c0_35 = arith.constant 0 : index
    %50 = vector.load %arg9[%c0_34, %c0_35] : memref<1x32xf32, #tpu.memory_space<vmem>>, vector<1x32xf32>
    %51 = vector.shape_cast %50 : vector<1x32xf32> to vector<1x1x32xf32>
    %52 = vector.broadcast %51 : vector<1x1x32xf32> to vector<8x4x32xf32>
    %53 = arith.mulf %49, %52 : vector<8x4x32xf32>
    %cst_36 = arith.constant dense<0.000000e+00> : vector<8x4xf32>
    %54 = vector.multi_reduction <add>, %53, %cst_36 [2] : vector<8x4x32xf32> to vector<8x4xf32>
    %c0_37 = arith.constant 0 : index
    %c0_38 = arith.constant 0 : index
    %55 = vector.load %arg14[%c0_37, %c0_38] : memref<1x1xf32, #tpu.memory_space<vmem>>, vector<1x1xf32>
    %56 = vector.broadcast %55 : vector<1x1xf32> to vector<8x4xf32>
    %57 = arith.addf %54, %56 : vector<8x4xf32>
    %58 = arith.negf %57 : vector<8x4xf32>
    %59 = math.exp %58 : vector<8x4xf32>
    %cst_39 = arith.constant 1.000000e+00 : f32
    %60 = vector.broadcast %cst_39 : f32 to vector<8x4xf32>
    %61 = arith.addf %60, %59 : vector<8x4xf32>
    %62 = arith.divf %60, %61 : vector<8x4xf32>
    %c0_40 = arith.constant 0 : index
    %c0_41 = arith.constant 0 : index
    %63 = vector.load %arg19[%c0_40, %c0_41] : memref<8x4xf32, #tpu.memory_space<vmem>>, vector<8x4xf32>
    tpu.vector_store %arg19[%c0_40, %c0_41], %62 {strides = array<i32>} : memref<8x4xf32, #tpu.memory_space<vmem>>, vector<8x4xf32>,
    %c0_42 = arith.constant 0 : index
    %c0_43 = arith.constant 0 : index
    %c0_44 = arith.constant 0 : index
    %64 = vector.load %arg5[%c0_42, %c0_43, %c0_44] : memref<4x2x32xbf16, #tpu.memory_space<vmem>>, vector<4x2x32xbf16>
    %65 = arith.extf %64 : vector<4x2x32xbf16> to vector<4x2x32xf32>
    %c0_45 = arith.constant 0 : index
    %c0_46 = arith.constant 0 : index
    %66 = vector.load %arg10[%c0_45, %c0_46] : memref<1x32xf32, #tpu.memory_space<vmem>>, vector<1x32xf32>
    %67 = vector.shape_cast %66 : vector<1x32xf32> to vector<1x1x32xf32>
    %68 = vector.broadcast %67 : vector<1x1x32xf32> to vector<4x2x32xf32>
    %69 = arith.mulf %65, %68 : vector<4x2x32xf32>
    %cst_47 = arith.constant dense<0.000000e+00> : vector<4x2xf32>
    %70 = vector.multi_reduction <add>, %69, %cst_47 [2] : vector<4x2x32xf32> to vector<4x2xf32>
    %c0_48 = arith.constant 0 : index
    %c0_49 = arith.constant 0 : index
    %71 = vector.load %arg15[%c0_48, %c0_49] : memref<1x1xf32, #tpu.memory_space<vmem>>, vector<1x1xf32>
    %72 = vector.broadcast %71 : vector<1x1xf32> to vector<4x2xf32>
    %73 = arith.addf %70, %72 : vector<4x2xf32>
    %74 = arith.negf %73 : vector<4x2xf32>
    %75 = math.exp %74 : vector<4x2xf32>
    %cst_50 = arith.constant 1.000000e+00 : f32
    %76 = vector.broadcast %cst_50 : f32 to vector<4x2xf32>
    %77 = arith.addf %76, %75 : vector<4x2xf32>
    %78 = arith.divf %76, %77 : vector<4x2xf32>
    %c0_51 = arith.constant 0 : index
    %c0_52 = arith.constant 0 : index
    %79 = vector.load %arg20[%c0_51, %c0_52] : memref<4x2xf32, #tpu.memory_space<vmem>>, vector<4x2xf32>
    tpu.vector_store %arg20[%c0_51, %c0_52], %78 {strides = array<i32>} : memref<4x2xf32, #tpu.memory_space<vmem>>, vector<4x2xf32>,
    return
  }
  func.func @transform_0(%arg0: i32) -> (i32, i32, i32) {
    %c0_i32 = arith.constant 0 : i32
    %c0_i32_0 = arith.constant 0 : i32
    %c0_i32_1 = arith.constant 0 : i32
    %c0_i32_2 = arith.constant 0 : i32
    return %c0_i32, %c0_i32_0, %c0_i32_1 : i32, i32, i32
  }
  func.func @transform_1(%arg0: i32) -> (i32, i32, i32) {
    %c0_i32 = arith.constant 0 : i32
    %c0_i32_0 = arith.constant 0 : i32
    %c0_i32_1 = arith.constant 0 : i32
    %c0_i32_2 = arith.constant 0 : i32
    return %c0_i32, %c0_i32_0, %c0_i32_1 : i32, i32, i32
  }
  func.func @transform_2(%arg0: i32) -> (i32, i32, i32) {
    %c0_i32 = arith.constant 0 : i32
    %c0_i32_0 = arith.constant 0 : i32
    %c0_i32_1 = arith.constant 0 : i32
    %c0_i32_2 = arith.constant 0 : i32
    return %c0_i32, %c0_i32_0, %c0_i32_1 : i32, i32, i32
  }
  func.func @transform_3(%arg0: i32) -> (i32, i32, i32) {
    %c0_i32 = arith.constant 0 : i32
    %c0_i32_0 = arith.constant 0 : i32
    %c0_i32_1 = arith.constant 0 : i32
    %c0_i32_2 = arith.constant 0 : i32
    return %c0_i32, %c0_i32_0, %c0_i32_1 : i32, i32, i32
  }
  func.func @transform_4(%arg0: i32) -> (i32, i32, i32) {
    %c0_i32 = arith.constant 0 : i32
    %c0_i32_0 = arith.constant 0 : i32
    %c0_i32_1 = arith.constant 0 : i32
    %c0_i32_2 = arith.constant 0 : i32
    return %c0_i32, %c0_i32_0, %c0_i32_1 : i32, i32, i32
  }
  func.func @transform_5(%arg0: i32) -> (i32, i32) {
    %c0_i32 = arith.constant 0 : i32
    %c0_i32_0 = arith.constant 0 : i32
    %c0_i32_1 = arith.constant 0 : i32
    return %c0_i32, %c0_i32_0 : i32, i32
  }
  func.func @transform_6(%arg0: i32) -> (i32, i32) {
    %c0_i32 = arith.constant 0 : i32
    %c0_i32_0 = arith.constant 0 : i32
    %c0_i32_1 = arith.constant 0 : i32
    return %c0_i32, %c0_i32_0 : i32, i32
  }
  func.func @transform_7(%arg0: i32) -> (i32, i32) {
    %c0_i32 = arith.constant 0 : i32
    %c0_i32_0 = arith.constant 0 : i32
    %c0_i32_1 = arith.constant 0 : i32
    return %c0_i32, %c0_i32_0 : i32, i32
  }
  func.func @transform_8(%arg0: i32) -> (i32, i32) {
    %c0_i32 = arith.constant 0 : i32
    %c0_i32_0 = arith.constant 0 : i32
    %c0_i32_1 = arith.constant 0 : i32
    return %c0_i32, %c0_i32_0 : i32, i32
  }
  func.func @transform_9(%arg0: i32) -> (i32, i32) {
    %c0_i32 = arith.constant 0 : i32
    %c0_i32_0 = arith.constant 0 : i32
    %c0_i32_1 = arith.constant 0 : i32
    return %c0_i32, %c0_i32_0 : i32, i32
  }
  func.func @transform_10(%arg0: i32) -> (i32, i32) {
    %c0_i32 = arith.constant 0 : i32
    %c0_i32_0 = arith.constant 0 : i32
    %c0_i32_1 = arith.constant 0 : i32
    return %c0_i32, %c0_i32_0 : i32, i32
  }
  func.func @transform_11(%arg0: i32) -> (i32, i32) {
    %c0_i32 = arith.constant 0 : i32
    %c0_i32_0 = arith.constant 0 : i32
    %c0_i32_1 = arith.constant 0 : i32
    return %c0_i32, %c0_i32_0 : i32, i32
  }
  func.func @transform_12(%arg0: i32) -> (i32, i32) {
    %c0_i32 = arith.constant 0 : i32
    %c0_i32_0 = arith.constant 0 : i32
    %c0_i32_1 = arith.constant 0 : i32
    return %c0_i32, %c0_i32_0 : i32, i32
  }
  func.func @transform_13(%arg0: i32) -> (i32, i32) {
    %c0_i32 = arith.constant 0 : i32
    %c0_i32_0 = arith.constant 0 : i32
    %c0_i32_1 = arith.constant 0 : i32
    return %c0_i32, %c0_i32_0 : i32, i32
  }
  func.func @transform_14(%arg0: i32) -> (i32, i32) {
    %c0_i32 = arith.constant 0 : i32
    %c0_i32_0 = arith.constant 0 : i32
    %c0_i32_1 = arith.constant 0 : i32
    return %c0_i32, %c0_i32_0 : i32, i32
  }
  func.func @transform_15(%arg0: i32) -> (i32, i32) {
    %c0_i32 = arith.constant 0 : i32
    %c0_i32_0 = arith.constant 0 : i32
    %c0_i32_1 = arith.constant 0 : i32
    return %c0_i32, %c0_i32_0 : i32, i32
  }
  func.func @transform_16(%arg0: i32) -> (i32, i32) {
    %c0_i32 = arith.constant 0 : i32
    %c0_i32_0 = arith.constant 0 : i32
    %c0_i32_1 = arith.constant 0 : i32
    return %c0_i32, %c0_i32_0 : i32, i32
  }
  func.func @transform_17(%arg0: i32) -> (i32, i32) {
    %c0_i32 = arith.constant 0 : i32
    %c0_i32_0 = arith.constant 0 : i32
    %c0_i32_1 = arith.constant 0 : i32
    return %c0_i32, %c0_i32_0 : i32, i32
  }
  func.func @transform_18(%arg0: i32) -> (i32, i32) {
    %c0_i32 = arith.constant 0 : i32
    %c0_i32_0 = arith.constant 0 : i32
    %c0_i32_1 = arith.constant 0 : i32
    return %c0_i32, %c0_i32_0 : i32, i32
  }
  func.func @transform_19(%arg0: i32) -> (i32, i32) {
    %c0_i32 = arith.constant 0 : i32
    %c0_i32_0 = arith.constant 0 : i32
    %c0_i32_1 = arith.constant 0 : i32
    return %c0_i32, %c0_i32_0 : i32, i32
  }
}

module attributes {stable_mosaic.version = 11 : i64} {
  func.func @_mm_bias_act_kernel(%arg0: i32, %arg1: i32, %arg2: memref<8x288xbf16, #tpu.memory_space<vmem>>, %arg3: memref<288x32xbf16, #tpu.memory_space<vmem>>, %arg4: memref<1x32xf32, #tpu.memory_space<vmem>>, %arg5: memref<8x32xbf16, #tpu.memory_space<vmem>>, %arg6: memref<8x32xf32, #tpu.memory_space<vmem>>) attributes {dimension_semantics = [#tpu.dimension_semantics<parallel>, #tpu.dimension_semantics<arbitrary>], iteration_bounds = array<i64: 1, 1>, scalar_prefetch = 0 : i64, scratch_operands = 1 : i64, tpu.core_type = #tpu.core_type<tc>, window_params = [{transform_indices = @transform_0, window_bounds = array<i64: 8, 288>}, {transform_indices = @transform_1, window_bounds = array<i64: 288, 32>}, {pipeline_mode = #tpu.pipeline_mode<synchronous>, transform_indices = @transform_2, window_bounds = array<i64: 1, 32>}, {transform_indices = @transform_3, window_bounds = array<i64: 8, 32>}]} {
    %c0_i32 = arith.constant 0 : i32
    %0 = arith.cmpi eq, %arg1, %c0_i32 : i32
    %1 = arith.extui %0 : i1 to i32
    %c0_i32_0 = arith.constant 0 : i32
    %2 = arith.cmpi ne, %1, %c0_i32_0 : i32
    scf.if %2 {
      %c0_10 = arith.constant 0 : index
      %c0_11 = arith.constant 0 : index
      %12 = vector.load %arg4[%c0_10, %c0_11] : memref<1x32xf32, #tpu.memory_space<vmem>>, vector<1x32xf32>
      %13 = vector.shape_cast %12 : vector<1x32xf32> to vector<1x32xf32>
      %14 = vector.broadcast %13 : vector<1x32xf32> to vector<8x32xf32>
      %c0_12 = arith.constant 0 : index
      %c0_13 = arith.constant 0 : index
      %15 = vector.load %arg6[%c0_12, %c0_13] : memref<8x32xf32, #tpu.memory_space<vmem>>, vector<8x32xf32>
      tpu.vector_store %arg6[%c0_12, %c0_13], %14 {strides = array<i32>} : memref<8x32xf32, #tpu.memory_space<vmem>>, vector<8x32xf32>,
    } else {
    }
    %c0 = arith.constant 0 : index
    %c0_1 = arith.constant 0 : index
    %3 = vector.load %arg6[%c0, %c0_1] : memref<8x32xf32, #tpu.memory_space<vmem>>, vector<8x32xf32>
    %c0_2 = arith.constant 0 : index
    %c0_3 = arith.constant 0 : index
    %4 = vector.load %arg2[%c0_2, %c0_3] : memref<8x288xbf16, #tpu.memory_space<vmem>>, vector<8x288xbf16>
    %c0_4 = arith.constant 0 : index
    %c0_5 = arith.constant 0 : index
    %5 = vector.load %arg3[%c0_4, %c0_5] : memref<288x32xbf16, #tpu.memory_space<vmem>>, vector<288x32xbf16>
    %cst = arith.constant dense<0.000000e+00> : vector<8x32xf32>
    %6 = tpu.matmul %4, %5, %cst {dimension_numbers = #tpu.dot_dimension_numbers<[1], [0], [0], [1], [0, 0, 1, 1], [], []>} : vector<8x288xbf16>, vector<288x32xbf16>, vector<8x32xf32> -> vector<8x32xf32>
    %7 = arith.addf %3, %6 : vector<8x32xf32>
    %c0_6 = arith.constant 0 : index
    %c0_7 = arith.constant 0 : index
    %8 = vector.load %arg6[%c0_6, %c0_7] : memref<8x32xf32, #tpu.memory_space<vmem>>, vector<8x32xf32>
    tpu.vector_store %arg6[%c0_6, %c0_7], %7 {strides = array<i32>} : memref<8x32xf32, #tpu.memory_space<vmem>>, vector<8x32xf32>,
    %c0_i32_8 = arith.constant 0 : i32
    %9 = arith.cmpi eq, %arg1, %c0_i32_8 : i32
    %10 = arith.extui %9 : i1 to i32
    %c0_i32_9 = arith.constant 0 : i32
    %11 = arith.cmpi ne, %10, %c0_i32_9 : i32
    scf.if %11 {
      %c0_10 = arith.constant 0 : index
      %c0_11 = arith.constant 0 : index
      %12 = vector.load %arg6[%c0_10, %c0_11] : memref<8x32xf32, #tpu.memory_space<vmem>>, vector<8x32xf32>
      %cst_12 = arith.constant 0.000000e+00 : f32
      %13 = vector.broadcast %cst_12 : f32 to vector<8x32xf32>
      %14 = arith.maximumf %12, %13 : vector<8x32xf32>
      %15 = arith.truncf %14 : vector<8x32xf32> to vector<8x32xbf16>
      %c0_13 = arith.constant 0 : index
      %c0_14 = arith.constant 0 : index
      %16 = vector.load %arg5[%c0_13, %c0_14] : memref<8x32xbf16, #tpu.memory_space<vmem>>, vector<8x32xbf16>
      tpu.vector_store %arg5[%c0_13, %c0_14], %15 {strides = array<i32>} : memref<8x32xbf16, #tpu.memory_space<vmem>>, vector<8x32xbf16>,
    } else {
    }
    return
  }
  func.func @transform_0(%arg0: i32, %arg1: i32) -> (i32, i32) {
    %c0_i32 = arith.constant 0 : i32
    return %arg0, %arg1 : i32, i32
  }
  func.func @transform_1(%arg0: i32, %arg1: i32) -> (i32, i32) {
    %c0_i32 = arith.constant 0 : i32
    %c0_i32_0 = arith.constant 0 : i32
    return %arg1, %c0_i32 : i32, i32
  }
  func.func @transform_2(%arg0: i32, %arg1: i32) -> (i32, i32) {
    %c0_i32 = arith.constant 0 : i32
    %c0_i32_0 = arith.constant 0 : i32
    %c0_i32_1 = arith.constant 0 : i32
    return %c0_i32, %c0_i32_0 : i32, i32
  }
  func.func @transform_3(%arg0: i32, %arg1: i32) -> (i32, i32) {
    %c0_i32 = arith.constant 0 : i32
    %c0_i32_0 = arith.constant 0 : i32
    return %arg0, %c0_i32 : i32, i32
  }
}

module attributes {stable_mosaic.version = 11 : i64} {
  func.func @_fuse_kernel(%arg0: i32, %arg1: memref<5x16x8xf32, #tpu.memory_space<vmem>>, %arg2: memref<5x1x1xf32, #tpu.memory_space<vmem>>, %arg3: memref<1x1xf32, #tpu.memory_space<vmem>>, %arg4: memref<16x8xf32, #tpu.memory_space<vmem>>) attributes {dimension_semantics = [#tpu.dimension_semantics<parallel>], iteration_bounds = array<i64: 1>, scalar_prefetch = 0 : i64, scratch_operands = 0 : i64, tpu.core_type = #tpu.core_type<tc>, window_params = [{transform_indices = @transform_0, window_bounds = array<i64: 5, 16, 8>}, {pipeline_mode = #tpu.pipeline_mode<synchronous>, transform_indices = @transform_1, window_bounds = array<i64: 5, 1, 1>}, {pipeline_mode = #tpu.pipeline_mode<synchronous>, transform_indices = @transform_2, window_bounds = array<i64: 1, 1>}, {transform_indices = @transform_3, window_bounds = array<i64: 16, 8>}]} {
    %c0 = arith.constant 0 : index
    %c0_0 = arith.constant 0 : index
    %c0_1 = arith.constant 0 : index
    %0 = vector.load %arg1[%c0, %c0_0, %c0_1] : memref<5x16x8xf32, #tpu.memory_space<vmem>>, vector<5x16x8xf32>
    %c0_2 = arith.constant 0 : index
    %c0_3 = arith.constant 0 : index
    %c0_4 = arith.constant 0 : index
    %1 = vector.load %arg2[%c0_2, %c0_3, %c0_4] : memref<5x1x1xf32, #tpu.memory_space<vmem>>, vector<5x1x1xf32>
    %2 = vector.broadcast %1 : vector<5x1x1xf32> to vector<5x16x8xf32>
    %3 = arith.mulf %0, %2 : vector<5x16x8xf32>
    %cst = arith.constant dense<0.000000e+00> : vector<16x8xf32>
    %4 = vector.multi_reduction <add>, %3, %cst [0] : vector<5x16x8xf32> to vector<16x8xf32>
    %c0_5 = arith.constant 0 : index
    %c0_6 = arith.constant 0 : index
    %5 = vector.load %arg3[%c0_5, %c0_6] : memref<1x1xf32, #tpu.memory_space<vmem>>, vector<1x1xf32>
    %6 = vector.broadcast %5 : vector<1x1xf32> to vector<16x8xf32>
    %7 = arith.addf %4, %6 : vector<16x8xf32>
    %8 = arith.negf %7 : vector<16x8xf32>
    %9 = math.exp %8 : vector<16x8xf32>
    %cst_7 = arith.constant 1.000000e+00 : f32
    %10 = vector.broadcast %cst_7 : f32 to vector<16x8xf32>
    %11 = arith.addf %10, %9 : vector<16x8xf32>
    %12 = arith.divf %10, %11 : vector<16x8xf32>
    %c0_8 = arith.constant 0 : index
    %c0_9 = arith.constant 0 : index
    %13 = vector.load %arg4[%c0_8, %c0_9] : memref<16x8xf32, #tpu.memory_space<vmem>>, vector<16x8xf32>
    tpu.vector_store %arg4[%c0_8, %c0_9], %12 {strides = array<i32>} : memref<16x8xf32, #tpu.memory_space<vmem>>, vector<16x8xf32>,
    return
  }
  func.func @transform_0(%arg0: i32) -> (i32, i32, i32) {
    %c0_i32 = arith.constant 0 : i32
    %c0_i32_0 = arith.constant 0 : i32
    %c0_i32_1 = arith.constant 0 : i32
    return %c0_i32, %arg0, %c0_i32_0 : i32, i32, i32
  }
  func.func @transform_1(%arg0: i32) -> (i32, i32, i32) {
    %c0_i32 = arith.constant 0 : i32
    %c0_i32_0 = arith.constant 0 : i32
    %c0_i32_1 = arith.constant 0 : i32
    %c0_i32_2 = arith.constant 0 : i32
    return %c0_i32, %c0_i32_0, %c0_i32_1 : i32, i32, i32
  }
  func.func @transform_2(%arg0: i32) -> (i32, i32) {
    %c0_i32 = arith.constant 0 : i32
    %c0_i32_0 = arith.constant 0 : i32
    %c0_i32_1 = arith.constant 0 : i32
    return %c0_i32, %c0_i32_0 : i32, i32
  }
  func.func @transform_3(%arg0: i32) -> (i32, i32) {
    %c0_i32 = arith.constant 0 : i32
    %c0_i32_0 = arith.constant 0 : i32
    return %arg0, %c0_i32 : i32, i32
  }
}

</mosaic_0001>

<llo_original>
// kernel: cobnet_forward.7
$region0: #{cobnet_forward.7}
  #allocation0 [shape = 'u32[]', space=smem, size = 0x4, offset = 0x4, fixed_abs, tag = 'smem constant byte address 0x4 - core index']
  #allocation1 [shape = 'u32[144,128]{1,0:T(1,128)}', space=vmem, size = 0x12000, scoped, tag = 'internal scratch']
  #allocation2 [shape = 'f32[128,8]{1,0:T(8,128)}', space=vmem, size = 0x10000, scoped, tag = 'scratch operand']
  %s0 = inlined_call_operand.vmem [shape: bf16[128,36], index: 0, kind: input, shape index: {}]
  %s1 = inlined_call_operand.vmem [shape: bf16[36,8], index: 1, kind: input, shape index: {}]
  %s2 = inlined_call_operand.vmem [shape: f32[1,8], index: 2, kind: input, shape index: {}]
  %s3 = inlined_call_operand.vmem [shape: bf16[128,8], index: 3, kind: output, shape index: {}]
  %s4 = sld [smem:[#allocation0]]
  $region30: #{cobnet_forward.7} parent=0
    _
  %s6 = ssub.s32 1, %s4
  %s7 = scalar_select 0, %s6, %s4
  // Predicated region
  $region2: #{cobnet_forward.7} parent=0 // pred_check
    _
  $region3: #{cobnet_forward.7} parent=0 // pred_check_branch
    %9 = sbr.rel (0) target = $region5
  $region4: #{cobnet_forward.7} parent=0 // pred_region
    _
  $region5: #{cobnet_forward.7} parent=0 // pred_fallthru
    _
  // Predicated region
  $region6: #{cobnet_forward.7} parent=0 // pred_check
    _
  $region7: #{cobnet_forward.7} parent=0 // pred_check_branch
    %11 = sbr.rel (0) target = $region9
  $region8: #{cobnet_forward.7} parent=0 // pred_region
    _
  $region9: #{cobnet_forward.7} parent=0 // pred_fallthru
    _
  // Predicated region
  $region10: #{cobnet_forward.7} parent=0 // pred_check
    _
  $region11: #{cobnet_forward.7} parent=0 // pred_check_branch
    %13 = sbr.rel (0) target = $region13
  $region12: #{cobnet_forward.7} parent=0 // pred_region
    _
  $region13: #{cobnet_forward.7} parent=0 // pred_fallthru
    _
  %p15 = scmp.eq.s32.totalorder 0, 0
  // Predicated region
  $region14: #{cobnet_forward.7} parent=0 // pred_check
    %p16 = pneg %p15
  $region15: #{cobnet_forward.7} parent=0 // pred_check_branch
    %18 = sbr.rel (%p16) target = $region17
  $region16: #{cobnet_forward.7} parent=0 // pred_region
    %v19 = vld [vmem:[%s2] sm:$0x1]
    %v21 = vlaneseq
    %v22 = vshrl.u32 %v21, 7
    %v23 = vsub.s32 0, %v22
    %v24 = vrot.slane %v19, %v23
    %vm26 = vcmask 64512
    %27 = vst.msk [vmem:[#allocation2] sm:$0xff] %vm26, %v24
    %28 = vst.msk [vmem:[#allocation2 + $0x8] sm:$0xff] %vm26, %v24
    %29 = vst.msk [vmem:[#allocation2 + $0x10] sm:$0xff] %vm26, %v24
    %30 = vst.msk [vmem:[#allocation2 + $0x18] sm:$0xff] %vm26, %v24
    %31 = vst.msk [vmem:[#allocation2 + $0x20] sm:$0xff] %vm26, %v24
    %32 = vst.msk [vmem:[#allocation2 + $0x28] sm:$0xff] %vm26, %v24
    %33 = vst.msk [vmem:[#allocation2 + $0x30] sm:$0xff] %vm26, %v24
    %34 = vst.msk [vmem:[#allocation2 + $0x38] sm:$0xff] %vm26, %v24
    %35 = vst.msk [vmem:[#allocation2 + $0x40] sm:$0xff] %vm26, %v24
    %36 = vst.msk [vmem:[#allocation2 + $0x48] sm:$0xff] %vm26, %v24
    %37 = vst.msk [vmem:[#allocation2 + $0x50] sm:$0xff] %vm26, %v24
    %38 = vst.msk [vmem:[#allocation2 + $0x58] sm:$0xff] %vm26, %v24
    %39 = vst.msk [vmem:[#allocation2 + $0x60] sm:$0xff] %vm26, %v24
    %40 = vst.msk [vmem:[#allocation2 + $0x68] sm:$0xff] %vm26, %v24
    %41 = vst.msk [vmem:[#allocation2 + $0x70] sm:$0xff] %vm26, %v24
    %42 = vst.msk [vmem:[#allocation2 + $0x78] sm:$0xff] %vm26, %v24
  $region17: #{cobnet_forward.7} parent=0 // pred_fallthru
    _
  %v43 = vld [vmem:[#allocation2] sm:$0xff]
  %v44 = vld [vmem:[#allocation2 + $0x8] sm:$0xff]
  %v45 = vld [vmem:[#allocation2 + $0x10] sm:$0xff]
  %v46 = vld [vmem:[#allocation2 + $0x18] sm:$0xff]
  %v47 = vld [vmem:[#allocation2 + $0x20] sm:$0xff]
  %v48 = vld [vmem:[#allocation2 + $0x28] sm:$0xff]
  %v49 = vld [vmem:[#allocation2 + $0x30] sm:$0xff]
  %v50 = vld [vmem:[#allocation2 + $0x38] sm:$0xff]
  %v51 = vld [vmem:[#allocation2 + $0x40] sm:$0xff]
  %v52 = vld [vmem:[#allocation2 + $0x48] sm:$0xff]
  %v53 = vld [vmem:[#allocation2 + $0x50] sm:$0xff]
  %v54 = vld [vmem:[#allocation2 + $0x58] sm:$0xff]
  %v55 = vld [vmem:[#allocation2 + $0x60] sm:$0xff]
  %v56 = vld [vmem:[#allocation2 + $0x68] sm:$0xff]
  %v57 = vld [vmem:[#allocation2 + $0x70] sm:$0xff]
  %v58 = vld [vmem:[#allocation2 + $0x78] sm:$0xff]
  %v59 = vld [vmem:[%s0] sm:$0xf]
  %v60 = vld [vmem:[%s0 + $0x4] sm:$0xf]
  %v61 = vld [vmem:[%s0 + $0x8] sm:$0xf]
  %v62 = vld [vmem:[%s0 + $0xc] sm:$0xf]
  %v63 = vld [vmem:[%s0 + $0x10] sm:$0xf]
  %v64 = vld [vmem:[%s0 + $0x14] sm:$0xf]
  %v65 = vld [vmem:[%s0 + $0x18] sm:$0xf]
  %v66 = vld [vmem:[%s0 + $0x1c] sm:$0xf]
  %v67 = vld [vmem:[%s0 + $0x20] sm:$0xf]
  %v68 = vld [vmem:[%s0 + $0x24] sm:$0xf]
  %v69 = vld [vmem:[%s0 + $0x28] sm:$0xf]
  %v70 = vld [vmem:[%s0 + $0x2c] sm:$0xf]
  %v71 = vld [vmem:[%s0 + $0x30] sm:$0xf]
  %v72 = vld [vmem:[%s0 + $0x34] sm:$0xf]
  %v73 = vld [vmem:[%s0 + $0x38] sm:$0xf]
  %v74 = vld [vmem:[%s0 + $0x3c] sm:$0xf]
  %v75 = vld [vmem:[%s1] sm:$0xf]
  %v76 = vld [vmem:[%s1 + $0x4] sm:$0xf]
  %v77 = vld [vmem:[%s1 + $0x8] sm:$0xf]
  %v78 = vld [vmem:[%s1 + $0xc] sm:$0xf]
  %v79 = vld [vmem:[%s1 + $0x10] sm:$0x3]
  %v96 = vunpack.c.l.b16 %v59
  %v97 = vunpack.c.l.b16 %v60
  %v98 = vunpack.c.l.b16 %v61
  %v99 = vunpack.c.l.b16 %v62
  %v100 = vunpack.c.l.b16 %v63
  %v101 = vunpack.c.l.b16 %v64
  %v102 = vunpack.c.l.b16 %v65
  %v103 = vunpack.c.l.b16 %v66
  %v104 = vunpack.c.l.b16 %v67
  %v105 = vunpack.c.l.b16 %v68
  %v106 = vunpack.c.l.b16 %v69
  %v107 = vunpack.c.l.b16 %v70
  %v108 = vunpack.c.l.b16 %v71
  %v109 = vunpack.c.l.b16 %v72
  %v110 = vunpack.c.l.b16 %v73
  %v111 = vunpack.c.l.b16 %v74
  %v112 = vpack.c.b16 %v97, %v96
  %v113 = vpack.c.b16 %v99, %v98
  %v114 = vpack.c.b16 %v101, %v100
  %v115 = vpack.c.b16 %v103, %v102
  %v116 = vpack.c.b16 %v105, %v104
  %v117 = vpack.c.b16 %v107, %v106
  %v118 = vpack.c.b16 %v109, %v108
  %v119 = vpack.c.b16 %v111, %v110
  %v125 = vunpack.c.l.b16 %v75
  %v126 = vunpack.c.l.b16 %v76
  %v127 = vunpack.c.l.b16 %v77
  %v128 = vunpack.c.l.b16 %v78
  %v129 = vunpack.c.l.b16 %v79
  %v130 = vpack.c.b16 %v126, %v125
  %v131 = vpack.c.b16 %v128, %v127
  %v132 = vpack.c.b16 %v129, %v129
  %vm135 = vcmask 293888
  %v137 = vsel %vm135, %v112, 0
  %v140 = vsel %vm135, %v113, 0
  %v143 = vsel %vm135, %v114, 0
  %v146 = vsel %vm135, %v115, 0
  %v149 = vsel %vm135, %v116, 0
  %v152 = vsel %vm135, %v117, 0
  %v155 = vsel %vm135, %v118, 0
  %v158 = vsel %vm135, %v119, 0
  %vm160 = vcmask 1041408
  %v162 = vsel %vm160, %v132, 0
  %164 = vmatprep.subr.bf16.mxu0 0
  %165 = vmatpush1.bf16.msra.mxu0 0
  %166 = vmatprep.subr.bf16.mxu0 0
  %167 = vmatpush1.bf16.msra.mxu0 0
  %168 = vmatprep.subr.bf16.mxu0 0
  %169 = vmatpush1.bf16.msra.mxu0 0
  %170 = vmatprep.subr.bf16.mxu0 0
  %171 = vmatpush1.bf16.msra.mxu0 0
  %172 = vmatprep.subr.bf16.mxu0 0
  %173 = vmatpush1.bf16.msra.mxu0 0
  %174 = vmatprep.subr.bf16.mxu0 0
  %175 = vmatpush1.bf16.msra.mxu0 %v162
  %176 = vmatprep.subr.bf16.mxu0 0
  %177 = vmatpush1.bf16.msra.mxu0 %v131
  %178 = vmatprep.subr.bf16.mxu0 0
  %179 = vmatpush1.bf16.msra.mxu0 %v130
  %180 = vmatprep.subr.bf16.mxu0 0
  %181 = vmatpush2.bf16.msra.mxu0 0
  %182 = vmatprep.subr.bf16.mxu0 0
  %183 = vmatpush2.bf16.msra.mxu0 0
  %184 = vmatprep.subr.bf16.mxu0 0
  %185 = vmatpush2.bf16.msra.mxu0 0
  %186 = vmatprep.subr.bf16.mxu0 0
  %187 = vmatpush2.bf16.msra.mxu0 0
  %188 = vmatprep.subr.bf16.mxu0 0
  %189 = vmatpush2.bf16.msra.mxu0 0
  %190 = vmatprep.subr.bf16.mxu0 0
  %191 = vmatpush2.bf16.msra.mxu0 0
  %192 = vmatprep.subr.bf16.mxu0 0
  %193 = vmatpush2.bf16.msra.mxu0 0
  %194 = vmatprep.subr.bf16.mxu0 0
  %195 = vmatpush2.bf16.msra.mxu0 0
  %196 = vmatprep.mubr.bf16.mxu0 0
  %197 = vmatmul.mubr.bf16.gmra.mxu0 %v137
  %v198 = vpop.f32.mrf.mxu0
  %v199 = vadd.f32 0.0, %v198
  %v200 = vpop.f32.mrf.mxu0
  %v201 = vpop.f32.mrf.mxu0
  %v202 = vadd.f32 0.0, %v201
  %v203 = vpop.f32.mrf.mxu0
  %204 = vmatprep.mubr.bf16.mxu0 0
  %205 = vmatmul.mubr.bf16.gmra.mxu0 %v140
  %v206 = vpop.f32.mrf.mxu0
  %v207 = vadd.f32 0.0, %v206
  %v208 = vpop.f32.mrf.mxu0
  %v209 = vpop.f32.mrf.mxu0
  %v210 = vadd.f32 0.0, %v209
  %v211 = vpop.f32.mrf.mxu0
  %212 = vmatprep.mubr.bf16.mxu0 0
  %213 = vmatmul.mubr.bf16.gmra.mxu0 %v143
  %v214 = vpop.f32.mrf.mxu0
  %v215 = vadd.f32 0.0, %v214
  %v216 = vpop.f32.mrf.mxu0
  %v217 = vpop.f32.mrf.mxu0
  %v218 = vadd.f32 0.0, %v217
  %v219 = vpop.f32.mrf.mxu0
  %220 = vmatprep.mubr.bf16.mxu0 0
  %221 = vmatmul.mubr.bf16.gmra.mxu0 %v146
  %v222 = vpop.f32.mrf.mxu0
  %v223 = vadd.f32 0.0, %v222
  %v224 = vpop.f32.mrf.mxu0
  %v225 = vpop.f32.mrf.mxu0
  %v226 = vadd.f32 0.0, %v225
  %v227 = vpop.f32.mrf.mxu0
  %228 = vmatprep.mubr.bf16.mxu0 0
  %229 = vmatmul.mubr.bf16.gmra.mxu0 %v149
  %v230 = vpop.f32.mrf.mxu0
  %v231 = vadd.f32 0.0, %v230
  %v232 = vpop.f32.mrf.mxu0
  %v233 = vpop.f32.mrf.mxu0
  %v234 = vadd.f32 0.0, %v233
  %v235 = vpop.f32.mrf.mxu0
  %236 = vmatprep.mubr.bf16.mxu0 0
  %237 = vmatmul.mubr.bf16.gmra.mxu0 %v152
  %v238 = vpop.f32.mrf.mxu0
  %v239 = vadd.f32 0.0, %v238
  %v240 = vpop.f32.mrf.mxu0
  %v241 = vpop.f32.mrf.mxu0
  %v242 = vadd.f32 0.0, %v241
  %v243 = vpop.f32.mrf.mxu0
  %244 = vmatprep.mubr.bf16.mxu0 0
  %245 = vmatmul.mubr.bf16.gmra.mxu0 %v155
  %v246 = vpop.f32.mrf.mxu0
  %v247 = vadd.f32 0.0, %v246
  %v248 = vpop.f32.mrf.mxu0
  %v249 = vpop.f32.mrf.mxu0
  %v250 = vadd.f32 0.0, %v249
  %v251 = vpop.f32.mrf.mxu0
  %252 = vmatprep.mubr.bf16.mxu0 0
  %253 = vmatmul.mubr.bf16.gmra.mxu0 %v158
  %v254 = vpop.f32.mrf.mxu0
  %v255 = vadd.f32 0.0, %v254
  %v256 = vpop.f32.mrf.mxu0
  %v257 = vpop.f32.mrf.mxu0
  %v258 = vadd.f32 0.0, %v257
  %v259 = vpop.f32.mrf.mxu0
  %260 = vdwg.mxu0
  %v261 = vadd.f32 %v43, %v199
  %v262 = vadd.f32 %v44, %v202
  %v263 = vadd.f32 %v45, %v207
  %v264 = vadd.f32 %v46, %v210
  %v265 = vadd.f32 %v47, %v215
  %v266 = vadd.f32 %v48, %v218
  %v267 = vadd.f32 %v49, %v223
  %v268 = vadd.f32 %v50, %v226
  %v269 = vadd.f32 %v51, %v231
  %v270 = vadd.f32 %v52, %v234
  %v271 = vadd.f32 %v53, %v239
  %v272 = vadd.f32 %v54, %v242
  %v273 = vadd.f32 %v55, %v247
  %v274 = vadd.f32 %v56, %v250
  %v275 = vadd.f32 %v57, %v255
  %v276 = vadd.f32 %v58, %v258
  %vm277 = vcmask 64512
  %278 = vst.msk [vmem:[#allocation2] sm:$0xff] %vm277, %v261
  %279 = vst.msk [vmem:[#allocation2 + $0x8] sm:$0xff] %vm277, %v262
  %280 = vst.msk [vmem:[#allocation2 + $0x10] sm:$0xff] %vm277, %v263
  %281 = vst.msk [vmem:[#allocation2 + $0x18] sm:$0xff] %vm277, %v264
  %282 = vst.msk [vmem:[#allocation2 + $0x20] sm:$0xff] %vm277, %v265
  %283 = vst.msk [vmem:[#allocation2 + $0x28] sm:$0xff] %vm277, %v266
  %284 = vst.msk [vmem:[#allocation2 + $0x30] sm:$0xff] %vm277, %v267
  %285 = vst.msk [vmem:[#allocation2 + $0x38] sm:$0xff] %vm277, %v268
  %286 = vst.msk [vmem:[#allocation2 + $0x40] sm:$0xff] %vm277, %v269
  %287 = vst.msk [vmem:[#allocation2 + $0x48] sm:$0xff] %vm277, %v270
  %288 = vst.msk [vmem:[#allocation2 + $0x50] sm:$0xff] %vm277, %v271
  %289 = vst.msk [vmem:[#allocation2 + $0x58] sm:$0xff] %vm277, %v272
  %290 = vst.msk [vmem:[#allocation2 + $0x60] sm:$0xff] %vm277, %v273
  %291 = vst.msk [vmem:[#allocation2 + $0x68] sm:$0xff] %vm277, %v274
  %292 = vst.msk [vmem:[#allocation2 + $0x70] sm:$0xff] %vm277, %v275
  %293 = vst.msk [vmem:[#allocation2 + $0x78] sm:$0xff] %vm277, %v276
  // Predicated region
  $region18: #{cobnet_forward.7} parent=0 // pred_check
    %p294 = pneg %p15
  $region19: #{cobnet_forward.7} parent=0 // pred_check_branch
    %296 = sbr.rel (%p294) target = $region21
  $region20: #{cobnet_forward.7} parent=0 // pred_region
    %v297 = vld [vmem:[#allocation2] sm:$0xff]
    %v298 = vld [vmem:[#allocation2 + $0x8] sm:$0xff]
    %v299 = vld [vmem:[#allocation2 + $0x10] sm:$0xff]
    %v300 = vld [vmem:[#allocation2 + $0x18] sm:$0xff]
    %v301 = vld [vmem:[#allocation2 + $0x20] sm:$0xff]
    %v302 = vld [vmem:[#allocation2 + $0x28] sm:$0xff]
    %v303 = vld [vmem:[#allocation2 + $0x30] sm:$0xff]
    %v304 = vld [vmem:[#allocation2 + $0x38] sm:$0xff]
    %v305 = vld [vmem:[#allocation2 + $0x40] sm:$0xff]
    %v306 = vld [vmem:[#allocation2 + $0x48] sm:$0xff]
    %v307 = vld [vmem:[#allocation2 + $0x50] sm:$0xff]
    %v308 = vld [vmem:[#allocation2 + $0x58] sm:$0xff]
    %v309 = vld [vmem:[#allocation2 + $0x60] sm:$0xff]
    %v310 = vld [vmem:[#allocation2 + $0x68] sm:$0xff]
    %v311 = vld [vmem:[#allocation2 + $0x70] sm:$0xff]
    %v312 = vld [vmem:[#allocation2 + $0x78] sm:$0xff]
    %v313 = vmax.f32 %v297, 0.0
    %v314 = vmax.f32 %v298, 0.0
    %v315 = vmax.f32 %v299, 0.0
    %v316 = vmax.f32 %v300, 0.0
    %v317 = vmax.f32 %v301, 0.0
    %v318 = vmax.f32 %v302, 0.0
    %v319 = vmax.f32 %v303, 0.0
    %v320 = vmax.f32 %v304, 0.0
    %v321 = vmax.f32 %v305, 0.0
    %v322 = vmax.f32 %v306, 0.0
    %v323 = vmax.f32 %v307, 0.0
    %v324 = vmax.f32 %v308, 0.0
    %v325 = vmax.f32 %v309, 0.0
    %v326 = vmax.f32 %v310, 0.0
    %v327 = vmax.f32 %v311, 0.0
    %v328 = vmax.f32 %v312, 0.0
    %v329 = vpack.c.bf16 %v314, %v313
    %v330 = vpack.c.bf16 %v316, %v315
    %v331 = vpack.c.bf16 %v318, %v317
    %v332 = vpack.c.bf16 %v320, %v319
    %v333 = vpack.c.bf16 %v322, %v321
    %v334 = vpack.c.bf16 %v324, %v323
    %v335 = vpack.c.bf16 %v326, %v325
    %v336 = vpack.c.bf16 %v328, %v327
    %v345 = vunpack.c.l.b16 %v329
    %v346 = vunpack.c.h.b16 %v329
    %v347 = vunpack.c.l.b16 %v330
    %v348 = vunpack.c.h.b16 %v330
    %v349 = vunpack.c.l.b16 %v331
    %v350 = vunpack.c.h.b16 %v331
    %v351 = vunpack.c.l.b16 %v332
    %v352 = vunpack.c.h.b16 %v332
    %v353 = vunpack.c.l.b16 %v333
    %v354 = vunpack.c.h.b16 %v333
    %v355 = vunpack.c.l.b16 %v334
    %v356 = vunpack.c.h.b16 %v334
    %v357 = vunpack.c.l.b16 %v335
    %v358 = vunpack.c.h.b16 %v335
    %v359 = vunpack.c.l.b16 %v336
    %v360 = vunpack.c.h.b16 %v336
    %v361 = vpack.c.b16 %v345, %v345
    %v362 = vpack.c.b16 %v346, %v346
    %v363 = vpack.c.b16 %v347, %v347
    %v364 = vpack.c.b16 %v348, %v348
    %v365 = vpack.c.b16 %v349, %v349
    %v366 = vpack.c.b16 %v350, %v350
    %v367 = vpack.c.b16 %v351, %v351
    %v368 = vpack.c.b16 %v352, %v352
    %v369 = vpack.c.b16 %v353, %v353
    %v370 = vpack.c.b16 %v354, %v354
    %v371 = vpack.c.b16 %v355, %v355
    %v372 = vpack.c.b16 %v356, %v356
    %v373 = vpack.c.b16 %v357, %v357
    %v374 = vpack.c.b16 %v358, %v358
    %v375 = vpack.c.b16 %v359, %v359
    %v376 = vpack.c.b16 %v360, %v360
    %vm393 = vcmask 60416
    %394 = vst.msk [vmem:[%s3] sm:$0xf] %vm393, %v361
    %395 = vst.msk [vmem:[%s3 + $0x4] sm:$0xf] %vm393, %v362
    %396 = vst.msk [vmem:[%s3 + $0x8] sm:$0xf] %vm393, %v363
    %397 = vst.msk [vmem:[%s3 + $0xc] sm:$0xf] %vm393, %v364
    %398 = vst.msk [vmem:[%s3 + $0x10] sm:$0xf] %vm393, %v365
    %399 = vst.msk [vmem:[%s3 + $0x14] sm:$0xf] %vm393, %v366
    %400 = vst.msk [vmem:[%s3 + $0x18] sm:$0xf] %vm393, %v367
    %401 = vst.msk [vmem:[%s3 + $0x1c] sm:$0xf] %vm393, %v368
    %402 = vst.msk [vmem:[%s3 + $0x20] sm:$0xf] %vm393, %v369
    %403 = vst.msk [vmem:[%s3 + $0x24] sm:$0xf] %vm393, %v370
    %404 = vst.msk [vmem:[%s3 + $0x28] sm:$0xf] %vm393, %v371
    %405 = vst.msk [vmem:[%s3 + $0x2c] sm:$0xf] %vm393, %v372
    %406 = vst.msk [vmem:[%s3 + $0x30] sm:$0xf] %vm393, %v373
    %407 = vst.msk [vmem:[%s3 + $0x34] sm:$0xf] %vm393, %v374
    %408 = vst.msk [vmem:[%s3 + $0x38] sm:$0xf] %vm393, %v375
    %409 = vst.msk [vmem:[%s3 + $0x3c] sm:$0xf] %vm393, %v376
  $region21: #{cobnet_forward.7} parent=0 // pred_fallthru
    _
  // Predicated region
  $region22: #{cobnet_forward.7} parent=0 // pred_check
    _
  $region23: #{cobnet_forward.7} parent=0 // pred_check_branch
    %411 = sbr.rel (0) target = $region25
  $region24: #{cobnet_forward.7} parent=0 // pred_region
    _
  $region25: #{cobnet_forward.7} parent=0 // pred_fallthru
    _
  // Predicated region
  $region26: #{cobnet_forward.7} parent=0 // pred_check
    _
  $region27: #{cobnet_forward.7} parent=0 // pred_check_branch
    %413 = sbr.rel (0) target = $region29
  $region28: #{cobnet_forward.7} parent=0 // pred_region
    _
  $region29: #{cobnet_forward.7} parent=0 // pred_fallthru
    _

// kernel: cobnet_forward.8
$region0: #{cobnet_forward.8}
  #allocation0 [shape = 'u32[]', space=smem, size = 0x4, offset = 0x4, fixed_abs, tag = 'smem constant byte address 0x4 - core index']
  #allocation1 [shape = 'u32[144,128]{1,0:T(1,128)}', space=vmem, size = 0x12000, scoped, tag = 'internal scratch']
  #allocation2 [shape = 'f32[128,16]{1,0:T(8,128)}', space=vmem, size = 0x10000, scoped, tag = 'scratch operand']
  %s0 = inlined_call_operand.vmem [shape: bf16[128,72], index: 0, kind: input, shape index: {}]
  %s1 = inlined_call_operand.vmem [shape: bf16[72,16], index: 1, kind: input, shape index: {}]
  %s2 = inlined_call_operand.vmem [shape: f32[1,16], index: 2, kind: input, shape index: {}]
  %s3 = inlined_call_operand.vmem [shape: bf16[128,16], index: 3, kind: output, shape index: {}]
  %s4 = sld [smem:[#allocation0]]
  $region30: #{cobnet_forward.8} parent=0
    _
  %s6 = ssub.s32 1, %s4
  %s7 = scalar_select 0, %s6, %s4
  // Predicated region
  $region2: #{cobnet_forward.8} parent=0 // pred_check
    _
  $region3: #{cobnet_forward.8} parent=0 // pred_check_branch
    %9 = sbr.rel (0) target = $region5
  $region4: #{cobnet_forward.8} parent=0 // pred_region
    _
  $region5: #{cobnet_forward.8} parent=0 // pred_fallthru
    _
  // Predicated region
  $region6: #{cobnet_forward.8} parent=0 // pred_check
    _
  $region7: #{cobnet_forward.8} parent=0 // pred_check_branch
    %11 = sbr.rel (0) target = $region9
  $region8: #{cobnet_forward.8} parent=0 // pred_region
    _
  $region9: #{cobnet_forward.8} parent=0 // pred_fallthru
    _
  // Predicated region
  $region10: #{cobnet_forward.8} parent=0 // pred_check
    _
  $region11: #{cobnet_forward.8} parent=0 // pred_check_branch
    %13 = sbr.rel (0) target = $region13
  $region12: #{cobnet_forward.8} parent=0 // pred_region
    _
  $region13: #{cobnet_forward.8} parent=0 // pred_fallthru
    _
  %p15 = scmp.eq.s32.totalorder 0, 0
  // Predicated region
  $region14: #{cobnet_forward.8} parent=0 // pred_check
    %p16 = pneg %p15
  $region15: #{cobnet_forward.8} parent=0 // pred_check_branch
    %18 = sbr.rel (%p16) target = $region17
  $region16: #{cobnet_forward.8} parent=0 // pred_region
    %v19 = vld [vmem:[%s2] sm:$0x1]
    %v21 = vlaneseq
    %v22 = vshrl.u32 %v21, 7
    %v23 = vsub.s32 0, %v22
    %v24 = vrot.slane %v19, %v23
    %vm26 = vcmask 130048
    %27 = vst.msk [vmem:[#allocation2] sm:$0xff] %vm26, %v24
    %28 = vst.msk [vmem:[#allocation2 + $0x8] sm:$0xff] %vm26, %v24
    %29 = vst.msk [vmem:[#allocation2 + $0x10] sm:$0xff] %vm26, %v24
    %30 = vst.msk [vmem:[#allocation2 + $0x18] sm:$0xff] %vm26, %v24
    %31 = vst.msk [vmem:[#allocation2 + $0x20] sm:$0xff] %vm26, %v24
    %32 = vst.msk [vmem:[#allocation2 + $0x28] sm:$0xff] %vm26, %v24
    %33 = vst.msk [vmem:[#allocation2 + $0x30] sm:$0xff] %vm26, %v24
    %34 = vst.msk [vmem:[#allocation2 + $0x38] sm:$0xff] %vm26, %v24
    %35 = vst.msk [vmem:[#allocation2 + $0x40] sm:$0xff] %vm26, %v24
    %36 = vst.msk [vmem:[#allocation2 + $0x48] sm:$0xff] %vm26, %v24
    %37 = vst.msk [vmem:[#allocation2 + $0x50] sm:$0xff] %vm26, %v24
    %38 = vst.msk [vmem:[#allocation2 + $0x58] sm:$0xff] %vm26, %v24
    %39 = vst.msk [vmem:[#allocation2 + $0x60] sm:$0xff] %vm26, %v24
    %40 = vst.msk [vmem:[#allocation2 + $0x68] sm:$0xff] %vm26, %v24
    %41 = vst.msk [vmem:[#allocation2 + $0x70] sm:$0xff] %vm26, %v24
    %42 = vst.msk [vmem:[#allocation2 + $0x78] sm:$0xff] %vm26, %v24
  $region17: #{cobnet_forward.8} parent=0 // pred_fallthru
    _
  %v43 = vld [vmem:[#allocation2] sm:$0xff]
  %v44 = vld [vmem:[#allocation2 + $0x8] sm:$0xff]
  %v45 = vld [vmem:[#allocation2 + $0x10] sm:$0xff]
  %v46 = vld [vmem:[#allocation2 + $0x18] sm:$0xff]
  %v47 = vld [vmem:[#allocation2 + $0x20] sm:$0xff]
  %v48 = vld [vmem:[#allocation2 + $0x28] sm:$0xff]
  %v49 = vld [vmem:[#allocation2 + $0x30] sm:$0xff]
  %v50 = vld [vmem:[#allocation2 + $0x38] sm:$0xff]
  %v51 = vld [vmem:[#allocation2 + $0x40] sm:$0xff]
  %v52 = vld [vmem:[#allocation2 + $0x48] sm:$0xff]
  %v53 = vld [vmem:[#allocation2 + $0x50] sm:$0xff]
  %v54 = vld [vmem:[#allocation2 + $0x58] sm:$0xff]
  %v55 = vld [vmem:[#allocation2 + $0x60] sm:$0xff]
  %v56 = vld [vmem:[#allocation2 + $0x68] sm:$0xff]
  %v57 = vld [vmem:[#allocation2 + $0x70] sm:$0xff]
  %v58 = vld [vmem:[#allocation2 + $0x78] sm:$0xff]
  %v59 = vld [vmem:[%s0] sm:$0xf]
  %v60 = vld [vmem:[%s0 + $0x4] sm:$0xf]
  %v61 = vld [vmem:[%s0 + $0x8] sm:$0xf]
  %v62 = vld [vmem:[%s0 + $0xc] sm:$0xf]
  %v63 = vld [vmem:[%s0 + $0x10] sm:$0xf]
  %v64 = vld [vmem:[%s0 + $0x14] sm:$0xf]
  %v65 = vld [vmem:[%s0 + $0x18] sm:$0xf]
  %v66 = vld [vmem:[%s0 + $0x1c] sm:$0xf]
  %v67 = vld [vmem:[%s0 + $0x20] sm:$0xf]
  %v68 = vld [vmem:[%s0 + $0x24] sm:$0xf]
  %v69 = vld [vmem:[%s0 + $0x28] sm:$0xf]
  %v70 = vld [vmem:[%s0 + $0x2c] sm:$0xf]
  %v71 = vld [vmem:[%s0 + $0x30] sm:$0xf]
  %v72 = vld [vmem:[%s0 + $0x34] sm:$0xf]
  %v73 = vld [vmem:[%s0 + $0x38] sm:$0xf]
  %v74 = vld [vmem:[%s0 + $0x3c] sm:$0xf]
  %v75 = vld [vmem:[%s1] sm:$0xf]
  %v76 = vld [vmem:[%s1 + $0x4] sm:$0xf]
  %v77 = vld [vmem:[%s1 + $0x8] sm:$0xf]
  %v78 = vld [vmem:[%s1 + $0xc] sm:$0xf]
  %v79 = vld [vmem:[%s1 + $0x10] sm:$0xf]
  %v80 = vld [vmem:[%s1 + $0x14] sm:$0xf]
  %v81 = vld [vmem:[%s1 + $0x18] sm:$0xf]
  %v82 = vld [vmem:[%s1 + $0x1c] sm:$0xf]
  %v83 = vld [vmem:[%s1 + $0x20] sm:$0xf]
  %v100 = vunpack.c.l.b16 %v59
  %v101 = vunpack.c.l.b16 %v60
  %v102 = vunpack.c.l.b16 %v61
  %v103 = vunpack.c.l.b16 %v62
  %v104 = vunpack.c.l.b16 %v63
  %v105 = vunpack.c.l.b16 %v64
  %v106 = vunpack.c.l.b16 %v65
  %v107 = vunpack.c.l.b16 %v66
  %v108 = vunpack.c.l.b16 %v67
  %v109 = vunpack.c.l.b16 %v68
  %v110 = vunpack.c.l.b16 %v69
  %v111 = vunpack.c.l.b16 %v70
  %v112 = vunpack.c.l.b16 %v71
  %v113 = vunpack.c.l.b16 %v72
  %v114 = vunpack.c.l.b16 %v73
  %v115 = vunpack.c.l.b16 %v74
  %v116 = vpack.c.b16 %v101, %v100
  %v117 = vpack.c.b16 %v103, %v102
  %v118 = vpack.c.b16 %v105, %v104
  %v119 = vpack.c.b16 %v107, %v106
  %v120 = vpack.c.b16 %v109, %v108
  %v121 = vpack.c.b16 %v111, %v110
  %v122 = vpack.c.b16 %v113, %v112
  %v123 = vpack.c.b16 %v115, %v114
  %v133 = vunpack.c.l.b16 %v75
  %v134 = vunpack.c.l.b16 %v76
  %v135 = vunpack.c.l.b16 %v77
  %v136 = vunpack.c.l.b16 %v78
  %v137 = vunpack.c.l.b16 %v79
  %v138 = vunpack.c.l.b16 %v80
  %v139 = vunpack.c.l.b16 %v81
  %v140 = vunpack.c.l.b16 %v82
  %v141 = vunpack.c.l.b16 %v83
  %v142 = vpack.c.b16 %v134, %v133
  %v143 = vpack.c.b16 %v136, %v135
  %v144 = vpack.c.b16 %v138, %v137
  %v145 = vpack.c.b16 %v140, %v139
  %v146 = vpack.c.b16 %v141, %v141
  %vm151 = vcmask 588800
  %v153 = vsel %vm151, %v116, 0
  %v156 = vsel %vm151, %v117, 0
  %v159 = vsel %vm151, %v118, 0
  %v162 = vsel %vm151, %v119, 0
  %v165 = vsel %vm151, %v120, 0
  %v168 = vsel %vm151, %v121, 0
  %v171 = vsel %vm151, %v122, 0
  %v174 = vsel %vm151, %v123, 0
  %vm176 = vcmask 1043456
  %v178 = vsel %vm176, %v146, 0
  %180 = vmatprep.subr.bf16.mxu0 0
  %181 = vmatpush1.bf16.msra.mxu0 0
  %182 = vmatprep.subr.bf16.mxu0 0
  %183 = vmatpush1.bf16.msra.mxu0 0
  %184 = vmatprep.subr.bf16.mxu0 0
  %185 = vmatpush1.bf16.msra.mxu0 0
  %186 = vmatprep.subr.bf16.mxu0 0
  %187 = vmatpush1.bf16.msra.mxu0 %v178
  %188 = vmatprep.subr.bf16.mxu0 0
  %189 = vmatpush1.bf16.msra.mxu0 %v145
  %190 = vmatprep.subr.bf16.mxu0 0
  %191 = vmatpush1.bf16.msra.mxu0 %v144
  %192 = vmatprep.subr.bf16.mxu0 0
  %193 = vmatpush1.bf16.msra.mxu0 %v143
  %194 = vmatprep.subr.bf16.mxu0 0
  %195 = vmatpush1.bf16.msra.mxu0 %v142
  %196 = vmatprep.subr.bf16.mxu0 0
  %197 = vmatpush2.bf16.msra.mxu0 0
  %198 = vmatprep.subr.bf16.mxu0 0
  %199 = vmatpush2.bf16.msra.mxu0 0
  %200 = vmatprep.subr.bf16.mxu0 0
  %201 = vmatpush2.bf16.msra.mxu0 0
  %202 = vmatprep.subr.bf16.mxu0 0
  %203 = vmatpush2.bf16.msra.mxu0 0
  %204 = vmatprep.subr.bf16.mxu0 0
  %205 = vmatpush2.bf16.msra.mxu0 0
  %206 = vmatprep.subr.bf16.mxu0 0
  %207 = vmatpush2.bf16.msra.mxu0 0
  %208 = vmatprep.subr.bf16.mxu0 0
  %209 = vmatpush2.bf16.msra.mxu0 0
  %210 = vmatprep.subr.bf16.mxu0 0
  %211 = vmatpush2.bf16.msra.mxu0 0
  %212 = vmatprep.mubr.bf16.mxu0 0
  %213 = vmatmul.mubr.bf16.gmra.mxu0 %v153
  %v214 = vpop.f32.mrf.mxu0
  %v215 = vadd.f32 0.0, %v214
  %v216 = vpop.f32.mrf.mxu0
  %v217 = vpop.f32.mrf.mxu0
  %v218 = vadd.f32 0.0, %v217
  %v219 = vpop.f32.mrf.mxu0
  %220 = vmatprep.mubr.bf16.mxu0 0
  %221 = vmatmul.mubr.bf16.gmra.mxu0 %v156
  %v222 = vpop.f32.mrf.mxu0
  %v223 = vadd.f32 0.0, %v222
  %v224 = vpop.f32.mrf.mxu0
  %v225 = vpop.f32.mrf.mxu0
  %v226 = vadd.f32 0.0, %v225
  %v227 = vpop.f32.mrf.mxu0
  %228 = vmatprep.mubr.bf16.mxu0 0
  %229 = vmatmul.mubr.bf16.gmra.mxu0 %v159
  %v230 = vpop.f32.mrf.mxu0
  %v231 = vadd.f32 0.0, %v230
  %v232 = vpop.f32.mrf.mxu0
  %v233 = vpop.f32.mrf.mxu0
  %v234 = vadd.f32 0.0, %v233
  %v235 = vpop.f32.mrf.mxu0
  %236 = vmatprep.mubr.bf16.mxu0 0
  %237 = vmatmul.mubr.bf16.gmra.mxu0 %v162
  %v238 = vpop.f32.mrf.mxu0
  %v239 = vadd.f32 0.0, %v238
  %v240 = vpop.f32.mrf.mxu0
  %v241 = vpop.f32.mrf.mxu0
  %v242 = vadd.f32 0.0, %v241
  %v243 = vpop.f32.mrf.mxu0
  %244 = vmatprep.mubr.bf16.mxu0 0
  %245 = vmatmul.mubr.bf16.gmra.mxu0 %v165
  %v246 = vpop.f32.mrf.mxu0
  %v247 = vadd.f32 0.0, %v246
  %v248 = vpop.f32.mrf.mxu0
  %v249 = vpop.f32.mrf.mxu0
  %v250 = vadd.f32 0.0, %v249
  %v251 = vpop.f32.mrf.mxu0
  %252 = vmatprep.mubr.bf16.mxu0 0
  %253 = vmatmul.mubr.bf16.gmra.mxu0 %v168
  %v254 = vpop.f32.mrf.mxu0
  %v255 = vadd.f32 0.0, %v254
  %v256 = vpop.f32.mrf.mxu0
  %v257 = vpop.f32.mrf.mxu0
  %v258 = vadd.f32 0.0, %v257
  %v259 = vpop.f32.mrf.mxu0
  %260 = vmatprep.mubr.bf16.mxu0 0
  %261 = vmatmul.mubr.bf16.gmra.mxu0 %v171
  %v262 = vpop.f32.mrf.mxu0
  %v263 = vadd.f32 0.0, %v262
  %v264 = vpop.f32.mrf.mxu0
  %v265 = vpop.f32.mrf.mxu0
  %v266 = vadd.f32 0.0, %v265
  %v267 = vpop.f32.mrf.mxu0
  %268 = vmatprep.mubr.bf16.mxu0 0
  %269 = vmatmul.mubr.bf16.gmra.mxu0 %v174
  %v270 = vpop.f32.mrf.mxu0
  %v271 = vadd.f32 0.0, %v270
  %v272 = vpop.f32.mrf.mxu0
  %v273 = vpop.f32.mrf.mxu0
  %v274 = vadd.f32 0.0, %v273
  %v275 = vpop.f32.mrf.mxu0
  %276 = vdwg.mxu0
  %v277 = vadd.f32 %v43, %v215
  %v278 = vadd.f32 %v44, %v218
  %v279 = vadd.f32 %v45, %v223
  %v280 = vadd.f32 %v46, %v226
  %v281 = vadd.f32 %v47, %v231
  %v282 = vadd.f32 %v48, %v234
  %v283 = vadd.f32 %v49, %v239
  %v284 = vadd.f32 %v50, %v242
  %v285 = vadd.f32 %v51, %v247
  %v286 = vadd.f32 %v52, %v250
  %v287 = vadd.f32 %v53, %v255
  %v288 = vadd.f32 %v54, %v258
  %v289 = vadd.f32 %v55, %v263
  %v290 = vadd.f32 %v56, %v266
  %v291 = vadd.f32 %v57, %v271
  %v292 = vadd.f32 %v58, %v274
  %vm293 = vcmask 130048
  %294 = vst.msk [vmem:[#allocation2] sm:$0xff] %vm293, %v277
  %295 = vst.msk [vmem:[#allocation2 + $0x8] sm:$0xff] %vm293, %v278
  %296 = vst.msk [vmem:[#allocation2 + $0x10] sm:$0xff] %vm293, %v279
  %297 = vst.msk [vmem:[#allocation2 + $0x18] sm:$0xff] %vm293, %v280
  %298 = vst.msk [vmem:[#allocation2 + $0x20] sm:$0xff] %vm293, %v281
  %299 = vst.msk [vmem:[#allocation2 + $0x28] sm:$0xff] %vm293, %v282
  %300 = vst.msk [vmem:[#allocation2 + $0x30] sm:$0xff] %vm293, %v283
  %301 = vst.msk [vmem:[#allocation2 + $0x38] sm:$0xff] %vm293, %v284
  %302 = vst.msk [vmem:[#allocation2 + $0x40] sm:$0xff] %vm293, %v285
  %303 = vst.msk [vmem:[#allocation2 + $0x48] sm:$0xff] %vm293, %v286
  %304 = vst.msk [vmem:[#allocation2 + $0x50] sm:$0xff] %vm293, %v287
  %305 = vst.msk [vmem:[#allocation2 + $0x58] sm:$0xff] %vm293, %v288
  %306 = vst.msk [vmem:[#allocation2 + $0x60] sm:$0xff] %vm293, %v289
  %307 = vst.msk [vmem:[#allocation2 + $0x68] sm:$0xff] %vm293, %v290
  %308 = vst.msk [vmem:[#allocation2 + $0x70] sm:$0xff] %vm293, %v291
  %309 = vst.msk [vmem:[#allocation2 + $0x78] sm:$0xff] %vm293, %v292
  // Predicated region
  $region18: #{cobnet_forward.8} parent=0 // pred_check
    %p310 = pneg %p15
  $region19: #{cobnet_forward.8} parent=0 // pred_check_branch
    %312 = sbr.rel (%p310) target = $region21
  $region20: #{cobnet_forward.8} parent=0 // pred_region
    %v313 = vld [vmem:[#allocation2] sm:$0xff]
    %v314 = vld [vmem:[#allocation2 + $0x8] sm:$0xff]
    %v315 = vld [vmem:[#allocation2 + $0x10] sm:$0xff]
    %v316 = vld [vmem:[#allocation2 + $0x18] sm:$0xff]
    %v317 = vld [vmem:[#allocation2 + $0x20] sm:$0xff]
    %v318 = vld [vmem:[#allocation2 + $0x28] sm:$0xff]
    %v319 = vld [vmem:[#allocation2 + $0x30] sm:$0xff]
    %v320 = vld [vmem:[#allocation2 + $0x38] sm:$0xff]
    %v321 = vld [vmem:[#allocation2 + $0x40] sm:$0xff]
    %v322 = vld [vmem:[#allocation2 + $0x48] sm:$0xff]
    %v323 = vld [vmem:[#allocation2 + $0x50] sm:$0xff]
    %v324 = vld [vmem:[#allocation2 + $0x58] sm:$0xff]
    %v325 = vld [vmem:[#allocation2 + $0x60] sm:$0xff]
    %v326 = vld [vmem:[#allocation2 + $0x68] sm:$0xff]
    %v327 = vld [vmem:[#allocation2 + $0x70] sm:$0xff]
    %v328 = vld [vmem:[#allocation2 + $0x78] sm:$0xff]
    %v329 = vmax.f32 %v313, 0.0
    %v330 = vmax.f32 %v314, 0.0
    %v331 = vmax.f32 %v315, 0.0
    %v332 = vmax.f32 %v316, 0.0
    %v333 = vmax.f32 %v317, 0.0
    %v334 = vmax.f32 %v318, 0.0
    %v335 = vmax.f32 %v319, 0.0
    %v336 = vmax.f32 %v320, 0.0
    %v337 = vmax.f32 %v321, 0.0
    %v338 = vmax.f32 %v322, 0.0
    %v339 = vmax.f32 %v323, 0.0
    %v340 = vmax.f32 %v324, 0.0
    %v341 = vmax.f32 %v325, 0.0
    %v342 = vmax.f32 %v326, 0.0
    %v343 = vmax.f32 %v327, 0.0
    %v344 = vmax.f32 %v328, 0.0
    %v345 = vpack.c.bf16 %v330, %v329
    %v346 = vpack.c.bf16 %v332, %v331
    %v347 = vpack.c.bf16 %v334, %v333
    %v348 = vpack.c.bf16 %v336, %v335
    %v349 = vpack.c.bf16 %v338, %v337
    %v350 = vpack.c.bf16 %v340, %v339
    %v351 = vpack.c.bf16 %v342, %v341
    %v352 = vpack.c.bf16 %v344, %v343
    %v361 = vunpack.c.l.b16 %v345
    %v362 = vunpack.c.h.b16 %v345
    %v363 = vunpack.c.l.b16 %v346
    %v364 = vunpack.c.h.b16 %v346
    %v365 = vunpack.c.l.b16 %v347
    %v366 = vunpack.c.h.b16 %v347
    %v367 = vunpack.c.l.b16 %v348
    %v368 = vunpack.c.h.b16 %v348
    %v369 = vunpack.c.l.b16 %v349
    %v370 = vunpack.c.h.b16 %v349
    %v371 = vunpack.c.l.b16 %v350
    %v372 = vunpack.c.h.b16 %v350
    %v373 = vunpack.c.l.b16 %v351
    %v374 = vunpack.c.h.b16 %v351
    %v375 = vunpack.c.l.b16 %v352
    %v376 = vunpack.c.h.b16 %v352
    %v377 = vpack.c.b16 %v361, %v361
    %v378 = vpack.c.b16 %v362, %v362
    %v379 = vpack.c.b16 %v363, %v363
    %v380 = vpack.c.b16 %v364, %v364
    %v381 = vpack.c.b16 %v365, %v365
    %v382 = vpack.c.b16 %v366, %v366
    %v383 = vpack.c.b16 %v367, %v367
    %v384 = vpack.c.b16 %v368, %v368
    %v385 = vpack.c.b16 %v369, %v369
    %v386 = vpack.c.b16 %v370, %v370
    %v387 = vpack.c.b16 %v371, %v371
    %v388 = vpack.c.b16 %v372, %v372
    %v389 = vpack.c.b16 %v373, %v373
    %v390 = vpack.c.b16 %v374, %v374
    %v391 = vpack.c.b16 %v375, %v375
    %v392 = vpack.c.b16 %v376, %v376
    %vm409 = vcmask 125952
    %410 = vst.msk [vmem:[%s3] sm:$0xf] %vm409, %v377
    %411 = vst.msk [vmem:[%s3 + $0x4] sm:$0xf] %vm409, %v378
    %412 = vst.msk [vmem:[%s3 + $0x8] sm:$0xf] %vm409, %v379
    %413 = vst.msk [vmem:[%s3 + $0xc] sm:$0xf] %vm409, %v380
    %414 = vst.msk [vmem:[%s3 + $0x10] sm:$0xf] %vm409, %v381
    %415 = vst.msk [vmem:[%s3 + $0x14] sm:$0xf] %vm409, %v382
    %416 = vst.msk [vmem:[%s3 + $0x18] sm:$0xf] %vm409, %v383
    %417 = vst.msk [vmem:[%s3 + $0x1c] sm:$0xf] %vm409, %v384
    %418 = vst.msk [vmem:[%s3 + $0x20] sm:$0xf] %vm409, %v385
    %419 = vst.msk [vmem:[%s3 + $0x24] sm:$0xf] %vm409, %v386
    %420 = vst.msk [vmem:[%s3 + $0x28] sm:$0xf] %vm409, %v387
    %421 = vst.msk [vmem:[%s3 + $0x2c] sm:$0xf] %vm409, %v388
    %422 = vst.msk [vmem:[%s3 + $0x30] sm:$0xf] %vm409, %v389
    %423 = vst.msk [vmem:[%s3 + $0x34] sm:$0xf] %vm409, %v390
    %424 = vst.msk [vmem:[%s3 + $0x38] sm:$0xf] %vm409, %v391
    %425 = vst.msk [vmem:[%s3 + $0x3c] sm:$0xf] %vm409, %v392
  $region21: #{cobnet_forward.8} parent=0 // pred_fallthru
    _
  // Predicated region
  $region22: #{cobnet_forward.8} parent=0 // pred_check
    _
  $region23: #{cobnet_forward.8} parent=0 // pred_check_branch
    %427 = sbr.rel (0) target = $region25
  $region24: #{cobnet_forward.8} parent=0 // pred_region
    _
  $region25: #{cobnet_forward.8} parent=0 // pred_fallthru
    _
  // Predicated region
  $region26: #{cobnet_forward.8} parent=0 // pred_check
    _
  $region27: #{cobnet_forward.8} parent=0 // pred_check_branch
    %429 = sbr.rel (0) target = $region29
  $region28: #{cobnet_forward.8} parent=0 // pred_region
    _
  $region29: #{cobnet_forward.8} parent=0 // pred_fallthru
    _

// kernel: cobnet_forward.9
$region0: #{cobnet_forward.9}
  #allocation0 [shape = 'u32[]', space=smem, size = 0x4, offset = 0x4, fixed_abs, tag = 'smem constant byte address 0x4 - core index']
  #allocation1 [shape = 'u32[144,128]{1,0:T(1,128)}', space=vmem, size = 0x12000, scoped, tag = 'internal scratch']
  #allocation2 [shape = 'f32[32,16]{1,0:T(8,128)}', space=vmem, size = 0x4000, scoped, tag = 'scratch operand']
  %s0 = inlined_call_operand.vmem [shape: bf16[32,144], index: 0, kind: input, shape index: {}]
  %s1 = inlined_call_operand.vmem [shape: bf16[144,16], index: 1, kind: input, shape index: {}]
  %s2 = inlined_call_operand.vmem [shape: f32[1,16], index: 2, kind: input, shape index: {}]
  %s3 = inlined_call_operand.vmem [shape: bf16[32,16], index: 3, kind: output, shape index: {}]
  %s4 = sld [smem:[#allocation0]]
  $region30: #{cobnet_forward.9} parent=0
    _
  %s6 = ssub.s32 1, %s4
  %s7 = scalar_select 0, %s6, %s4
  // Predicated region
  $region2: #{cobnet_forward.9} parent=0 // pred_check
    _
  $region3: #{cobnet_forward.9} parent=0 // pred_check_branch
    %9 = sbr.rel (0) target = $region5
  $region4: #{cobnet_forward.9} parent=0 // pred_region
    _
  $region5: #{cobnet_forward.9} parent=0 // pred_fallthru
    _
  // Predicated region
  $region6: #{cobnet_forward.9} parent=0 // pred_check
    _
  $region7: #{cobnet_forward.9} parent=0 // pred_check_branch
    %11 = sbr.rel (0) target = $region9
  $region8: #{cobnet_forward.9} parent=0 // pred_region
    _
  $region9: #{cobnet_forward.9} parent=0 // pred_fallthru
    _
  // Predicated region
  $region10: #{cobnet_forward.9} parent=0 // pred_check
    _
  $region11: #{cobnet_forward.9} parent=0 // pred_check_branch
    %13 = sbr.rel (0) target = $region13
  $region12: #{cobnet_forward.9} parent=0 // pred_region
    _
  $region13: #{cobnet_forward.9} parent=0 // pred_fallthru
    _
  %p15 = scmp.eq.s32.totalorder 0, 0
  // Predicated region
  $region14: #{cobnet_forward.9} parent=0 // pred_check
    %p16 = pneg %p15
  $region15: #{cobnet_forward.9} parent=0 // pred_check_branch
    %18 = sbr.rel (%p16) target = $region17
  $region16: #{cobnet_forward.9} parent=0 // pred_region
    %v19 = vld [vmem:[%s2] sm:$0x1]
    %v21 = vlaneseq
    %v22 = vshrl.u32 %v21, 7
    %v23 = vsub.s32 0, %v22
    %v24 = vrot.slane %v19, %v23
    %vm26 = vcmask 130048
    %27 = vst.msk [vmem:[#allocation2] sm:$0xff] %vm26, %v24
    %28 = vst.msk [vmem:[#allocation2 + $0x8] sm:$0xff] %vm26, %v24
    %29 = vst.msk [vmem:[#allocation2 + $0x10] sm:$0xff] %vm26, %v24
    %30 = vst.msk [vmem:[#allocation2 + $0x18] sm:$0xff] %vm26, %v24
  $region17: #{cobnet_forward.9} parent=0 // pred_fallthru
    _
  %v31 = vld [vmem:[#allocation2] sm:$0xff]
  %v32 = vld [vmem:[#allocation2 + $0x8] sm:$0xff]
  %v33 = vld [vmem:[#allocation2 + $0x10] sm:$0xff]
  %v34 = vld [vmem:[#allocation2 + $0x18] sm:$0xff]
  %v35 = vld [vmem:[%s0] sm:$0xff]
  %v36 = vld [vmem:[%s0 + $0x8] sm:$0xff]
  %v37 = vld [vmem:[%s0 + $0x10] sm:$0xff]
  %v38 = vld [vmem:[%s0 + $0x18] sm:$0xff]
  %v39 = vld [vmem:[%s1] sm:$0xf]
  %v40 = vld [vmem:[%s1 + $0x4] sm:$0xf]
  %v41 = vld [vmem:[%s1 + $0x8] sm:$0xf]
  %v42 = vld [vmem:[%s1 + $0xc] sm:$0xf]
  %v43 = vld [vmem:[%s1 + $0x10] sm:$0xf]
  %v44 = vld [vmem:[%s1 + $0x14] sm:$0xf]
  %v45 = vld [vmem:[%s1 + $0x18] sm:$0xf]
  %v46 = vld [vmem:[%s1 + $0x1c] sm:$0xf]
  %v47 = vld [vmem:[%s1 + $0x20] sm:$0xf]
  %v48 = vld [vmem:[%s1 + $0x24] sm:$0xf]
  %v49 = vld [vmem:[%s1 + $0x28] sm:$0xf]
  %v50 = vld [vmem:[%s1 + $0x2c] sm:$0xf]
  %v51 = vld [vmem:[%s1 + $0x30] sm:$0xf]
  %v52 = vld [vmem:[%s1 + $0x34] sm:$0xf]
  %v53 = vld [vmem:[%s1 + $0x38] sm:$0xf]
  %v54 = vld [vmem:[%s1 + $0x3c] sm:$0xf]
  %v55 = vld [vmem:[%s1 + $0x40] sm:$0xf]
  %v56 = vld [vmem:[%s1 + $0x44] sm:$0xf]
  %v61 = vunpack.c.l.b16 %v35
  %v62 = vunpack.c.h.b16 %v35
  %v63 = vunpack.c.l.b16 %v36
  %v64 = vunpack.c.h.b16 %v36
  %v65 = vunpack.c.l.b16 %v37
  %v66 = vunpack.c.h.b16 %v37
  %v67 = vunpack.c.l.b16 %v38
  %v68 = vunpack.c.h.b16 %v38
  %v69 = vpack.c.b16 %v63, %v61
  %v70 = vpack.c.b16 %v64, %v62
  %v71 = vpack.c.b16 %v67, %v65
  %v72 = vpack.c.b16 %v68, %v66
  %v93 = vunpack.c.l.b16 %v39
  %v94 = vunpack.c.l.b16 %v40
  %v95 = vunpack.c.l.b16 %v41
  %v96 = vunpack.c.l.b16 %v42
  %v97 = vunpack.c.l.b16 %v43
  %v98 = vunpack.c.l.b16 %v44
  %v99 = vunpack.c.l.b16 %v45
  %v100 = vunpack.c.l.b16 %v46
  %v101 = vunpack.c.l.b16 %v47
  %v102 = vunpack.c.l.b16 %v48
  %v103 = vunpack.c.l.b16 %v49
  %v104 = vunpack.c.l.b16 %v50
  %v105 = vunpack.c.l.b16 %v51
  %v106 = vunpack.c.l.b16 %v52
  %v107 = vunpack.c.l.b16 %v53
  %v108 = vunpack.c.l.b16 %v54
  %v109 = vunpack.c.l.b16 %v55
  %v110 = vunpack.c.l.b16 %v56
  %v111 = vpack.c.b16 %v94, %v93
  %v112 = vpack.c.b16 %v96, %v95
  %v113 = vpack.c.b16 %v98, %v97
  %v114 = vpack.c.b16 %v100, %v99
  %v115 = vpack.c.b16 %v102, %v101
  %v116 = vpack.c.b16 %v104, %v103
  %v117 = vpack.c.b16 %v106, %v105
  %v118 = vpack.c.b16 %v108, %v107
  %v119 = vpack.c.b16 %v110, %v109
  %vm129 = vcmask 130048
  %v131 = vsel %vm129, %v70, 0
  %v134 = vsel %vm129, %v72, 0
  %136 = vmatprep.subr.bf16.mxu0 0
  %137 = vmatpush1.bf16.msra.mxu0 %v118
  %138 = vmatprep.subr.bf16.mxu0 0
  %139 = vmatpush1.bf16.msra.mxu0 %v117
  %140 = vmatprep.subr.bf16.mxu0 0
  %141 = vmatpush1.bf16.msra.mxu0 %v116
  %142 = vmatprep.subr.bf16.mxu0 0
  %143 = vmatpush1.bf16.msra.mxu0 %v115
  %144 = vmatprep.subr.bf16.mxu0 0
  %145 = vmatpush1.bf16.msra.mxu0 %v114
  %146 = vmatprep.subr.bf16.mxu0 0
  %147 = vmatpush1.bf16.msra.mxu0 %v113
  %148 = vmatprep.subr.bf16.mxu0 0
  %149 = vmatpush1.bf16.msra.mxu0 %v112
  %150 = vmatprep.subr.bf16.mxu0 0
  %151 = vmatpush1.bf16.msra.mxu0 %v111
  %152 = vmatprep.subr.bf16.mxu0 0
  %153 = vmatpush2.bf16.msra.mxu0 0
  %154 = vmatprep.subr.bf16.mxu0 0
  %155 = vmatpush2.bf16.msra.mxu0 0
  %156 = vmatprep.subr.bf16.mxu0 0
  %157 = vmatpush2.bf16.msra.mxu0 0
  %158 = vmatprep.subr.bf16.mxu0 0
  %159 = vmatpush2.bf16.msra.mxu0 0
  %160 = vmatprep.subr.bf16.mxu0 0
  %161 = vmatpush2.bf16.msra.mxu0 0
  %162 = vmatprep.subr.bf16.mxu0 0
  %163 = vmatpush2.bf16.msra.mxu0 0
  %164 = vmatprep.subr.bf16.mxu0 0
  %165 = vmatpush2.bf16.msra.mxu0 0
  %166 = vmatprep.subr.bf16.mxu0 0
  %167 = vmatpush2.bf16.msra.mxu0 %v119
  %168 = vmatprep.mubr.bf16.mxu0 %v131
  %169 = vmatmul.mubr.bf16.gmra.mxu0 %v69
  %v170 = vpop.f32.mrf.mxu0
  %v171 = vadd.f32 0.0, %v170
  %v172 = vpop.f32.mrf.mxu0
  %v173 = vpop.f32.mrf.mxu0
  %v174 = vadd.f32 0.0, %v173
  %v175 = vpop.f32.mrf.mxu0
  %176 = vmatprep.mubr.bf16.mxu0 %v134
  %177 = vmatmul.mubr.bf16.gmra.mxu0 %v71
  %v178 = vpop.f32.mrf.mxu0
  %v179 = vadd.f32 0.0, %v178
  %v180 = vpop.f32.mrf.mxu0
  %v181 = vpop.f32.mrf.mxu0
  %v182 = vadd.f32 0.0, %v181
  %v183 = vpop.f32.mrf.mxu0
  %184 = vdwg.mxu0
  %v185 = vadd.f32 %v31, %v171
  %v186 = vadd.f32 %v32, %v174
  %v187 = vadd.f32 %v33, %v179
  %v188 = vadd.f32 %v34, %v182
  %189 = vst.msk [vmem:[#allocation2] sm:$0xff] %vm129, %v185
  %190 = vst.msk [vmem:[#allocation2 + $0x8] sm:$0xff] %vm129, %v186
  %191 = vst.msk [vmem:[#allocation2 + $0x10] sm:$0xff] %vm129, %v187
  %192 = vst.msk [vmem:[#allocation2 + $0x18] sm:$0xff] %vm129, %v188
  // Predicated region
  $region18: #{cobnet_forward.9} parent=0 // pred_check
    %p193 = pneg %p15
  $region19: #{cobnet_forward.9} parent=0 // pred_check_branch
    %195 = sbr.rel (%p193) target = $region21
  $region20: #{cobnet_forward.9} parent=0 // pred_region
    %v196 = vld [vmem:[#allocation2] sm:$0xff]
    %v197 = vld [vmem:[#allocation2 + $0x8] sm:$0xff]
    %v198 = vld [vmem:[#allocation2 + $0x10] sm:$0xff]
    %v199 = vld [vmem:[#allocation2 + $0x18] sm:$0xff]
    %v200 = vmax.f32 %v196, 0.0
    %v201 = vmax.f32 %v197, 0.0
    %v202 = vmax.f32 %v198, 0.0
    %v203 = vmax.f32 %v199, 0.0
    %v204 = vpack.c.bf16 %v201, %v200
    %v205 = vpack.c.bf16 %v203, %v202
    %v208 = vunpack.c.l.b16 %v204
    %v209 = vunpack.c.h.b16 %v204
    %v210 = vunpack.c.l.b16 %v205
    %v211 = vunpack.c.h.b16 %v205
    %v212 = vpack.c.b16 %v208, %v208
    %v213 = vpack.c.b16 %v209, %v209
    %v214 = vpack.c.b16 %v210, %v210
    %v215 = vpack.c.b16 %v211, %v211
    %vm220 = vcmask 125952
    %221 = vst.msk [vmem:[%s3] sm:$0xf] %vm220, %v212
    %222 = vst.msk [vmem:[%s3 + $0x4] sm:$0xf] %vm220, %v213
    %223 = vst.msk [vmem:[%s3 + $0x8] sm:$0xf] %vm220, %v214
    %224 = vst.msk [vmem:[%s3 + $0xc] sm:$0xf] %vm220, %v215
  $region21: #{cobnet_forward.9} parent=0 // pred_fallthru
    _
  // Predicated region
  $region22: #{cobnet_forward.9} parent=0 // pred_check
    _
  $region23: #{cobnet_forward.9} parent=0 // pred_check_branch
    %226 = sbr.rel (0) target = $region25
  $region24: #{cobnet_forward.9} parent=0 // pred_region
    _
  $region25: #{cobnet_forward.9} parent=0 // pred_fallthru
    _
  // Predicated region
  $region26: #{cobnet_forward.9} parent=0 // pred_check
    _
  $region27: #{cobnet_forward.9} parent=0 // pred_check_branch
    %228 = sbr.rel (0) target = $region29
  $region28: #{cobnet_forward.9} parent=0 // pred_region
    _
  $region29: #{cobnet_forward.9} parent=0 // pred_fallthru
    _

// kernel: cobnet_forward.10
$region0: #{cobnet_forward.10}
  #allocation0 [shape = 'u32[]', space=smem, size = 0x4, offset = 0x4, fixed_abs, tag = 'smem constant byte address 0x4 - core index']
  #allocation1 [shape = 'u32[144,128]{1,0:T(1,128)}', space=vmem, size = 0x12000, scoped, tag = 'internal scratch']
  #allocation2 [shape = 'f32[32,32]{1,0:T(8,128)}', space=vmem, size = 0x4000, scoped, tag = 'scratch operand']
  %s0 = inlined_call_operand.vmem [shape: bf16[32,144], index: 0, kind: input, shape index: {}]
  %s1 = inlined_call_operand.vmem [shape: bf16[144,32], index: 1, kind: input, shape index: {}]
  %s2 = inlined_call_operand.vmem [shape: f32[1,32], index: 2, kind: input, shape index: {}]
  %s3 = inlined_call_operand.vmem [shape: bf16[32,32], index: 3, kind: output, shape index: {}]
  %s4 = sld [smem:[#allocation0]]
  $region30: #{cobnet_forward.10} parent=0
    _
  %s6 = ssub.s32 1, %s4
  %s7 = scalar_select 0, %s6, %s4
  // Predicated region
  $region2: #{cobnet_forward.10} parent=0 // pred_check
    _
  $region3: #{cobnet_forward.10} parent=0 // pred_check_branch
    %9 = sbr.rel (0) target = $region5
  $region4: #{cobnet_forward.10} parent=0 // pred_region
    _
  $region5: #{cobnet_forward.10} parent=0 // pred_fallthru
    _
  // Predicated region
  $region6: #{cobnet_forward.10} parent=0 // pred_check
    _
  $region7: #{cobnet_forward.10} parent=0 // pred_check_branch
    %11 = sbr.rel (0) target = $region9
  $region8: #{cobnet_forward.10} parent=0 // pred_region
    _
  $region9: #{cobnet_forward.10} parent=0 // pred_fallthru
    _
  // Predicated region
  $region10: #{cobnet_forward.10} parent=0 // pred_check
    _
  $region11: #{cobnet_forward.10} parent=0 // pred_check_branch
    %13 = sbr.rel (0) target = $region13
  $region12: #{cobnet_forward.10} parent=0 // pred_region
    _
  $region13: #{cobnet_forward.10} parent=0 // pred_fallthru
    _
  %p15 = scmp.eq.s32.totalorder 0, 0
  // Predicated region
  $region14: #{cobnet_forward.10} parent=0 // pred_check
    %p16 = pneg %p15
  $region15: #{cobnet_forward.10} parent=0 // pred_check_branch
    %18 = sbr.rel (%p16) target = $region17
  $region16: #{cobnet_forward.10} parent=0 // pred_region
    %v19 = vld [vmem:[%s2] sm:$0x1]
    %v21 = vlaneseq
    %v22 = vshrl.u32 %v21, 7
    %v23 = vsub.s32 0, %v22
    %v24 = vrot.slane %v19, %v23
    %vm26 = vcmask 261120
    %27 = vst.msk [vmem:[#allocation2] sm:$0xff] %vm26, %v24
    %28 = vst.msk [vmem:[#allocation2 + $0x8] sm:$0xff] %vm26, %v24
    %29 = vst.msk [vmem:[#allocation2 + $0x10] sm:$0xff] %vm26, %v24
    %30 = vst.msk [vmem:[#allocation2 + $0x18] sm:$0xff] %vm26, %v24
  $region17: #{cobnet_forward.10} parent=0 // pred_fallthru
    _
  %v31 = vld [vmem:[#allocation2] sm:$0xff]
  %v32 = vld [vmem:[#allocation2 + $0x8] sm:$0xff]
  %v33 = vld [vmem:[#allocation2 + $0x10] sm:$0xff]
  %v34 = vld [vmem:[#allocation2 + $0x18] sm:$0xff]
  %v35 = vld [vmem:[%s0] sm:$0xff]
  %v36 = vld [vmem:[%s0 + $0x8] sm:$0xff]
  %v37 = vld [vmem:[%s0 + $0x10] sm:$0xff]
  %v38 = vld [vmem:[%s0 + $0x18] sm:$0xff]
  %v39 = vld [vmem:[%s1] sm:$0xf]
  %v40 = vld [vmem:[%s1 + $0x4] sm:$0xf]
  %v41 = vld [vmem:[%s1 + $0x8] sm:$0xf]
  %v42 = vld [vmem:[%s1 + $0xc] sm:$0xf]
  %v43 = vld [vmem:[%s1 + $0x10] sm:$0xf]
  %v44 = vld [vmem:[%s1 + $0x14] sm:$0xf]
  %v45 = vld [vmem:[%s1 + $0x18] sm:$0xf]
  %v46 = vld [vmem:[%s1 + $0x1c] sm:$0xf]
  %v47 = vld [vmem:[%s1 + $0x20] sm:$0xf]
  %v48 = vld [vmem:[%s1 + $0x24] sm:$0xf]
  %v49 = vld [vmem:[%s1 + $0x28] sm:$0xf]
  %v50 = vld [vmem:[%s1 + $0x2c] sm:$0xf]
  %v51 = vld [vmem:[%s1 + $0x30] sm:$0xf]
  %v52 = vld [vmem:[%s1 + $0x34] sm:$0xf]
  %v53 = vld [vmem:[%s1 + $0x38] sm:$0xf]
  %v54 = vld [vmem:[%s1 + $0x3c] sm:$0xf]
  %v55 = vld [vmem:[%s1 + $0x40] sm:$0xf]
  %v56 = vld [vmem:[%s1 + $0x44] sm:$0xf]
  %v61 = vunpack.c.l.b16 %v35
  %v62 = vunpack.c.h.b16 %v35
  %v63 = vunpack.c.l.b16 %v36
  %v64 = vunpack.c.h.b16 %v36
  %v65 = vunpack.c.l.b16 %v37
  %v66 = vunpack.c.h.b16 %v37
  %v67 = vunpack.c.l.b16 %v38
  %v68 = vunpack.c.h.b16 %v38
  %v69 = vpack.c.b16 %v63, %v61
  %v70 = vpack.c.b16 %v64, %v62
  %v71 = vpack.c.b16 %v67, %v65
  %v72 = vpack.c.b16 %v68, %v66
  %v93 = vunpack.c.l.b16 %v39
  %v94 = vunpack.c.l.b16 %v40
  %v95 = vunpack.c.l.b16 %v41
  %v96 = vunpack.c.l.b16 %v42
  %v97 = vunpack.c.l.b16 %v43
  %v98 = vunpack.c.l.b16 %v44
  %v99 = vunpack.c.l.b16 %v45
  %v100 = vunpack.c.l.b16 %v46
  %v101 = vunpack.c.l.b16 %v47
  %v102 = vunpack.c.l.b16 %v48
  %v103 = vunpack.c.l.b16 %v49
  %v104 = vunpack.c.l.b16 %v50
  %v105 = vunpack.c.l.b16 %v51
  %v106 = vunpack.c.l.b16 %v52
  %v107 = vunpack.c.l.b16 %v53
  %v108 = vunpack.c.l.b16 %v54
  %v109 = vunpack.c.l.b16 %v55
  %v110 = vunpack.c.l.b16 %v56
  %v111 = vpack.c.b16 %v94, %v93
  %v112 = vpack.c.b16 %v96, %v95
  %v113 = vpack.c.b16 %v98, %v97
  %v114 = vpack.c.b16 %v100, %v99
  %v115 = vpack.c.b16 %v102, %v101
  %v116 = vpack.c.b16 %v104, %v103
  %v117 = vpack.c.b16 %v106, %v105
  %v118 = vpack.c.b16 %v108, %v107
  %v119 = vpack.c.b16 %v110, %v109
  %vm129 = vcmask 130048
  %v131 = vsel %vm129, %v70, 0
  %v134 = vsel %vm129, %v72, 0
  %136 = vmatprep.subr.bf16.mxu0 0
  %137 = vmatpush1.bf16.msra.mxu0 %v118
  %138 = vmatprep.subr.bf16.mxu0 0
  %139 = vmatpush1.bf16.msra.mxu0 %v117
  %140 = vmatprep.subr.bf16.mxu0 0
  %141 = vmatpush1.bf16.msra.mxu0 %v116
  %142 = vmatprep.subr.bf16.mxu0 0
  %143 = vmatpush1.bf16.msra.mxu0 %v115
  %144 = vmatprep.subr.bf16.mxu0 0
  %145 = vmatpush1.bf16.msra.mxu0 %v114
  %146 = vmatprep.subr.bf16.mxu0 0
  %147 = vmatpush1.bf16.msra.mxu0 %v113
  %148 = vmatprep.subr.bf16.mxu0 0
  %149 = vmatpush1.bf16.msra.mxu0 %v112
  %150 = vmatprep.subr.bf16.mxu0 0
  %151 = vmatpush1.bf16.msra.mxu0 %v111
  %152 = vmatprep.subr.bf16.mxu0 0
  %153 = vmatpush2.bf16.msra.mxu0 0
  %154 = vmatprep.subr.bf16.mxu0 0
  %155 = vmatpush2.bf16.msra.mxu0 0
  %156 = vmatprep.subr.bf16.mxu0 0
  %157 = vmatpush2.bf16.msra.mxu0 0
  %158 = vmatprep.subr.bf16.mxu0 0
  %159 = vmatpush2.bf16.msra.mxu0 0
  %160 = vmatprep.subr.bf16.mxu0 0
  %161 = vmatpush2.bf16.msra.mxu0 0
  %162 = vmatprep.subr.bf16.mxu0 0
  %163 = vmatpush2.bf16.msra.mxu0 0
  %164 = vmatprep.subr.bf16.mxu0 0
  %165 = vmatpush2.bf16.msra.mxu0 0
  %166 = vmatprep.subr.bf16.mxu0 0
  %167 = vmatpush2.bf16.msra.mxu0 %v119
  %168 = vmatprep.mubr.bf16.mxu0 %v131
  %169 = vmatmul.mubr.bf16.gmra.mxu0 %v69
  %v170 = vpop.f32.mrf.mxu0
  %v171 = vadd.f32 0.0, %v170
  %v172 = vpop.f32.mrf.mxu0
  %v173 = vpop.f32.mrf.mxu0
  %v174 = vadd.f32 0.0, %v173
  %v175 = vpop.f32.mrf.mxu0
  %176 = vmatprep.mubr.bf16.mxu0 %v134
  %177 = vmatmul.mubr.bf16.gmra.mxu0 %v71
  %v178 = vpop.f32.mrf.mxu0
  %v179 = vadd.f32 0.0, %v178
  %v180 = vpop.f32.mrf.mxu0
  %v181 = vpop.f32.mrf.mxu0
  %v182 = vadd.f32 0.0, %v181
  %v183 = vpop.f32.mrf.mxu0
  %184 = vdwg.mxu0
  %v185 = vadd.f32 %v31, %v171
  %v186 = vadd.f32 %v32, %v174
  %v187 = vadd.f32 %v33, %v179
  %v188 = vadd.f32 %v34, %v182
  %vm189 = vcmask 261120
  %190 = vst.msk [vmem:[#allocation2] sm:$0xff] %vm189, %v185
  %191 = vst.msk [vmem:[#allocation2 + $0x8] sm:$0xff] %vm189, %v186
  %192 = vst.msk [vmem:[#allocation2 + $0x10] sm:$0xff] %vm189, %v187
  %193 = vst.msk [vmem:[#allocation2 + $0x18] sm:$0xff] %vm189, %v188
  // Predicated region
  $region18: #{cobnet_forward.10} parent=0 // pred_check
    %p194 = pneg %p15
  $region19: #{cobnet_forward.10} parent=0 // pred_check_branch
    %196 = sbr.rel (%p194) target = $region21
  $region20: #{cobnet_forward.10} parent=0 // pred_region
    %v197 = vld [vmem:[#allocation2] sm:$0xff]
    %v198 = vld [vmem:[#allocation2 + $0x8] sm:$0xff]
    %v199 = vld [vmem:[#allocation2 + $0x10] sm:$0xff]
    %v200 = vld [vmem:[#allocation2 + $0x18] sm:$0xff]
    %v201 = vmax.f32 %v197, 0.0
    %v202 = vmax.f32 %v198, 0.0
    %v203 = vmax.f32 %v199, 0.0
    %v204 = vmax.f32 %v200, 0.0
    %v205 = vpack.c.bf16 %v202, %v201
    %v206 = vpack.c.bf16 %v204, %v203
    %v209 = vunpack.c.l.b16 %v205
    %v210 = vunpack.c.h.b16 %v205
    %v211 = vunpack.c.l.b16 %v206
    %v212 = vunpack.c.h.b16 %v206
    %v213 = vpack.c.b16 %v209, %v209
    %v214 = vpack.c.b16 %v210, %v210
    %v215 = vpack.c.b16 %v211, %v211
    %v216 = vpack.c.b16 %v212, %v212
    %vm221 = vcmask 257024
    %222 = vst.msk [vmem:[%s3] sm:$0xf] %vm221, %v213
    %223 = vst.msk [vmem:[%s3 + $0x4] sm:$0xf] %vm221, %v214
    %224 = vst.msk [vmem:[%s3 + $0x8] sm:$0xf] %vm221, %v215
    %225 = vst.msk [vmem:[%s3 + $0xc] sm:$0xf] %vm221, %v216
  $region21: #{cobnet_forward.10} parent=0 // pred_fallthru
    _
  // Predicated region
  $region22: #{cobnet_forward.10} parent=0 // pred_check
    _
  $region23: #{cobnet_forward.10} parent=0 // pred_check_branch
    %227 = sbr.rel (0) target = $region25
  $region24: #{cobnet_forward.10} parent=0 // pred_region
    _
  $region25: #{cobnet_forward.10} parent=0 // pred_fallthru
    _
  // Predicated region
  $region26: #{cobnet_forward.10} parent=0 // pred_check
    _
  $region27: #{cobnet_forward.10} parent=0 // pred_check_branch
    %229 = sbr.rel (0) target = $region29
  $region28: #{cobnet_forward.10} parent=0 // pred_region
    _
  $region29: #{cobnet_forward.10} parent=0 // pred_fallthru
    _

// kernel: cobnet_forward.11
$region0: #{cobnet_forward.11}
  #allocation0 [shape = 'u32[]', space=smem, size = 0x4, offset = 0x4, fixed_abs, tag = 'smem constant byte address 0x4 - core index']
  #allocation1 [shape = 'u32[144,128]{1,0:T(1,128)}', space=vmem, size = 0x12000, scoped, tag = 'internal scratch']
  #allocation2 [shape = 'f32[8,32]{1,0:T(8,128)}', space=vmem, size = 0x1000, scoped, tag = 'scratch operand']
  %s0 = inlined_call_operand.vmem [shape: bf16[8,288], index: 0, kind: input, shape index: {}]
  %s1 = inlined_call_operand.vmem [shape: bf16[288,32], index: 1, kind: input, shape index: {}]
  %s2 = inlined_call_operand.vmem [shape: f32[1,32], index: 2, kind: input, shape index: {}]
  %s3 = inlined_call_operand.vmem [shape: bf16[8,32], index: 3, kind: output, shape index: {}]
  %s4 = sld [smem:[#allocation0]]
  $region30: #{cobnet_forward.11} parent=0
    _
  %s6 = ssub.s32 1, %s4
  %s7 = scalar_select 0, %s6, %s4
  // Predicated region
  $region2: #{cobnet_forward.11} parent=0 // pred_check
    _
  $region3: #{cobnet_forward.11} parent=0 // pred_check_branch
    %9 = sbr.rel (0) target = $region5
  $region4: #{cobnet_forward.11} parent=0 // pred_region
    _
  $region5: #{cobnet_forward.11} parent=0 // pred_fallthru
    _
  // Predicated region
  $region6: #{cobnet_forward.11} parent=0 // pred_check
    _
  $region7: #{cobnet_forward.11} parent=0 // pred_check_branch
    %11 = sbr.rel (0) target = $region9
  $region8: #{cobnet_forward.11} parent=0 // pred_region
    _
  $region9: #{cobnet_forward.11} parent=0 // pred_fallthru
    _
  // Predicated region
  $region10: #{cobnet_forward.11} parent=0 // pred_check
    _
  $region11: #{cobnet_forward.11} parent=0 // pred_check_branch
    %13 = sbr.rel (0) target = $region13
  $region12: #{cobnet_forward.11} parent=0 // pred_region
    _
  $region13: #{cobnet_forward.11} parent=0 // pred_fallthru
    _
  %p15 = scmp.eq.s32.totalorder 0, 0
  // Predicated region
  $region14: #{cobnet_forward.11} parent=0 // pred_check
    %p16 = pneg %p15
  $region15: #{cobnet_forward.11} parent=0 // pred_check_branch
    %18 = sbr.rel (%p16) target = $region17
  $region16: #{cobnet_forward.11} parent=0 // pred_region
    %v19 = vld [vmem:[%s2] sm:$0x1]
    %v21 = vlaneseq
    %v22 = vshrl.u32 %v21, 7
    %v23 = vsub.s32 0, %v22
    %v24 = vrot.slane %v19, %v23
    %vm26 = vcmask 261120
    %27 = vst.msk [vmem:[#allocation2] sm:$0xff] %vm26, %v24
  $region17: #{cobnet_forward.11} parent=0 // pred_fallthru
    _
  %v28 = vld [vmem:[#allocation2] sm:$0xff]
  %v29 = vld [vmem:[%s0] sm:$0xff]
  %v30 = vld [vmem:[%s0 + $0x8] sm:$0xf]
  %v31 = vld [vmem:[%s1] sm:$0xf]
  %v32 = vld [vmem:[%s1 + $0x4] sm:$0xf]
  %v33 = vld [vmem:[%s1 + $0x8] sm:$0xf]
  %v34 = vld [vmem:[%s1 + $0xc] sm:$0xf]
  %v35 = vld [vmem:[%s1 + $0x10] sm:$0xf]
  %v36 = vld [vmem:[%s1 + $0x14] sm:$0xf]
  %v37 = vld [vmem:[%s1 + $0x18] sm:$0xf]
  %v38 = vld [vmem:[%s1 + $0x1c] sm:$0xf]
  %v39 = vld [vmem:[%s1 + $0x20] sm:$0xf]
  %v40 = vld [vmem:[%s1 + $0x24] sm:$0xf]
  %v41 = vld [vmem:[%s1 + $0x28] sm:$0xf]
  %v42 = vld [vmem:[%s1 + $0x2c] sm:$0xf]
  %v43 = vld [vmem:[%s1 + $0x30] sm:$0xf]
  %v44 = vld [vmem:[%s1 + $0x34] sm:$0xf]
  %v45 = vld [vmem:[%s1 + $0x38] sm:$0xf]
  %v46 = vld [vmem:[%s1 + $0x3c] sm:$0xf]
  %v47 = vld [vmem:[%s1 + $0x40] sm:$0xf]
  %v48 = vld [vmem:[%s1 + $0x44] sm:$0xf]
  %v49 = vld [vmem:[%s1 + $0x48] sm:$0xf]
  %v50 = vld [vmem:[%s1 + $0x4c] sm:$0xf]
  %v51 = vld [vmem:[%s1 + $0x50] sm:$0xf]
  %v52 = vld [vmem:[%s1 + $0x54] sm:$0xf]
  %v53 = vld [vmem:[%s1 + $0x58] sm:$0xf]
  %v54 = vld [vmem:[%s1 + $0x5c] sm:$0xf]
  %v55 = vld [vmem:[%s1 + $0x60] sm:$0xf]
  %v56 = vld [vmem:[%s1 + $0x64] sm:$0xf]
  %v57 = vld [vmem:[%s1 + $0x68] sm:$0xf]
  %v58 = vld [vmem:[%s1 + $0x6c] sm:$0xf]
  %v59 = vld [vmem:[%s1 + $0x70] sm:$0xf]
  %v60 = vld [vmem:[%s1 + $0x74] sm:$0xf]
  %v61 = vld [vmem:[%s1 + $0x78] sm:$0xf]
  %v62 = vld [vmem:[%s1 + $0x7c] sm:$0xf]
  %v63 = vld [vmem:[%s1 + $0x80] sm:$0xf]
  %v64 = vld [vmem:[%s1 + $0x84] sm:$0xf]
  %v65 = vld [vmem:[%s1 + $0x88] sm:$0xf]
  %v66 = vld [vmem:[%s1 + $0x8c] sm:$0xf]
  %v69 = vunpack.c.l.b16 %v29
  %v70 = vunpack.c.h.b16 %v29
  %v71 = vunpack.c.l.b16 %v30
  %v72 = vpack.c.b16 %v69, %v69
  %v73 = vpack.c.b16 %v70, %v70
  %v74 = vpack.c.b16 %v71, %v71
  %v113 = vunpack.c.l.b16 %v31
  %v114 = vunpack.c.l.b16 %v32
  %v115 = vunpack.c.l.b16 %v33
  %v116 = vunpack.c.l.b16 %v34
  %v117 = vunpack.c.l.b16 %v35
  %v118 = vunpack.c.l.b16 %v36
  %v119 = vunpack.c.l.b16 %v37
  %v120 = vunpack.c.l.b16 %v38
  %v121 = vunpack.c.l.b16 %v39
  %v122 = vunpack.c.l.b16 %v40
  %v123 = vunpack.c.l.b16 %v41
  %v124 = vunpack.c.l.b16 %v42
  %v125 = vunpack.c.l.b16 %v43
  %v126 = vunpack.c.l.b16 %v44
  %v127 = vunpack.c.l.b16 %v45
  %v128 = vunpack.c.l.b16 %v46
  %v129 = vunpack.c.l.b16 %v47
  %v130 = vunpack.c.l.b16 %v48
  %v131 = vunpack.c.l.b16 %v49
  %v132 = vunpack.c.l.b16 %v50
  %v133 = vunpack.c.l.b16 %v51
  %v134 = vunpack.c.l.b16 %v52
  %v135 = vunpack.c.l.b16 %v53
  %v136 = vunpack.c.l.b16 %v54
  %v137 = vunpack.c.l.b16 %v55
  %v138 = vunpack.c.l.b16 %v56
  %v139 = vunpack.c.l.b16 %v57
  %v140 = vunpack.c.l.b16 %v58
  %v141 = vunpack.c.l.b16 %v59
  %v142 = vunpack.c.l.b16 %v60
  %v143 = vunpack.c.l.b16 %v61
  %v144 = vunpack.c.l.b16 %v62
  %v145 = vunpack.c.l.b16 %v63
  %v146 = vunpack.c.l.b16 %v64
  %v147 = vunpack.c.l.b16 %v65
  %v148 = vunpack.c.l.b16 %v66
  %v149 = vpack.c.b16 %v114, %v113
  %v150 = vpack.c.b16 %v116, %v115
  %v151 = vpack.c.b16 %v118, %v117
  %v152 = vpack.c.b16 %v120, %v119
  %v153 = vpack.c.b16 %v122, %v121
  %v154 = vpack.c.b16 %v124, %v123
  %v155 = vpack.c.b16 %v126, %v125
  %v156 = vpack.c.b16 %v128, %v127
  %v157 = vpack.c.b16 %v130, %v129
  %v158 = vpack.c.b16 %v132, %v131
  %v159 = vpack.c.b16 %v134, %v133
  %v160 = vpack.c.b16 %v136, %v135
  %v161 = vpack.c.b16 %v138, %v137
  %v162 = vpack.c.b16 %v140, %v139
  %v163 = vpack.c.b16 %v142, %v141
  %v164 = vpack.c.b16 %v144, %v143
  %v165 = vpack.c.b16 %v146, %v145
  %v166 = vpack.c.b16 %v148, %v147
  %vm185 = vcmask 261120
  %v187 = vsel %vm185, %v74, 0
  %189 = vmatprep.subr.bf16.mxu0 0
  %190 = vmatpush1.bf16.msra.mxu0 %v156
  %191 = vmatprep.subr.bf16.mxu0 0
  %192 = vmatpush1.bf16.msra.mxu0 %v155
  %193 = vmatprep.subr.bf16.mxu0 0
  %194 = vmatpush1.bf16.msra.mxu0 %v154
  %195 = vmatprep.subr.bf16.mxu0 0
  %196 = vmatpush1.bf16.msra.mxu0 %v153
  %197 = vmatprep.subr.bf16.mxu0 0
  %198 = vmatpush1.bf16.msra.mxu0 %v152
  %199 = vmatprep.subr.bf16.mxu0 0
  %200 = vmatpush1.bf16.msra.mxu0 %v151
  %201 = vmatprep.subr.bf16.mxu0 0
  %202 = vmatpush1.bf16.msra.mxu0 %v150
  %203 = vmatprep.subr.bf16.mxu0 0
  %204 = vmatpush1.bf16.msra.mxu0 %v149
  %205 = vmatprep.subr.bf16.mxu0 0
  %206 = vmatpush2.bf16.msra.mxu0 %v164
  %207 = vmatprep.subr.bf16.mxu0 0
  %208 = vmatpush2.bf16.msra.mxu0 %v163
  %209 = vmatprep.subr.bf16.mxu0 0
  %210 = vmatpush2.bf16.msra.mxu0 %v162
  %211 = vmatprep.subr.bf16.mxu0 0
  %212 = vmatpush2.bf16.msra.mxu0 %v161
  %213 = vmatprep.subr.bf16.mxu0 0
  %214 = vmatpush2.bf16.msra.mxu0 %v160
  %215 = vmatprep.subr.bf16.mxu0 0
  %216 = vmatpush2.bf16.msra.mxu0 %v159
  %217 = vmatprep.subr.bf16.mxu0 0
  %218 = vmatpush2.bf16.msra.mxu0 %v158
  %219 = vmatprep.subr.bf16.mxu0 0
  %220 = vmatpush2.bf16.msra.mxu0 %v157
  %221 = vmatprep.mubr.bf16.mxu0 %v73
  %222 = vmatmul.mubr.bf16.gmra.mxu0 %v72
  %v223 = vpop.f32.mrf.mxu0
  %v224 = vadd.f32 0.0, %v223
  %v225 = vpop.f32.mrf.mxu0
  %v226 = vpop.f32.mrf.mxu0
  %v227 = vpop.f32.mrf.mxu0
  %228 = vdwg.mxu0
  %229 = vmatprep.subr.bf16.mxu0 0
  %230 = vmatpush1.bf16.msra.mxu0 0
  %231 = vmatprep.subr.bf16.mxu0 0
  %232 = vmatpush1.bf16.msra.mxu0 0
  %233 = vmatprep.subr.bf16.mxu0 0
  %234 = vmatpush1.bf16.msra.mxu0 0
  %235 = vmatprep.subr.bf16.mxu0 0
  %236 = vmatpush1.bf16.msra.mxu0 0
  %237 = vmatprep.subr.bf16.mxu0 0
  %238 = vmatpush1.bf16.msra.mxu0 0
  %239 = vmatprep.subr.bf16.mxu0 0
  %240 = vmatpush1.bf16.msra.mxu0 0
  %241 = vmatprep.subr.bf16.mxu0 0
  %242 = vmatpush1.bf16.msra.mxu0 %v166
  %243 = vmatprep.subr.bf16.mxu0 0
  %244 = vmatpush1.bf16.msra.mxu0 %v165
  %245 = vmatprep.subr.bf16.mxu0 0
  %246 = vmatpush2.bf16.msra.mxu0 0
  %247 = vmatprep.subr.bf16.mxu0 0
  %248 = vmatpush2.bf16.msra.mxu0 0
  %249 = vmatprep.subr.bf16.mxu0 0
  %250 = vmatpush2.bf16.msra.mxu0 0
  %251 = vmatprep.subr.bf16.mxu0 0
  %252 = vmatpush2.bf16.msra.mxu0 0
  %253 = vmatprep.subr.bf16.mxu0 0
  %254 = vmatpush2.bf16.msra.mxu0 0
  %255 = vmatprep.subr.bf16.mxu0 0
  %256 = vmatpush2.bf16.msra.mxu0 0
  %257 = vmatprep.subr.bf16.mxu0 0
  %258 = vmatpush2.bf16.msra.mxu0 0
  %259 = vmatprep.subr.bf16.mxu0 0
  %260 = vmatpush2.bf16.msra.mxu0 0
  %261 = vmatprep.mubr.bf16.mxu0 0
  %262 = vmatmul.mubr.bf16.gmra.mxu0 %v187
  %v263 = vpop.f32.mrf.mxu0
  %v264 = vadd.f32 %v224, %v263
  %v265 = vpop.f32.mrf.mxu0
  %v266 = vpop.f32.mrf.mxu0
  %v267 = vpop.f32.mrf.mxu0
  %268 = vdwg.mxu0
  %v269 = vadd.f32 %v28, %v264
  %270 = vst.msk [vmem:[#allocation2] sm:$0xff] %vm185, %v269
  // Predicated region
  $region18: #{cobnet_forward.11} parent=0 // pred_check
    %p271 = pneg %p15
  $region19: #{cobnet_forward.11} parent=0 // pred_check_branch
    %273 = sbr.rel (%p271) target = $region21
  $region20: #{cobnet_forward.11} parent=0 // pred_region
    %v274 = vld [vmem:[#allocation2] sm:$0xff]
    %v275 = vmax.f32 %v274, 0.0
    %v276 = vpack.c.bf16 %v275, %v275
    %vm277 = vcmask 257024
    %278 = vst.msk [vmem:[%s3] sm:$0xf] %vm277, %v276
  $region21: #{cobnet_forward.11} parent=0 // pred_fallthru
    _
  // Predicated region
  $region22: #{cobnet_forward.11} parent=0 // pred_check
    _
  $region23: #{cobnet_forward.11} parent=0 // pred_check_branch
    %280 = sbr.rel (0) target = $region25
  $region24: #{cobnet_forward.11} parent=0 // pred_region
    _
  $region25: #{cobnet_forward.11} parent=0 // pred_fallthru
    _
  // Predicated region
  $region26: #{cobnet_forward.11} parent=0 // pred_check
    _
  $region27: #{cobnet_forward.11} parent=0 // pred_check_branch
    %282 = sbr.rel (0) target = $region29
  $region28: #{cobnet_forward.11} parent=0 // pred_region
    _
  $region29: #{cobnet_forward.11} parent=0 // pred_fallthru
    _

// kernel: cobnet_forward.12
$region0: #{cobnet_forward.12}
  #allocation0 [shape = 'u32[]', space=smem, size = 0x4, offset = 0x4, fixed_abs, tag = 'smem constant byte address 0x4 - core index']
  #allocation1 [shape = 'u32[144,128]{1,0:T(1,128)}', space=vmem, size = 0x12000, scoped, tag = 'internal scratch']
  #allocation2 [shape = 'f32[1,1]{1,0:T(1,128)S(1)}', space=vmem, size = 0x200, scoped, tag = 'scoped memory for cobnet_forward.12']
  #allocation3 [shape = 'f32[1,1]{1,0:T(1,128)S(1)}', space=vmem, size = 0x200, scoped, tag = 'scoped memory for cobnet_forward.12']
  #allocation4 [shape = 'f32[1,1]{1,0:T(1,128)S(1)}', space=vmem, size = 0x200, scoped, tag = 'scoped memory for cobnet_forward.12']
  #allocation5 [shape = 'f32[1,1]{1,0:T(1,128)S(1)}', space=vmem, size = 0x200, scoped, tag = 'scoped memory for cobnet_forward.12']
  #allocation6 [shape = 'f32[1,1]{1,0:T(1,128)S(1)}', space=vmem, size = 0x200, scoped, tag = 'scoped memory for cobnet_forward.12']
  %s0 = inlined_call_operand.vmem [shape: bf16[16,8,8], index: 0, kind: input, shape index: {}]
  %s1 = inlined_call_operand.vmem [shape: bf16[16,8,16], index: 1, kind: input, shape index: {}]
  %s2 = inlined_call_operand.vmem [shape: bf16[8,4,16], index: 2, kind: input, shape index: {}]
  %s3 = inlined_call_operand.vmem [shape: bf16[8,4,32], index: 3, kind: input, shape index: {}]
  %s4 = inlined_call_operand.vmem [shape: bf16[4,2,32], index: 4, kind: input, shape index: {}]
  %s5 = inlined_call_operand.vmem [shape: f32[1,8], index: 5, kind: input, shape index: {}]
  %s6 = inlined_call_operand.vmem [shape: f32[1,16], index: 6, kind: input, shape index: {}]
  %s7 = inlined_call_operand.vmem [shape: f32[1,16], index: 7, kind: input, shape index: {}]
  %s8 = inlined_call_operand.vmem [shape: f32[1,32], index: 8, kind: input, shape index: {}]
  %s9 = inlined_call_operand.vmem [shape: f32[1,32], index: 9, kind: input, shape index: {}]
  %s10 = inlined_call_operand.<no memory space> [shape: f32[1,1], index: 10, kind: input, shape index: {}]
  %s11 = inlined_call_operand.<no memory space> [shape: f32[1,1], index: 11, kind: input, shape index: {}]
  %s12 = inlined_call_operand.<no memory space> [shape: f32[1,1], index: 12, kind: input, shape index: {}]
  %s13 = inlined_call_operand.<no memory space> [shape: f32[1,1], index: 13, kind: input, shape index: {}]
  %s14 = inlined_call_operand.<no memory space> [shape: f32[1,1], index: 14, kind: input, shape index: {}]
  %s15 = inlined_call_operand.vmem [shape: f32[16,8], index: 15, kind: output, shape index: {0}]
  %s16 = inlined_call_operand.vmem [shape: f32[16,8], index: 16, kind: output, shape index: {1}]
  %s17 = inlined_call_operand.vmem [shape: f32[8,4], index: 17, kind: output, shape index: {2}]
  %s18 = inlined_call_operand.vmem [shape: f32[8,4], index: 18, kind: output, shape index: {3}]
  %s19 = inlined_call_operand.vmem [shape: f32[4,2], index: 19, kind: output, shape index: {4}]
  %20 = xla_tuple %s15, %s16, %s17, %s18, %s19
  %s21 = sld [smem:[#allocation0]]
  $region102: #{cobnet_forward.12} parent=0
    _
  %s23 = ssub.s32 1, %s21
  %s24 = scalar_select 0, %s23, %s21
  %v25 = vstv %s10
  %26 = vst [vmem:[#allocation2] sm:$0x1] %v25
  %v27 = vstv %s11
  %28 = vst [vmem:[#allocation3] sm:$0x1] %v27
  %v29 = vstv %s12
  %30 = vst [vmem:[#allocation4] sm:$0x1] %v29
  %v31 = vstv %s13
  %32 = vst [vmem:[#allocation5] sm:$0x1] %v31
  %v33 = vstv %s14
  %34 = vst [vmem:[#allocation6] sm:$0x1] %v33
  // Predicated region
  $region2: #{cobnet_forward.12} parent=0 // pred_check
    _
  $region3: #{cobnet_forward.12} parent=0 // pred_check_branch
    %36 = sbr.rel (0) target = $region5
  $region4: #{cobnet_forward.12} parent=0 // pred_region
    _
  $region5: #{cobnet_forward.12} parent=0 // pred_fallthru
    _
  // Predicated region
  $region6: #{cobnet_forward.12} parent=0 // pred_check
    _
  $region7: #{cobnet_forward.12} parent=0 // pred_check_branch
    %38 = sbr.rel (0) target = $region9
  $region8: #{cobnet_forward.12} parent=0 // pred_region
    _
  $region9: #{cobnet_forward.12} parent=0 // pred_fallthru
    _
  // Predicated region
  $region10: #{cobnet_forward.12} parent=0 // pred_check
    _
  $region11: #{cobnet_forward.12} parent=0 // pred_check_branch
    %40 = sbr.rel (0) target = $region13
  $region12: #{cobnet_forward.12} parent=0 // pred_region
    _
  $region13: #{cobnet_forward.12} parent=0 // pred_fallthru
    _
  // Predicated region
  $region14: #{cobnet_forward.12} parent=0 // pred_check
    _
  $region15: #{cobnet_forward.12} parent=0 // pred_check_branch
    %42 = sbr.rel (0) target = $region17
  $region16: #{cobnet_forward.12} parent=0 // pred_region
    _
  $region17: #{cobnet_forward.12} parent=0 // pred_fallthru
    _
  // Predicated region
  $region18: #{cobnet_forward.12} parent=0 // pred_check
    _
  $region19: #{cobnet_forward.12} parent=0 // pred_check_branch
    %44 = sbr.rel (0) target = $region21
  $region20: #{cobnet_forward.12} parent=0 // pred_region
    _
  $region21: #{cobnet_forward.12} parent=0 // pred_fallthru
    _
  // Predicated region
  $region22: #{cobnet_forward.12} parent=0 // pred_check
    _
  $region23: #{cobnet_forward.12} parent=0 // pred_check_branch
    %46 = sbr.rel (0) target = $region25
  $region24: #{cobnet_forward.12} parent=0 // pred_region
    _
  $region25: #{cobnet_forward.12} parent=0 // pred_fallthru
    _
  // Predicated region
  $region26: #{cobnet_forward.12} parent=0 // pred_check
    _
  $region27: #{cobnet_forward.12} parent=0 // pred_check_branch
    %48 = sbr.rel (0) target = $region29
  $region28: #{cobnet_forward.12} parent=0 // pred_region
    _
  $region29: #{cobnet_forward.12} parent=0 // pred_fallthru
    _
  // Predicated region
  $region30: #{cobnet_forward.12} parent=0 // pred_check
    _
  $region31: #{cobnet_forward.12} parent=0 // pred_check_branch
    %50 = sbr.rel (0) target = $region33
  $region32: #{cobnet_forward.12} parent=0 // pred_region
    _
  $region33: #{cobnet_forward.12} parent=0 // pred_fallthru
    _
  // Predicated region
  $region34: #{cobnet_forward.12} parent=0 // pred_check
    _
  $region35: #{cobnet_forward.12} parent=0 // pred_check_branch
    %52 = sbr.rel (0) target = $region37
  $region36: #{cobnet_forward.12} parent=0 // pred_region
    _
  $region37: #{cobnet_forward.12} parent=0 // pred_fallthru
    _
  // Predicated region
  $region38: #{cobnet_forward.12} parent=0 // pred_check
    _
  $region39: #{cobnet_forward.12} parent=0 // pred_check_branch
    %54 = sbr.rel (0) target = $region41
  $region40: #{cobnet_forward.12} parent=0 // pred_region
    _
  $region41: #{cobnet_forward.12} parent=0 // pred_fallthru
    _
  // Predicated region
  $region42: #{cobnet_forward.12} parent=0 // pred_check
    _
  $region43: #{cobnet_forward.12} parent=0 // pred_check_branch
    %56 = sbr.rel (0) target = $region45
  $region44: #{cobnet_forward.12} parent=0 // pred_region
    _
  $region45: #{cobnet_forward.12} parent=0 // pred_fallthru
    _
  // Predicated region
  $region46: #{cobnet_forward.12} parent=0 // pred_check
    _
  $region47: #{cobnet_forward.12} parent=0 // pred_check_branch
    %58 = sbr.rel (0) target = $region49
  $region48: #{cobnet_forward.12} parent=0 // pred_region
    _
  $region49: #{cobnet_forward.12} parent=0 // pred_fallthru
    _
  // Predicated region
  $region50: #{cobnet_forward.12} parent=0 // pred_check
    _
  $region51: #{cobnet_forward.12} parent=0 // pred_check_branch
    %60 = sbr.rel (0) target = $region53
  $region52: #{cobnet_forward.12} parent=0 // pred_region
    _
  $region53: #{cobnet_forward.12} parent=0 // pred_fallthru
    _
  // Predicated region
  $region54: #{cobnet_forward.12} parent=0 // pred_check
    _
  $region55: #{cobnet_forward.12} parent=0 // pred_check_branch
    %62 = sbr.rel (0) target = $region57
  $region56: #{cobnet_forward.12} parent=0 // pred_region
    _
  $region57: #{cobnet_forward.12} parent=0 // pred_fallthru
    _
  // Predicated region
  $region58: #{cobnet_forward.12} parent=0 // pred_check
    _
  $region59: #{cobnet_forward.12} parent=0 // pred_check_branch
    %64 = sbr.rel (0) target = $region61
  $region60: #{cobnet_forward.12} parent=0 // pred_region
    _
  $region61: #{cobnet_forward.12} parent=0 // pred_fallthru
    _
  %v65 = vld [vmem:[%s0] sm:$0xf]
  %v66 = vld [vmem:[%s0 + $0x4] sm:$0xf]
  %v67 = vld [vmem:[%s0 + $0x8] sm:$0xf]
  %v68 = vld [vmem:[%s0 + $0xc] sm:$0xf]
  %v69 = vld [vmem:[%s0 + $0x10] sm:$0xf]
  %v70 = vld [vmem:[%s0 + $0x14] sm:$0xf]
  %v71 = vld [vmem:[%s0 + $0x18] sm:$0xf]
  %v72 = vld [vmem:[%s0 + $0x1c] sm:$0xf]
  %v73 = vld [vmem:[%s0 + $0x20] sm:$0xf]
  %v74 = vld [vmem:[%s0 + $0x24] sm:$0xf]
  %v75 = vld [vmem:[%s0 + $0x28] sm:$0xf]
  %v76 = vld [vmem:[%s0 + $0x2c] sm:$0xf]
  %v77 = vld [vmem:[%s0 + $0x30] sm:$0xf]
  %v78 = vld [vmem:[%s0 + $0x34] sm:$0xf]
  %v79 = vld [vmem:[%s0 + $0x38] sm:$0xf]
  %v80 = vld [vmem:[%s0 + $0x3c] sm:$0xf]
  %v81 = vunpack.c.l.bf16 %v65
  %v82 = vunpack.c.l.bf16 %v66
  %v83 = vunpack.c.l.bf16 %v67
  %v84 = vunpack.c.l.bf16 %v68
  %v85 = vunpack.c.l.bf16 %v69
  %v86 = vunpack.c.l.bf16 %v70
  %v87 = vunpack.c.l.bf16 %v71
  %v88 = vunpack.c.l.bf16 %v72
  %v89 = vunpack.c.l.bf16 %v73
  %v90 = vunpack.c.l.bf16 %v74
  %v91 = vunpack.c.l.bf16 %v75
  %v92 = vunpack.c.l.bf16 %v76
  %v93 = vunpack.c.l.bf16 %v77
  %v94 = vunpack.c.l.bf16 %v78
  %v95 = vunpack.c.l.bf16 %v79
  %v96 = vunpack.c.l.bf16 %v80
  %v97 = vld [vmem:[%s5] sm:$0x1]
  %v99 = vlaneseq
  %v100 = vshrl.u32 %v99, 7
  %v101 = vsub.s32 0, %v100
  %v102 = vrot.slane %v97, %v101
  %v104 = vmul.f32 %v81, %v102
  %v105 = vmul.f32 %v82, %v102
  %v106 = vmul.f32 %v83, %v102
  %v107 = vmul.f32 %v84, %v102
  %v108 = vmul.f32 %v85, %v102
  %v109 = vmul.f32 %v86, %v102
  %v110 = vmul.f32 %v87, %v102
  %v111 = vmul.f32 %v88, %v102
  %v112 = vmul.f32 %v89, %v102
  %v113 = vmul.f32 %v90, %v102
  %v114 = vmul.f32 %v91, %v102
  %v115 = vmul.f32 %v92, %v102
  %v116 = vmul.f32 %v93, %v102
  %v117 = vmul.f32 %v94, %v102
  %v118 = vmul.f32 %v95, %v102
  %v119 = vmul.f32 %v96, %v102
  %vm120 = vcmask 64512
  %v121 = vsel %vm120, %v104, 0.0
  %122 = vadd.xlane.f32.xlu0 %v121
  %v123 = vpop.xlane.xlu0 %122
  %v124 = vsel %vm120, %v105, 0.0
  %125 = vadd.xlane.f32.xlu0 %v124
  %v126 = vpop.xlane.xlu0 %125
  %v127 = vsel %vm120, %v106, 0.0
  %128 = vadd.xlane.f32.xlu0 %v127
  %v129 = vpop.xlane.xlu0 %128
  %v130 = vsel %vm120, %v107, 0.0
  %131 = vadd.xlane.f32.xlu0 %v130
  %v132 = vpop.xlane.xlu0 %131
  %v133 = vsel %vm120, %v108, 0.0
  %134 = vadd.xlane.f32.xlu0 %v133
  %v135 = vpop.xlane.xlu0 %134
  %v136 = vsel %vm120, %v109, 0.0
  %137 = vadd.xlane.f32.xlu0 %v136
  %v138 = vpop.xlane.xlu0 %137
  %v139 = vsel %vm120, %v110, 0.0
  %140 = vadd.xlane.f32.xlu0 %v139
  %v141 = vpop.xlane.xlu0 %140
  %v142 = vsel %vm120, %v111, 0.0
  %143 = vadd.xlane.f32.xlu0 %v142
  %v144 = vpop.xlane.xlu0 %143
  %v145 = vsel %vm120, %v112, 0.0
  %146 = vadd.xlane.f32.xlu0 %v145
  %v147 = vpop.xlane.xlu0 %146
  %v148 = vsel %vm120, %v113, 0.0
  %149 = vadd.xlane.f32.xlu0 %v148
  %v150 = vpop.xlane.xlu0 %149
  %v151 = vsel %vm120, %v114, 0.0
  %152 = vadd.xlane.f32.xlu0 %v151
  %v153 = vpop.xlane.xlu0 %152
  %v154 = vsel %vm120, %v115, 0.0
  %155 = vadd.xlane.f32.xlu0 %v154
  %v156 = vpop.xlane.xlu0 %155
  %v157 = vsel %vm120, %v116, 0.0
  %158 = vadd.xlane.f32.xlu0 %v157
  %v159 = vpop.xlane.xlu0 %158
  %v160 = vsel %vm120, %v117, 0.0
  %161 = vadd.xlane.f32.xlu0 %v160
  %v162 = vpop.xlane.xlu0 %161
  %v163 = vsel %vm120, %v118, 0.0
  %164 = vadd.xlane.f32.xlu0 %v163
  %v165 = vpop.xlane.xlu0 %164
  %v166 = vsel %vm120, %v119, 0.0
  %167 = vadd.xlane.f32.xlu0 %v166
  %v168 = vpop.xlane.xlu0 %167
  %v169 = vld [vmem:[#allocation2] sm:$0x1]
  %v171 = vlaneseq
  %v172 = vshrl.u32 %v171, 7
  %v173 = vsub.s32 0, %v172
  %v174 = vrot.slane %v169, %v173
  %175 = vset.pattern.permute.xlu0 0
  %176 = vperm.xlu0 %175, %v174
  %v177 = vpop.permute.xlu0 %176
  %v179 = vadd.f32 %v123, %v177
  %v180 = vadd.f32 %v126, %v177
  %v181 = vadd.f32 %v129, %v177
  %v182 = vadd.f32 %v132, %v177
  %v183 = vadd.f32 %v135, %v177
  %v184 = vadd.f32 %v138, %v177
  %v185 = vadd.f32 %v141, %v177
  %v186 = vadd.f32 %v144, %v177
  %v187 = vadd.f32 %v147, %v177
  %v188 = vadd.f32 %v150, %v177
  %v189 = vadd.f32 %v153, %v177
  %v190 = vadd.f32 %v156, %v177
  %v191 = vadd.f32 %v159, %v177
  %v192 = vadd.f32 %v162, %v177
  %v193 = vadd.f32 %v165, %v177
  %v194 = vadd.f32 %v168, %v177
  %v195 = vxor.u32 %v179, 2147483648
  %v196 = vxor.u32 %v180, 2147483648
  %v197 = vxor.u32 %v181, 2147483648
  %v198 = vxor.u32 %v182, 2147483648
  %v199 = vxor.u32 %v183, 2147483648
  %v200 = vxor.u32 %v184, 2147483648
  %v201 = vxor.u32 %v185, 2147483648
  %v202 = vxor.u32 %v186, 2147483648
  %v203 = vxor.u32 %v187, 2147483648
  %v204 = vxor.u32 %v188, 2147483648
  %v205 = vxor.u32 %v189, 2147483648
  %v206 = vxor.u32 %v190, 2147483648
  %v207 = vxor.u32 %v191, 2147483648
  %v208 = vxor.u32 %v192, 2147483648
  %v209 = vxor.u32 %v193, 2147483648
  %v210 = vxor.u32 %v194, 2147483648
  %v211 = vmul.f32 %v195, 1.442695
  %v212 = vpow.pop %v211
  %v213 = vmul.f32 %v196, 1.442695
  %v214 = vpow.pop %v213
  %v215 = vmul.f32 %v197, 1.442695
  %v216 = vpow.pop %v215
  %v217 = vmul.f32 %v198, 1.442695
  %v218 = vpow.pop %v217
  %v219 = vmul.f32 %v199, 1.442695
  %v220 = vpow.pop %v219
  %v221 = vmul.f32 %v200, 1.442695
  %v222 = vpow.pop %v221
  %v223 = vmul.f32 %v201, 1.442695
  %v224 = vpow.pop %v223
  %v225 = vmul.f32 %v202, 1.442695
  %v226 = vpow.pop %v225
  %v227 = vmul.f32 %v203, 1.442695
  %v228 = vpow.pop %v227
  %v229 = vmul.f32 %v204, 1.442695
  %v230 = vpow.pop %v229
  %v231 = vmul.f32 %v205, 1.442695
  %v232 = vpow.pop %v231
  %v233 = vmul.f32 %v206, 1.442695
  %v234 = vpow.pop %v233
  %v235 = vmul.f32 %v207, 1.442695
  %v236 = vpow.pop %v235
  %v237 = vmul.f32 %v208, 1.442695
  %v238 = vpow.pop %v237
  %v239 = vmul.f32 %v209, 1.442695
  %v240 = vpow.pop %v239
  %v241 = vmul.f32 %v210, 1.442695
  %v242 = vpow.pop %v241
  %v243 = vadd.f32 %v212, 1.0
  %v244 = vadd.f32 %v214, 1.0
  %v245 = vadd.f32 %v216, 1.0
  %v246 = vadd.f32 %v218, 1.0
  %v247 = vadd.f32 %v220, 1.0
  %v248 = vadd.f32 %v222, 1.0
  %v249 = vadd.f32 %v224, 1.0
  %v250 = vadd.f32 %v226, 1.0
  %v251 = vadd.f32 %v228, 1.0
  %v252 = vadd.f32 %v230, 1.0
  %v253 = vadd.f32 %v232, 1.0
  %v254 = vadd.f32 %v234, 1.0
  %v255 = vadd.f32 %v236, 1.0
  %v256 = vadd.f32 %v238, 1.0
  %v257 = vadd.f32 %v240, 1.0
  %v258 = vadd.f32 %v242, 1.0
  %v259 = vrcp.pop %v243
  %v260 = vmul.f32 1.0, %v259
  %v261 = vrcp.pop %v244
  %v262 = vmul.f32 1.0, %v261
  %v263 = vrcp.pop %v245
  %v264 = vmul.f32 1.0, %v263
  %v265 = vrcp.pop %v246
  %v266 = vmul.f32 1.0, %v265
  %v267 = vrcp.pop %v247
  %v268 = vmul.f32 1.0, %v267
  %v269 = vrcp.pop %v248
  %v270 = vmul.f32 1.0, %v269
  %v271 = vrcp.pop %v249
  %v272 = vmul.f32 1.0, %v271
  %v273 = vrcp.pop %v250
  %v274 = vmul.f32 1.0, %v273
  %v275 = vrcp.pop %v251
  %v276 = vmul.f32 1.0, %v275
  %v277 = vrcp.pop %v252
  %v278 = vmul.f32 1.0, %v277
  %v279 = vrcp.pop %v253
  %v280 = vmul.f32 1.0, %v279
  %v281 = vrcp.pop %v254
  %v282 = vmul.f32 1.0, %v281
  %v283 = vrcp.pop %v255
  %v284 = vmul.f32 1.0, %v283
  %v285 = vrcp.pop %v256
  %v286 = vmul.f32 1.0, %v285
  %v287 = vrcp.pop %v257
  %v288 = vmul.f32 1.0, %v287
  %v289 = vrcp.pop %v258
  %v290 = vmul.f32 1.0, %v289
  %v307 = vlaneseq
  %v308 = vand.u32 %v307, 127
  %v309 = vlaneseq
  %v310 = vshrl.u32 %v309, 7
  %v311 = vsub.s32 %v308, %v310
  %v312 = vrot.slane %v260, %v311
  %v313 = vlaneseq
  %v314 = vshrl.u32 %v313, 7
  %v315 = vsub.s32 %v308, %v314
  %v316 = vrot.slane %v262, %v315
  %v317 = vlaneseq
  %v318 = vshrl.u32 %v317, 7
  %v319 = vsub.s32 %v308, %v318
  %v320 = vrot.slane %v264, %v319
  %v321 = vlaneseq
  %v322 = vshrl.u32 %v321, 7
  %v323 = vsub.s32 %v308, %v322
  %v324 = vrot.slane %v266, %v323
  %v325 = vlaneseq
  %v326 = vshrl.u32 %v325, 7
  %v327 = vsub.s32 %v308, %v326
  %v328 = vrot.slane %v268, %v327
  %v329 = vlaneseq
  %v330 = vshrl.u32 %v329, 7
  %v331 = vsub.s32 %v308, %v330
  %v332 = vrot.slane %v270, %v331
  %v333 = vlaneseq
  %v334 = vshrl.u32 %v333, 7
  %v335 = vsub.s32 %v308, %v334
  %v336 = vrot.slane %v272, %v335
  %v337 = vlaneseq
  %v338 = vshrl.u32 %v337, 7
  %v339 = vsub.s32 %v308, %v338
  %v340 = vrot.slane %v274, %v339
  %v341 = vlaneseq
  %v342 = vshrl.u32 %v341, 7
  %v343 = vsub.s32 %v308, %v342
  %v344 = vrot.slane %v276, %v343
  %v345 = vlaneseq
  %v346 = vshrl.u32 %v345, 7
  %v347 = vsub.s32 %v308, %v346
  %v348 = vrot.slane %v278, %v347
  %v349 = vlaneseq
  %v350 = vshrl.u32 %v349, 7
  %v351 = vsub.s32 %v308, %v350
  %v352 = vrot.slane %v280, %v351
  %v353 = vlaneseq
  %v354 = vshrl.u32 %v353, 7
  %v355 = vsub.s32 %v308, %v354
  %v356 = vrot.slane %v282, %v355
  %v357 = vlaneseq
  %v358 = vshrl.u32 %v357, 7
  %v359 = vsub.s32 %v308, %v358
  %v360 = vrot.slane %v284, %v359
  %v361 = vlaneseq
  %v362 = vshrl.u32 %v361, 7
  %v363 = vsub.s32 %v308, %v362
  %v364 = vrot.slane %v286, %v363
  %v365 = vlaneseq
  %v366 = vshrl.u32 %v365, 7
  %v367 = vsub.s32 %v308, %v366
  %v368 = vrot.slane %v288, %v367
  %v369 = vlaneseq
  %v370 = vshrl.u32 %v369, 7
  %v371 = vsub.s32 %v308, %v370
  %v372 = vrot.slane %v290, %v371
  %vm373 = vcmask 1041409
  %v374 = vsel %vm373, %v316, %v312
  %vm375 = vcmask 1042434
  %v376 = vsel %vm375, %v320, %v374
  %vm377 = vcmask 1043459
  %v378 = vsel %vm377, %v324, %v376
  %vm379 = vcmask 1044484
  %v380 = vsel %vm379, %v328, %v378
  %vm381 = vcmask 1045509
  %v382 = vsel %vm381, %v332, %v380
  %vm383 = vcmask 1046534
  %v384 = vsel %vm383, %v336, %v382
  %vm385 = vcmask 1047559
  %v386 = vsel %vm385, %v340, %v384
  %v387 = vsel %vm373, %v348, %v344
  %v388 = vsel %vm375, %v352, %v387
  %v389 = vsel %vm377, %v356, %v388
  %v390 = vsel %vm379, %v360, %v389
  %v391 = vsel %vm381, %v364, %v390
  %v392 = vsel %vm383, %v368, %v391
  %v393 = vsel %vm385, %v372, %v392
  %396 = vst.msk [vmem:[%s15] sm:$0xff] %vm120, %v386
  %397 = vst.msk [vmem:[%s15 + $0x8] sm:$0xff] %vm120, %v393
  %v398 = vld [vmem:[%s1] sm:$0xf]
  %v399 = vld [vmem:[%s1 + $0x4] sm:$0xf]
  %v400 = vld [vmem:[%s1 + $0x8] sm:$0xf]
  %v401 = vld [vmem:[%s1 + $0xc] sm:$0xf]
  %v402 = vld [vmem:[%s1 + $0x10] sm:$0xf]
  %v403 = vld [vmem:[%s1 + $0x14] sm:$0xf]
  %v404 = vld [vmem:[%s1 + $0x18] sm:$0xf]
  %v405 = vld [vmem:[%s1 + $0x1c] sm:$0xf]
  %v406 = vld [vmem:[%s1 + $0x20] sm:$0xf]
  %v407 = vld [vmem:[%s1 + $0x24] sm:$0xf]
  %v408 = vld [vmem:[%s1 + $0x28] sm:$0xf]
  %v409 = vld [vmem:[%s1 + $0x2c] sm:$0xf]
  %v410 = vld [vmem:[%s1 + $0x30] sm:$0xf]
  %v411 = vld [vmem:[%s1 + $0x34] sm:$0xf]
  %v412 = vld [vmem:[%s1 + $0x38] sm:$0xf]
  %v413 = vld [vmem:[%s1 + $0x3c] sm:$0xf]
  %v414 = vunpack.c.l.bf16 %v398
  %v415 = vunpack.c.l.bf16 %v399
  %v416 = vunpack.c.l.bf16 %v400
  %v417 = vunpack.c.l.bf16 %v401
  %v418 = vunpack.c.l.bf16 %v402
  %v419 = vunpack.c.l.bf16 %v403
  %v420 = vunpack.c.l.bf16 %v404
  %v421 = vunpack.c.l.bf16 %v405
  %v422 = vunpack.c.l.bf16 %v406
  %v423 = vunpack.c.l.bf16 %v407
  %v424 = vunpack.c.l.bf16 %v408
  %v425 = vunpack.c.l.bf16 %v409
  %v426 = vunpack.c.l.bf16 %v410
  %v427 = vunpack.c.l.bf16 %v411
  %v428 = vunpack.c.l.bf16 %v412
  %v429 = vunpack.c.l.bf16 %v413
  %v430 = vld [vmem:[%s6] sm:$0x1]
  %v432 = vlaneseq
  %v433 = vshrl.u32 %v432, 7
  %v434 = vsub.s32 0, %v433
  %v435 = vrot.slane %v430, %v434
  %v437 = vmul.f32 %v414, %v435
  %v438 = vmul.f32 %v415, %v435
  %v439 = vmul.f32 %v416, %v435
  %v440 = vmul.f32 %v417, %v435
  %v441 = vmul.f32 %v418, %v435
  %v442 = vmul.f32 %v419, %v435
  %v443 = vmul.f32 %v420, %v435
  %v444 = vmul.f32 %v421, %v435
  %v445 = vmul.f32 %v422, %v435
  %v446 = vmul.f32 %v423, %v435
  %v447 = vmul.f32 %v424, %v435
  %v448 = vmul.f32 %v425, %v435
  %v449 = vmul.f32 %v426, %v435
  %v450 = vmul.f32 %v427, %v435
  %v451 = vmul.f32 %v428, %v435
  %v452 = vmul.f32 %v429, %v435
  %vm453 = vcmask 130048
  %v454 = vsel %vm453, %v437, 0.0
  %455 = vadd.xlane.f32.xlu0 %v454
  %v456 = vpop.xlane.xlu0 %455
  %v457 = vsel %vm453, %v438, 0.0
  %458 = vadd.xlane.f32.xlu0 %v457
  %v459 = vpop.xlane.xlu0 %458
  %v460 = vsel %vm453, %v439, 0.0
  %461 = vadd.xlane.f32.xlu0 %v460
  %v462 = vpop.xlane.xlu0 %461
  %v463 = vsel %vm453, %v440, 0.0
  %464 = vadd.xlane.f32.xlu0 %v463
  %v465 = vpop.xlane.xlu0 %464
  %v466 = vsel %vm453, %v441, 0.0
  %467 = vadd.xlane.f32.xlu0 %v466
  %v468 = vpop.xlane.xlu0 %467
  %v469 = vsel %vm453, %v442, 0.0
  %470 = vadd.xlane.f32.xlu0 %v469
  %v471 = vpop.xlane.xlu0 %470
  %v472 = vsel %vm453, %v443, 0.0
  %473 = vadd.xlane.f32.xlu0 %v472
  %v474 = vpop.xlane.xlu0 %473
  %v475 = vsel %vm453, %v444, 0.0
  %476 = vadd.xlane.f32.xlu0 %v475
  %v477 = vpop.xlane.xlu0 %476
  %v478 = vsel %vm453, %v445, 0.0
  %479 = vadd.xlane.f32.xlu0 %v478
  %v480 = vpop.xlane.xlu0 %479
  %v481 = vsel %vm453, %v446, 0.0
  %482 = vadd.xlane.f32.xlu0 %v481
  %v483 = vpop.xlane.xlu0 %482
  %v484 = vsel %vm453, %v447, 0.0
  %485 = vadd.xlane.f32.xlu0 %v484
  %v486 = vpop.xlane.xlu0 %485
  %v487 = vsel %vm453, %v448, 0.0
  %488 = vadd.xlane.f32.xlu0 %v487
  %v489 = vpop.xlane.xlu0 %488
  %v490 = vsel %vm453, %v449, 0.0
  %491 = vadd.xlane.f32.xlu0 %v490
  %v492 = vpop.xlane.xlu0 %491
  %v493 = vsel %vm453, %v450, 0.0
  %494 = vadd.xlane.f32.xlu0 %v493
  %v495 = vpop.xlane.xlu0 %494
  %v496 = vsel %vm453, %v451, 0.0
  %497 = vadd.xlane.f32.xlu0 %v496
  %v498 = vpop.xlane.xlu0 %497
  %v499 = vsel %vm453, %v452, 0.0
  %500 = vadd.xlane.f32.xlu0 %v499
  %v501 = vpop.xlane.xlu0 %500
  %v502 = vld [vmem:[#allocation3] sm:$0x1]
  %v504 = vlaneseq
  %v505 = vshrl.u32 %v504, 7
  %v506 = vsub.s32 0, %v505
  %v507 = vrot.slane %v502, %v506
  %508 = vset.pattern.permute.xlu0 0
  %509 = vperm.xlu0 %508, %v507
  %v510 = vpop.permute.xlu0 %509
  %v512 = vadd.f32 %v456, %v510
  %v513 = vadd.f32 %v459, %v510
  %v514 = vadd.f32 %v462, %v510
  %v515 = vadd.f32 %v465, %v510
  %v516 = vadd.f32 %v468, %v510
  %v517 = vadd.f32 %v471, %v510
  %v518 = vadd.f32 %v474, %v510
  %v519 = vadd.f32 %v477, %v510
  %v520 = vadd.f32 %v480, %v510
  %v521 = vadd.f32 %v483, %v510
  %v522 = vadd.f32 %v486, %v510
  %v523 = vadd.f32 %v489, %v510
  %v524 = vadd.f32 %v492, %v510
  %v525 = vadd.f32 %v495, %v510
  %v526 = vadd.f32 %v498, %v510
  %v527 = vadd.f32 %v501, %v510
  %v528 = vxor.u32 %v512, 2147483648
  %v529 = vxor.u32 %v513, 2147483648
  %v530 = vxor.u32 %v514, 2147483648
  %v531 = vxor.u32 %v515, 2147483648
  %v532 = vxor.u32 %v516, 2147483648
  %v533 = vxor.u32 %v517, 2147483648
  %v534 = vxor.u32 %v518, 2147483648
  %v535 = vxor.u32 %v519, 2147483648
  %v536 = vxor.u32 %v520, 2147483648
  %v537 = vxor.u32 %v521, 2147483648
  %v538 = vxor.u32 %v522, 2147483648
  %v539 = vxor.u32 %v523, 2147483648
  %v540 = vxor.u32 %v524, 2147483648
  %v541 = vxor.u32 %v525, 2147483648
  %v542 = vxor.u32 %v526, 2147483648
  %v543 = vxor.u32 %v527, 2147483648
  %v544 = vmul.f32 %v528, 1.442695
  %v545 = vpow.pop %v544
  %v546 = vmul.f32 %v529, 1.442695
  %v547 = vpow.pop %v546
  %v548 = vmul.f32 %v530, 1.442695
  %v549 = vpow.pop %v548
  %v550 = vmul.f32 %v531, 1.442695
  %v551 = vpow.pop %v550
  %v552 = vmul.f32 %v532, 1.442695
  %v553 = vpow.pop %v552
  %v554 = vmul.f32 %v533, 1.442695
  %v555 = vpow.pop %v554
  %v556 = vmul.f32 %v534, 1.442695
  %v557 = vpow.pop %v556
  %v558 = vmul.f32 %v535, 1.442695
  %v559 = vpow.pop %v558
  %v560 = vmul.f32 %v536, 1.442695
  %v561 = vpow.pop %v560
  %v562 = vmul.f32 %v537, 1.442695
  %v563 = vpow.pop %v562
  %v564 = vmul.f32 %v538, 1.442695
  %v565 = vpow.pop %v564
  %v566 = vmul.f32 %v539, 1.442695
  %v567 = vpow.pop %v566
  %v568 = vmul.f32 %v540, 1.442695
  %v569 = vpow.pop %v568
  %v570 = vmul.f32 %v541, 1.442695
  %v571 = vpow.pop %v570
  %v572 = vmul.f32 %v542, 1.442695
  %v573 = vpow.pop %v572
  %v574 = vmul.f32 %v543, 1.442695
  %v575 = vpow.pop %v574
  %v576 = vadd.f32 %v545, 1.0
  %v577 = vadd.f32 %v547, 1.0
  %v578 = vadd.f32 %v549, 1.0
  %v579 = vadd.f32 %v551, 1.0
  %v580 = vadd.f32 %v553, 1.0
  %v581 = vadd.f32 %v555, 1.0
  %v582 = vadd.f32 %v557, 1.0
  %v583 = vadd.f32 %v559, 1.0
  %v584 = vadd.f32 %v561, 1.0
  %v585 = vadd.f32 %v563, 1.0
  %v586 = vadd.f32 %v565, 1.0
  %v587 = vadd.f32 %v567, 1.0
  %v588 = vadd.f32 %v569, 1.0
  %v589 = vadd.f32 %v571, 1.0
  %v590 = vadd.f32 %v573, 1.0
  %v591 = vadd.f32 %v575, 1.0
  %v592 = vrcp.pop %v576
  %v593 = vmul.f32 1.0, %v592
  %v594 = vrcp.pop %v577
  %v595 = vmul.f32 1.0, %v594
  %v596 = vrcp.pop %v578
  %v597 = vmul.f32 1.0, %v596
  %v598 = vrcp.pop %v579
  %v599 = vmul.f32 1.0, %v598
  %v600 = vrcp.pop %v580
  %v601 = vmul.f32 1.0, %v600
  %v602 = vrcp.pop %v581
  %v603 = vmul.f32 1.0, %v602
  %v604 = vrcp.pop %v582
  %v605 = vmul.f32 1.0, %v604
  %v606 = vrcp.pop %v583
  %v607 = vmul.f32 1.0, %v606
  %v608 = vrcp.pop %v584
  %v609 = vmul.f32 1.0, %v608
  %v610 = vrcp.pop %v585
  %v611 = vmul.f32 1.0, %v610
  %v612 = vrcp.pop %v586
  %v613 = vmul.f32 1.0, %v612
  %v614 = vrcp.pop %v587
  %v615 = vmul.f32 1.0, %v614
  %v616 = vrcp.pop %v588
  %v617 = vmul.f32 1.0, %v616
  %v618 = vrcp.pop %v589
  %v619 = vmul.f32 1.0, %v618
  %v620 = vrcp.pop %v590
  %v621 = vmul.f32 1.0, %v620
  %v622 = vrcp.pop %v591
  %v623 = vmul.f32 1.0, %v622
  %v640 = vlaneseq
  %v641 = vshrl.u32 %v640, 7
  %v642 = vsub.s32 %v308, %v641
  %v643 = vrot.slane %v593, %v642
  %v644 = vlaneseq
  %v645 = vshrl.u32 %v644, 7
  %v646 = vsub.s32 %v308, %v645
  %v647 = vrot.slane %v595, %v646
  %v648 = vlaneseq
  %v649 = vshrl.u32 %v648, 7
  %v650 = vsub.s32 %v308, %v649
  %v651 = vrot.slane %v597, %v650
  %v652 = vlaneseq
  %v653 = vshrl.u32 %v652, 7
  %v654 = vsub.s32 %v308, %v653
  %v655 = vrot.slane %v599, %v654
  %v656 = vlaneseq
  %v657 = vshrl.u32 %v656, 7
  %v658 = vsub.s32 %v308, %v657
  %v659 = vrot.slane %v601, %v658
  %v660 = vlaneseq
  %v661 = vshrl.u32 %v660, 7
  %v662 = vsub.s32 %v308, %v661
  %v663 = vrot.slane %v603, %v662
  %v664 = vlaneseq
  %v665 = vshrl.u32 %v664, 7
  %v666 = vsub.s32 %v308, %v665
  %v667 = vrot.slane %v605, %v666
  %v668 = vlaneseq
  %v669 = vshrl.u32 %v668, 7
  %v670 = vsub.s32 %v308, %v669
  %v671 = vrot.slane %v607, %v670
  %v672 = vlaneseq
  %v673 = vshrl.u32 %v672, 7
  %v674 = vsub.s32 %v308, %v673
  %v675 = vrot.slane %v609, %v674
  %v676 = vlaneseq
  %v677 = vshrl.u32 %v676, 7
  %v678 = vsub.s32 %v308, %v677
  %v679 = vrot.slane %v611, %v678
  %v680 = vlaneseq
  %v681 = vshrl.u32 %v680, 7
  %v682 = vsub.s32 %v308, %v681
  %v683 = vrot.slane %v613, %v682
  %v684 = vlaneseq
  %v685 = vshrl.u32 %v684, 7
  %v686 = vsub.s32 %v308, %v685
  %v687 = vrot.slane %v615, %v686
  %v688 = vlaneseq
  %v689 = vshrl.u32 %v688, 7
  %v690 = vsub.s32 %v308, %v689
  %v691 = vrot.slane %v617, %v690
  %v692 = vlaneseq
  %v693 = vshrl.u32 %v692, 7
  %v694 = vsub.s32 %v308, %v693
  %v695 = vrot.slane %v619, %v694
  %v696 = vlaneseq
  %v697 = vshrl.u32 %v696, 7
  %v698 = vsub.s32 %v308, %v697
  %v699 = vrot.slane %v621, %v698
  %v700 = vlaneseq
  %v701 = vshrl.u32 %v700, 7
  %v702 = vsub.s32 %v308, %v701
  %v703 = vrot.slane %v623, %v702
  %v704 = vsel %vm373, %v647, %v643
  %v705 = vsel %vm375, %v651, %v704
  %v706 = vsel %vm377, %v655, %v705
  %v707 = vsel %vm379, %v659, %v706
  %v708 = vsel %vm381, %v663, %v707
  %v709 = vsel %vm383, %v667, %v708
  %v710 = vsel %vm385, %v671, %v709
  %v711 = vsel %vm373, %v679, %v675
  %v712 = vsel %vm375, %v683, %v711
  %v713 = vsel %vm377, %v687, %v712
  %v714 = vsel %vm379, %v691, %v713
  %v715 = vsel %vm381, %v695, %v714
  %v716 = vsel %vm383, %v699, %v715
  %v717 = vsel %vm385, %v703, %v716
  %720 = vst.msk [vmem:[%s16] sm:$0xff] %vm120, %v710
  %721 = vst.msk [vmem:[%s16 + $0x8] sm:$0xff] %vm120, %v717
  %v722 = vld [vmem:[%s2] sm:$0x3]
  %v723 = vld [vmem:[%s2 + $0x2] sm:$0x3]
  %v724 = vld [vmem:[%s2 + $0x4] sm:$0x3]
  %v725 = vld [vmem:[%s2 + $0x6] sm:$0x3]
  %v726 = vld [vmem:[%s2 + $0x8] sm:$0x3]
  %v727 = vld [vmem:[%s2 + $0xa] sm:$0x3]
  %v728 = vld [vmem:[%s2 + $0xc] sm:$0x3]
  %v729 = vld [vmem:[%s2 + $0xe] sm:$0x3]
  %v730 = vunpack.c.l.bf16 %v722
  %v731 = vunpack.c.l.bf16 %v723
  %v732 = vunpack.c.l.bf16 %v724
  %v733 = vunpack.c.l.bf16 %v725
  %v734 = vunpack.c.l.bf16 %v726
  %v735 = vunpack.c.l.bf16 %v727
  %v736 = vunpack.c.l.bf16 %v728
  %v737 = vunpack.c.l.bf16 %v729
  %v738 = vld [vmem:[%s7] sm:$0x1]
  %v740 = vlaneseq
  %v741 = vshrl.u32 %v740, 7
  %v742 = vsub.s32 0, %v741
  %v743 = vrot.slane %v738, %v742
  %v745 = vmul.f32 %v730, %v743
  %v746 = vmul.f32 %v731, %v743
  %v747 = vmul.f32 %v732, %v743
  %v748 = vmul.f32 %v733, %v743
  %v749 = vmul.f32 %v734, %v743
  %v750 = vmul.f32 %v735, %v743
  %v751 = vmul.f32 %v736, %v743
  %v752 = vmul.f32 %v737, %v743
  %vm753 = vcmask 125952
  %v754 = vsel %vm753, %v745, 0.0
  %755 = vadd.xlane.f32.xlu0 %v754
  %v756 = vpop.xlane.xlu0 %755
  %v757 = vsel %vm753, %v746, 0.0
  %758 = vadd.xlane.f32.xlu0 %v757
  %v759 = vpop.xlane.xlu0 %758
  %v760 = vsel %vm753, %v747, 0.0
  %761 = vadd.xlane.f32.xlu0 %v760
  %v762 = vpop.xlane.xlu0 %761
  %v763 = vsel %vm753, %v748, 0.0
  %764 = vadd.xlane.f32.xlu0 %v763
  %v765 = vpop.xlane.xlu0 %764
  %v766 = vsel %vm753, %v749, 0.0
  %767 = vadd.xlane.f32.xlu0 %v766
  %v768 = vpop.xlane.xlu0 %767
  %v769 = vsel %vm753, %v750, 0.0
  %770 = vadd.xlane.f32.xlu0 %v769
  %v771 = vpop.xlane.xlu0 %770
  %v772 = vsel %vm753, %v751, 0.0
  %773 = vadd.xlane.f32.xlu0 %v772
  %v774 = vpop.xlane.xlu0 %773
  %v775 = vsel %vm753, %v752, 0.0
  %776 = vadd.xlane.f32.xlu0 %v775
  %v777 = vpop.xlane.xlu0 %776
  %v778 = vld [vmem:[#allocation4] sm:$0x1]
  %v780 = vlaneseq
  %v781 = vshrl.u32 %v780, 7
  %v782 = vsub.s32 0, %v781
  %v783 = vrot.slane %v778, %v782
  %784 = vset.pattern.permute.xlu0 0
  %785 = vperm.xlu0 %784, %v783
  %v786 = vpop.permute.xlu0 %785
  %v788 = vadd.f32 %v756, %v786
  %v789 = vadd.f32 %v759, %v786
  %v790 = vadd.f32 %v762, %v786
  %v791 = vadd.f32 %v765, %v786
  %v792 = vadd.f32 %v768, %v786
  %v793 = vadd.f32 %v771, %v786
  %v794 = vadd.f32 %v774, %v786
  %v795 = vadd.f32 %v777, %v786
  %v796 = vxor.u32 %v788, 2147483648
  %v797 = vxor.u32 %v789, 2147483648
  %v798 = vxor.u32 %v790, 2147483648
  %v799 = vxor.u32 %v791, 2147483648
  %v800 = vxor.u32 %v792, 2147483648
  %v801 = vxor.u32 %v793, 2147483648
  %v802 = vxor.u32 %v794, 2147483648
  %v803 = vxor.u32 %v795, 2147483648
  %v804 = vmul.f32 %v796, 1.442695
  %v805 = vpow.pop %v804
  %v806 = vmul.f32 %v797, 1.442695
  %v807 = vpow.pop %v806
  %v808 = vmul.f32 %v798, 1.442695
  %v809 = vpow.pop %v808
  %v810 = vmul.f32 %v799, 1.442695
  %v811 = vpow.pop %v810
  %v812 = vmul.f32 %v800, 1.442695
  %v813 = vpow.pop %v812
  %v814 = vmul.f32 %v801, 1.442695
  %v815 = vpow.pop %v814
  %v816 = vmul.f32 %v802, 1.442695
  %v817 = vpow.pop %v816
  %v818 = vmul.f32 %v803, 1.442695
  %v819 = vpow.pop %v818
  %v820 = vadd.f32 %v805, 1.0
  %v821 = vadd.f32 %v807, 1.0
  %v822 = vadd.f32 %v809, 1.0
  %v823 = vadd.f32 %v811, 1.0
  %v824 = vadd.f32 %v813, 1.0
  %v825 = vadd.f32 %v815, 1.0
  %v826 = vadd.f32 %v817, 1.0
  %v827 = vadd.f32 %v819, 1.0
  %v828 = vrcp.pop %v820
  %v829 = vmul.f32 1.0, %v828
  %v830 = vrcp.pop %v821
  %v831 = vmul.f32 1.0, %v830
  %v832 = vrcp.pop %v822
  %v833 = vmul.f32 1.0, %v832
  %v834 = vrcp.pop %v823
  %v835 = vmul.f32 1.0, %v834
  %v836 = vrcp.pop %v824
  %v837 = vmul.f32 1.0, %v836
  %v838 = vrcp.pop %v825
  %v839 = vmul.f32 1.0, %v838
  %v840 = vrcp.pop %v826
  %v841 = vmul.f32 1.0, %v840
  %v842 = vrcp.pop %v827
  %v843 = vmul.f32 1.0, %v842
  %v852 = vlaneseq
  %v853 = vshrl.u32 %v852, 7
  %v854 = vsub.s32 %v308, %v853
  %v855 = vrot.slane %v829, %v854
  %v856 = vlaneseq
  %v857 = vshrl.u32 %v856, 7
  %v858 = vsub.s32 %v308, %v857
  %v859 = vrot.slane %v831, %v858
  %v860 = vlaneseq
  %v861 = vshrl.u32 %v860, 7
  %v862 = vsub.s32 %v308, %v861
  %v863 = vrot.slane %v833, %v862
  %v864 = vlaneseq
  %v865 = vshrl.u32 %v864, 7
  %v866 = vsub.s32 %v308, %v865
  %v867 = vrot.slane %v835, %v866
  %v868 = vlaneseq
  %v869 = vshrl.u32 %v868, 7
  %v870 = vsub.s32 %v308, %v869
  %v871 = vrot.slane %v837, %v870
  %v872 = vlaneseq
  %v873 = vshrl.u32 %v872, 7
  %v874 = vsub.s32 %v308, %v873
  %v875 = vrot.slane %v839, %v874
  %v876 = vlaneseq
  %v877 = vshrl.u32 %v876, 7
  %v878 = vsub.s32 %v308, %v877
  %v879 = vrot.slane %v841, %v878
  %v880 = vlaneseq
  %v881 = vshrl.u32 %v880, 7
  %v882 = vsub.s32 %v308, %v881
  %v883 = vrot.slane %v843, %v882
  %v884 = vsel %vm373, %v859, %v855
  %v885 = vsel %vm375, %v863, %v884
  %v886 = vsel %vm377, %v867, %v885
  %v887 = vsel %vm379, %v871, %v886
  %v888 = vsel %vm381, %v875, %v887
  %v889 = vsel %vm383, %v879, %v888
  %v890 = vsel %vm385, %v883, %v889
  %vm892 = vcmask 31744
  %893 = vst.msk [vmem:[%s17] sm:$0xff] %vm892, %v890
  %v894 = vld [vmem:[%s3] sm:$0x3]
  %v895 = vld [vmem:[%s3 + $0x2] sm:$0x3]
  %v896 = vld [vmem:[%s3 + $0x4] sm:$0x3]
  %v897 = vld [vmem:[%s3 + $0x6] sm:$0x3]
  %v898 = vld [vmem:[%s3 + $0x8] sm:$0x3]
  %v899 = vld [vmem:[%s3 + $0xa] sm:$0x3]
  %v900 = vld [vmem:[%s3 + $0xc] sm:$0x3]
  %v901 = vld [vmem:[%s3 + $0xe] sm:$0x3]
  %v902 = vunpack.c.l.bf16 %v894
  %v903 = vunpack.c.l.bf16 %v895
  %v904 = vunpack.c.l.bf16 %v896
  %v905 = vunpack.c.l.bf16 %v897
  %v906 = vunpack.c.l.bf16 %v898
  %v907 = vunpack.c.l.bf16 %v899
  %v908 = vunpack.c.l.bf16 %v900
  %v909 = vunpack.c.l.bf16 %v901
  %v910 = vld [vmem:[%s8] sm:$0x1]
  %v912 = vlaneseq
  %v913 = vshrl.u32 %v912, 7
  %v914 = vsub.s32 0, %v913
  %v915 = vrot.slane %v910, %v914
  %v917 = vmul.f32 %v902, %v915
  %v918 = vmul.f32 %v903, %v915
  %v919 = vmul.f32 %v904, %v915
  %v920 = vmul.f32 %v905, %v915
  %v921 = vmul.f32 %v906, %v915
  %v922 = vmul.f32 %v907, %v915
  %v923 = vmul.f32 %v908, %v915
  %v924 = vmul.f32 %v909, %v915
  %vm925 = vcmask 257024
  %v926 = vsel %vm925, %v917, 0.0
  %927 = vadd.xlane.f32.xlu0 %v926
  %v928 = vpop.xlane.xlu0 %927
  %v929 = vsel %vm925, %v918, 0.0
  %930 = vadd.xlane.f32.xlu0 %v929
  %v931 = vpop.xlane.xlu0 %930
  %v932 = vsel %vm925, %v919, 0.0
  %933 = vadd.xlane.f32.xlu0 %v932
  %v934 = vpop.xlane.xlu0 %933
  %v935 = vsel %vm925, %v920, 0.0
  %936 = vadd.xlane.f32.xlu0 %v935
  %v937 = vpop.xlane.xlu0 %936
  %v938 = vsel %vm925, %v921, 0.0
  %939 = vadd.xlane.f32.xlu0 %v938
  %v940 = vpop.xlane.xlu0 %939
  %v941 = vsel %vm925, %v922, 0.0
  %942 = vadd.xlane.f32.xlu0 %v941
  %v943 = vpop.xlane.xlu0 %942
  %v944 = vsel %vm925, %v923, 0.0
  %945 = vadd.xlane.f32.xlu0 %v944
  %v946 = vpop.xlane.xlu0 %945
  %v947 = vsel %vm925, %v924, 0.0
  %948 = vadd.xlane.f32.xlu0 %v947
  %v949 = vpop.xlane.xlu0 %948
  %v950 = vld [vmem:[#allocation5] sm:$0x1]
  %v952 = vlaneseq
  %v953 = vshrl.u32 %v952, 7
  %v954 = vsub.s32 0, %v953
  %v955 = vrot.slane %v950, %v954
  %956 = vset.pattern.permute.xlu0 0
  %957 = vperm.xlu0 %956, %v955
  %v958 = vpop.permute.xlu0 %957
  %v960 = vadd.f32 %v928, %v958
  %v961 = vadd.f32 %v931, %v958
  %v962 = vadd.f32 %v934, %v958
  %v963 = vadd.f32 %v937, %v958
  %v964 = vadd.f32 %v940, %v958
  %v965 = vadd.f32 %v943, %v958
  %v966 = vadd.f32 %v946, %v958
  %v967 = vadd.f32 %v949, %v958
  %v968 = vxor.u32 %v960, 2147483648
  %v969 = vxor.u32 %v961, 2147483648
  %v970 = vxor.u32 %v962, 2147483648
  %v971 = vxor.u32 %v963, 2147483648
  %v972 = vxor.u32 %v964, 2147483648
  %v973 = vxor.u32 %v965, 2147483648
  %v974 = vxor.u32 %v966, 2147483648
  %v975 = vxor.u32 %v967, 2147483648
  %v976 = vmul.f32 %v968, 1.442695
  %v977 = vpow.pop %v976
  %v978 = vmul.f32 %v969, 1.442695
  %v979 = vpow.pop %v978
  %v980 = vmul.f32 %v970, 1.442695
  %v981 = vpow.pop %v980
  %v982 = vmul.f32 %v971, 1.442695
  %v983 = vpow.pop %v982
  %v984 = vmul.f32 %v972, 1.442695
  %v985 = vpow.pop %v984
  %v986 = vmul.f32 %v973, 1.442695
  %v987 = vpow.pop %v986
  %v988 = vmul.f32 %v974, 1.442695
  %v989 = vpow.pop %v988
  %v990 = vmul.f32 %v975, 1.442695
  %v991 = vpow.pop %v990
  %v992 = vadd.f32 %v977, 1.0
  %v993 = vadd.f32 %v979, 1.0
  %v994 = vadd.f32 %v981, 1.0
  %v995 = vadd.f32 %v983, 1.0
  %v996 = vadd.f32 %v985, 1.0
  %v997 = vadd.f32 %v987, 1.0
  %v998 = vadd.f32 %v989, 1.0
  %v999 = vadd.f32 %v991, 1.0
  %v1000 = vrcp.pop %v992
  %v1001 = vmul.f32 1.0, %v1000
  %v1002 = vrcp.pop %v993
  %v1003 = vmul.f32 1.0, %v1002
  %v1004 = vrcp.pop %v994
  %v1005 = vmul.f32 1.0, %v1004
  %v1006 = vrcp.pop %v995
  %v1007 = vmul.f32 1.0, %v1006
  %v1008 = vrcp.pop %v996
  %v1009 = vmul.f32 1.0, %v1008
  %v1010 = vrcp.pop %v997
  %v1011 = vmul.f32 1.0, %v1010
  %v1012 = vrcp.pop %v998
  %v1013 = vmul.f32 1.0, %v1012
  %v1014 = vrcp.pop %v999
  %v1015 = vmul.f32 1.0, %v1014
  %v1024 = vlaneseq
  %v1025 = vshrl.u32 %v1024, 7
  %v1026 = vsub.s32 %v308, %v1025
  %v1027 = vrot.slane %v1001, %v1026
  %v1028 = vlaneseq
  %v1029 = vshrl.u32 %v1028, 7
  %v1030 = vsub.s32 %v308, %v1029
  %v1031 = vrot.slane %v1003, %v1030
  %v1032 = vlaneseq
  %v1033 = vshrl.u32 %v1032, 7
  %v1034 = vsub.s32 %v308, %v1033
  %v1035 = vrot.slane %v1005, %v1034
  %v1036 = vlaneseq
  %v1037 = vshrl.u32 %v1036, 7
  %v1038 = vsub.s32 %v308, %v1037
  %v1039 = vrot.slane %v1007, %v1038
  %v1040 = vlaneseq
  %v1041 = vshrl.u32 %v1040, 7
  %v1042 = vsub.s32 %v308, %v1041
  %v1043 = vrot.slane %v1009, %v1042
  %v1044 = vlaneseq
  %v1045 = vshrl.u32 %v1044, 7
  %v1046 = vsub.s32 %v308, %v1045
  %v1047 = vrot.slane %v1011, %v1046
  %v1048 = vlaneseq
  %v1049 = vshrl.u32 %v1048, 7
  %v1050 = vsub.s32 %v308, %v1049
  %v1051 = vrot.slane %v1013, %v1050
  %v1052 = vlaneseq
  %v1053 = vshrl.u32 %v1052, 7
  %v1054 = vsub.s32 %v308, %v1053
  %v1055 = vrot.slane %v1015, %v1054
  %v1056 = vsel %vm373, %v1031, %v1027
  %v1057 = vsel %vm375, %v1035, %v1056
  %v1058 = vsel %vm377, %v1039, %v1057
  %v1059 = vsel %vm379, %v1043, %v1058
  %v1060 = vsel %vm381, %v1047, %v1059
  %v1061 = vsel %vm383, %v1051, %v1060
  %v1062 = vsel %vm385, %v1055, %v1061
  %1064 = vst.msk [vmem:[%s18] sm:$0xff] %vm892, %v1062
  %v1065 = vld [vmem:[%s4] sm:$0x1]
  %v1066 = vld [vmem:[%s4 + $0x1] sm:$0x1]
  %v1067 = vld [vmem:[%s4 + $0x2] sm:$0x1]
  %v1068 = vld [vmem:[%s4 + $0x3] sm:$0x1]
  %v1069 = vunpack.c.l.bf16 %v1065
  %v1070 = vunpack.c.l.bf16 %v1066
  %v1071 = vunpack.c.l.bf16 %v1067
  %v1072 = vunpack.c.l.bf16 %v1068
  %v1073 = vld [vmem:[%s9] sm:$0x1]
  %v1075 = vlaneseq
  %v1076 = vshrl.u32 %v1075, 7
  %v1077 = vsub.s32 0, %v1076
  %v1078 = vrot.slane %v1073, %v1077
  %v1080 = vmul.f32 %v1069, %v1078
  %v1081 = vmul.f32 %v1070, %v1078
  %v1082 = vmul.f32 %v1071, %v1078
  %v1083 = vmul.f32 %v1072, %v1078
  %vm1084 = vcmask 254976
  %v1085 = vsel %vm1084, %v1080, 0.0
  %1086 = vadd.xlane.f32.xlu0 %v1085
  %v1087 = vpop.xlane.xlu0 %1086
  %v1088 = vsel %vm1084, %v1081, 0.0
  %1089 = vadd.xlane.f32.xlu0 %v1088
  %v1090 = vpop.xlane.xlu0 %1089
  %v1091 = vsel %vm1084, %v1082, 0.0
  %1092 = vadd.xlane.f32.xlu0 %v1091
  %v1093 = vpop.xlane.xlu0 %1092
  %v1094 = vsel %vm1084, %v1083, 0.0
  %1095 = vadd.xlane.f32.xlu0 %v1094
  %v1096 = vpop.xlane.xlu0 %1095
  %v1097 = vld [vmem:[#allocation6] sm:$0x1]
  %v1099 = vlaneseq
  %v1100 = vshrl.u32 %v1099, 7
  %v1101 = vsub.s32 0, %v1100
  %v1102 = vrot.slane %v1097, %v1101
  %1103 = vset.pattern.permute.xlu0 0
  %1104 = vperm.xlu0 %1103, %v1102
  %v1105 = vpop.permute.xlu0 %1104
  %v1107 = vadd.f32 %v1087, %v1105
  %v1108 = vadd.f32 %v1090, %v1105
  %v1109 = vadd.f32 %v1093, %v1105
  %v1110 = vadd.f32 %v1096, %v1105
  %v1111 = vxor.u32 %v1107, 2147483648
  %v1112 = vxor.u32 %v1108, 2147483648
  %v1113 = vxor.u32 %v1109, 2147483648
  %v1114 = vxor.u32 %v1110, 2147483648
  %v1115 = vmul.f32 %v1111, 1.442695
  %v1116 = vpow.pop %v1115
  %v1117 = vmul.f32 %v1112, 1.442695
  %v1118 = vpow.pop %v1117
  %v1119 = vmul.f32 %v1113, 1.442695
  %v1120 = vpow.pop %v1119
  %v1121 = vmul.f32 %v1114, 1.442695
  %v1122 = vpow.pop %v1121
  %v1123 = vadd.f32 %v1116, 1.0
  %v1124 = vadd.f32 %v1118, 1.0
  %v1125 = vadd.f32 %v1120, 1.0
  %v1126 = vadd.f32 %v1122, 1.0
  %v1127 = vrcp.pop %v1123
  %v1128 = vmul.f32 1.0, %v1127
  %v1129 = vrcp.pop %v1124
  %v1130 = vmul.f32 1.0, %v1129
  %v1131 = vrcp.pop %v1125
  %v1132 = vmul.f32 1.0, %v1131
  %v1133 = vrcp.pop %v1126
  %v1134 = vmul.f32 1.0, %v1133
  %v1139 = vlaneseq
  %v1140 = vshrl.u32 %v1139, 7
  %v1141 = vsub.s32 %v308, %v1140
  %v1142 = vrot.slane %v1128, %v1141
  %v1143 = vlaneseq
  %v1144 = vshrl.u32 %v1143, 7
  %v1145 = vsub.s32 %v308, %v1144
  %v1146 = vrot.slane %v1130, %v1145
  %v1147 = vlaneseq
  %v1148 = vshrl.u32 %v1147, 7
  %v1149 = vsub.s32 %v308, %v1148
  %v1150 = vrot.slane %v1132, %v1149
  %v1151 = vlaneseq
  %v1152 = vshrl.u32 %v1151, 7
  %v1153 = vsub.s32 %v308, %v1152
  %v1154 = vrot.slane %v1134, %v1153
  %v1155 = vsel %vm373, %v1146, %v1142
  %v1156 = vsel %vm375, %v1150, %v1155
  %v1157 = vsel %vm377, %v1154, %v1156
  %vm1159 = vcmask 11264
  %1160 = vst.msk [vmem:[%s19] sm:$0xf] %vm1159, %v1157
  // Predicated region
  $region62: #{cobnet_forward.12} parent=0 // pred_check
    _
  $region63: #{cobnet_forward.12} parent=0 // pred_check_branch
    %1162 = sbr.rel (0) target = $region65
  $region64: #{cobnet_forward.12} parent=0 // pred_region
    _
  $region65: #{cobnet_forward.12} parent=0 // pred_fallthru
    _
  // Predicated region
  $region66: #{cobnet_forward.12} parent=0 // pred_check
    _
  $region67: #{cobnet_forward.12} parent=0 // pred_check_branch
    %1164 = sbr.rel (0) target = $region69
  $region68: #{cobnet_forward.12} parent=0 // pred_region
    _
  $region69: #{cobnet_forward.12} parent=0 // pred_fallthru
    _
  // Predicated region
  $region70: #{cobnet_forward.12} parent=0 // pred_check
    _
  $region71: #{cobnet_forward.12} parent=0 // pred_check_branch
    %1166 = sbr.rel (0) target = $region73
  $region72: #{cobnet_forward.12} parent=0 // pred_region
    _
  $region73: #{cobnet_forward.12} parent=0 // pred_fallthru
    _
  // Predicated region
  $region74: #{cobnet_forward.12} parent=0 // pred_check
    _
  $region75: #{cobnet_forward.12} parent=0 // pred_check_branch
    %1168 = sbr.rel (0) target = $region77
  $region76: #{cobnet_forward.12} parent=0 // pred_region
    _
  $region77: #{cobnet_forward.12} parent=0 // pred_fallthru
    _
  // Predicated region
  $region78: #{cobnet_forward.12} parent=0 // pred_check
    _
  $region79: #{cobnet_forward.12} parent=0 // pred_check_branch
    %1170 = sbr.rel (0) target = $region81
  $region80: #{cobnet_forward.12} parent=0 // pred_region
    _
  $region81: #{cobnet_forward.12} parent=0 // pred_fallthru
    _
  // Predicated region
  $region82: #{cobnet_forward.12} parent=0 // pred_check
    _
  $region83: #{cobnet_forward.12} parent=0 // pred_check_branch
    %1172 = sbr.rel (0) target = $region85
  $region84: #{cobnet_forward.12} parent=0 // pred_region
    _
  $region85: #{cobnet_forward.12} parent=0 // pred_fallthru
    _
  // Predicated region
  $region86: #{cobnet_forward.12} parent=0 // pred_check
    _
  $region87: #{cobnet_forward.12} parent=0 // pred_check_branch
    %1174 = sbr.rel (0) target = $region89
  $region88: #{cobnet_forward.12} parent=0 // pred_region
    _
  $region89: #{cobnet_forward.12} parent=0 // pred_fallthru
    _
  // Predicated region
  $region90: #{cobnet_forward.12} parent=0 // pred_check
    _
  $region91: #{cobnet_forward.12} parent=0 // pred_check_branch
    %1176 = sbr.rel (0) target = $region93
  $region92: #{cobnet_forward.12} parent=0 // pred_region
    _
  $region93: #{cobnet_forward.12} parent=0 // pred_fallthru
    _
  // Predicated region
  $region94: #{cobnet_forward.12} parent=0 // pred_check
    _
  $region95: #{cobnet_forward.12} parent=0 // pred_check_branch
    %1178 = sbr.rel (0) target = $region97
  $region96: #{cobnet_forward.12} parent=0 // pred_region
    _
  $region97: #{cobnet_forward.12} parent=0 // pred_fallthru
    _
  // Predicated region
  $region98: #{cobnet_forward.12} parent=0 // pred_check
    _
  $region99: #{cobnet_forward.12} parent=0 // pred_check_branch
    %1180 = sbr.rel (0) target = $region101
  $region100: #{cobnet_forward.12} parent=0 // pred_region
    _
  $region101: #{cobnet_forward.12} parent=0 // pred_fallthru
    _

// kernel: cobnet_forward.13
$region0: #{cobnet_forward.13}
  #allocation0 [shape = 'u32[]', space=smem, size = 0x4, offset = 0x4, fixed_abs, tag = 'smem constant byte address 0x4 - core index']
  #allocation1 [shape = 'u32[144,128]{1,0:T(1,128)}', space=vmem, size = 0x12000, scoped, tag = 'internal scratch']
  #allocation2 [shape = 'f32[1,1]{1,0:T(1,128)S(1)}', space=vmem, size = 0x200, scoped, tag = 'scoped memory for cobnet_forward.13']
  %s0 = inlined_call_operand.vmem [shape: f32[5,16,8], index: 0, kind: input, shape index: {}]
  %s1 = inlined_call_operand.vmem [shape: f32[5,1,1], index: 1, kind: input, shape index: {}]
  %s2 = inlined_call_operand.<no memory space> [shape: f32[1,1], index: 2, kind: input, shape index: {}]
  %s3 = inlined_call_operand.hbm [shape: f32[16,8], index: 3, kind: output, shape index: {}]
  %s4 = sld [smem:[#allocation0]]
  $region22: #{cobnet_forward.13} parent=0
    _
  %s6 = ssub.s32 1, %s4
  %s7 = scalar_select 0, %s6, %s4
  %v8 = vstv %s2
  %9 = vst [vmem:[#allocation2] sm:$0x1] %v8
  $region1: #{cobnet_forward.13} parent=0
    #allocation3 [shape = 'u8[8192]{0}', space=vmem, size = 0x2000, scoped, tag = 'output window, operand 0, single buffered']
    #allocation4 [shape = 's32[1]{0}', space=sflag, size = 0x4, scoped, tag = 'scoped memory for cobnet_forward.13']
    %10 = vsyncpa [#allocation4], 0
    // Predicated region
    $region2: #{cobnet_forward.13} parent=1 // pred_check
      _
    $region3: #{cobnet_forward.13} parent=1 // pred_check_branch
      %12 = sbr.rel (0) target = $region5
    $region4: #{cobnet_forward.13} parent=1 // pred_region
      _
    $region5: #{cobnet_forward.13} parent=1 // pred_fallthru
      _
    // Predicated region
    $region6: #{cobnet_forward.13} parent=1 // pred_check
      _
    $region7: #{cobnet_forward.13} parent=1 // pred_check_branch
      %14 = sbr.rel (0) target = $region9
    $region8: #{cobnet_forward.13} parent=1 // pred_region
      _
    $region9: #{cobnet_forward.13} parent=1 // pred_fallthru
      _
    // Predicated region
    $region10: #{cobnet_forward.13} parent=1 // pred_check
      _
    $region11: #{cobnet_forward.13} parent=1 // pred_check_branch
      %16 = sbr.rel (0) target = $region13
    $region12: #{cobnet_forward.13} parent=1 // pred_region
      _
    $region13: #{cobnet_forward.13} parent=1 // pred_fallthru
      _
    %v17 = vld [vmem:[%s0] sm:$0xff]
    %v18 = vld [vmem:[%s0 + $0x8] sm:$0xff]
    %v19 = vld [vmem:[%s0 + $0x10] sm:$0xff]
    %v20 = vld [vmem:[%s0 + $0x18] sm:$0xff]
    %v21 = vld [vmem:[%s0 + $0x20] sm:$0xff]
    %v22 = vld [vmem:[%s0 + $0x28] sm:$0xff]
    %v23 = vld [vmem:[%s0 + $0x30] sm:$0xff]
    %v24 = vld [vmem:[%s0 + $0x38] sm:$0xff]
    %v25 = vld [vmem:[%s0 + $0x40] sm:$0xff]
    %v26 = vld [vmem:[%s0 + $0x48] sm:$0xff]
    %v27 = vld [vmem:[%s1] sm:$0x1]
    %v28 = vld [vmem:[%s1 + $0x1] sm:$0x1]
    %v29 = vld [vmem:[%s1 + $0x2] sm:$0x1]
    %v30 = vld [vmem:[%s1 + $0x3] sm:$0x1]
    %v31 = vld [vmem:[%s1 + $0x4] sm:$0x1]
    %v37 = vlaneseq
    %v38 = vshrl.u32 %v37, 7
    %v39 = vsub.s32 0, %v38
    %v40 = vrot.slane %v27, %v39
    %v41 = vlaneseq
    %v42 = vshrl.u32 %v41, 7
    %v43 = vsub.s32 0, %v42
    %v44 = vrot.slane %v28, %v43
    %v45 = vlaneseq
    %v46 = vshrl.u32 %v45, 7
    %v47 = vsub.s32 0, %v46
    %v48 = vrot.slane %v29, %v47
    %v49 = vlaneseq
    %v50 = vshrl.u32 %v49, 7
    %v51 = vsub.s32 0, %v50
    %v52 = vrot.slane %v30, %v51
    %v53 = vlaneseq
    %v54 = vshrl.u32 %v53, 7
    %v55 = vsub.s32 0, %v54
    %v56 = vrot.slane %v31, %v55
    %57 = vset.pattern.permute.xlu0 0
    %58 = vperm.xlu0 %57, %v40
    %v59 = vpop.permute.xlu0 %58
    %61 = vset.pattern.permute.xlu0 0
    %62 = vperm.xlu0 %61, %v44
    %v63 = vpop.permute.xlu0 %62
    %65 = vset.pattern.permute.xlu0 0
    %66 = vperm.xlu0 %65, %v48
    %v67 = vpop.permute.xlu0 %66
    %69 = vset.pattern.permute.xlu0 0
    %70 = vperm.xlu0 %69, %v52
    %v71 = vpop.permute.xlu0 %70
    %73 = vset.pattern.permute.xlu0 0
    %74 = vperm.xlu0 %73, %v56
    %v75 = vpop.permute.xlu0 %74
    %v77 = vmul.f32 %v17, %v59
    %v78 = vmul.f32 %v18, %v59
    %v79 = vmul.f32 %v19, %v63
    %v80 = vmul.f32 %v20, %v63
    %v81 = vmul.f32 %v21, %v67
    %v82 = vmul.f32 %v22, %v67
    %v83 = vmul.f32 %v23, %v71
    %v84 = vmul.f32 %v24, %v71
    %v85 = vmul.f32 %v25, %v75
    %v86 = vmul.f32 %v26, %v75
    %vm87 = vcmask 64512
    %v88 = vsel %vm87, %v77, 0.0
    %v89 = vsel %vm87, %v79, 0.0
    %v90 = vadd.f32 %v88, %v89
    %v91 = vsel %vm87, %v81, 0.0
    %v92 = vadd.f32 %v90, %v91
    %v93 = vsel %vm87, %v83, 0.0
    %v94 = vadd.f32 %v92, %v93
    %v95 = vsel %vm87, %v85, 0.0
    %v96 = vadd.f32 %v94, %v95
    %v97 = vsel %vm87, %v78, 0.0
    %v98 = vsel %vm87, %v80, 0.0
    %v99 = vadd.f32 %v97, %v98
    %v100 = vsel %vm87, %v82, 0.0
    %v101 = vadd.f32 %v99, %v100
    %v102 = vsel %vm87, %v84, 0.0
    %v103 = vadd.f32 %v101, %v102
    %v104 = vsel %vm87, %v86, 0.0
    %v105 = vadd.f32 %v103, %v104
    %v106 = vld [vmem:[#allocation2] sm:$0x1]
    %v108 = vlaneseq
    %v109 = vshrl.u32 %v108, 7
    %v110 = vsub.s32 0, %v109
    %v111 = vrot.slane %v106, %v110
    %112 = vset.pattern.permute.xlu0 0
    %113 = vperm.xlu0 %112, %v111
    %v114 = vpop.permute.xlu0 %113
    %v116 = vadd.f32 %v96, %v114
    %v117 = vadd.f32 %v105, %v114
    %v118 = vxor.u32 %v116, 2147483648
    %v119 = vxor.u32 %v117, 2147483648
    %v120 = vmul.f32 %v118, 1.442695
    %v121 = vpow.pop %v120
    %v122 = vmul.f32 %v119, 1.442695
    %v123 = vpow.pop %v122
    %v124 = vadd.f32 %v121, 1.0
    %v125 = vadd.f32 %v123, 1.0
    %v126 = vrcp.pop %v124
    %v127 = vmul.f32 1.0, %v126
    %v128 = vrcp.pop %v125
    %v129 = vmul.f32 1.0, %v128
    %130 = vst.msk [vmem:[#allocation3] sm:$0xff] %vm87, %v127
    %131 = vst.msk [vmem:[#allocation3 + $0x8] sm:$0xff] %vm87, %v129
    // Predicated region
    $region14: #{cobnet_forward.13} parent=1 // pred_check
      _
    $region15: #{cobnet_forward.13} parent=1 // pred_check_branch
      %133 = sbr.rel (0) target = $region17
    $region16: #{cobnet_forward.13} parent=1 // pred_region
      %s135 = ssub.s32 256, 256
      %136 = vsyncadd [#allocation4], %s135
      %s137 = sshll.u32 [#allocation3], 4
      %s138 = int_to_ptr.vmem [resolvable:$true] %s137
      %143 = dma.vmem_to_hbm [thread:$0]  %s138, 256, %s3, [#allocation4], 128, 128, 8
    $region17: #{cobnet_forward.13} parent=1 // pred_fallthru
      _
    // Predicated region
    $region18: #{cobnet_forward.13} parent=1 // pred_check
      _
    $region19: #{cobnet_forward.13} parent=1 // pred_check_branch
      %145 = sbr.rel (0) target = $region21
    $region20: #{cobnet_forward.13} parent=1 // pred_region
      %146 = dma.done [#allocation4], 256
    $region21: #{cobnet_forward.13} parent=1 // pred_fallthru
      _
    %147 = vsyncpa [#allocation4], 1

</llo_original>
